<compile_context>
chip_gen: v5e
topology: v5e:2x2
jax: 0.10.0
libtpu: 0.0.40
codegen_flags: <defaults>
</compile_context>

<pallas_src>
import functools
import jax
import jax.numpy as jnp
from jax.experimental import pallas as pl
from jax.experimental.pallas import tpu as pltpu


# -----------------------------------------------------------------------------
# Config (small, consistent with the module's __init__)
# -----------------------------------------------------------------------------
CFG = dict(
    n_features=4,      # len(cfg.feature_cols)
    dense_dim=32,      # cfg.dense_dim
    hidden_size=16,    # cfg.hidden_size
    num_layers=2,      # cfg.num_layers
    logit_dim=16,      # cfg.logit_dim
    target_size=1,     # cfg.target_size
)
BATCH = 2
SEQ = 8


# -----------------------------------------------------------------------------
# Single fused Pallas kernel: MLP -> BiLSTM stack -> head
# -----------------------------------------------------------------------------
def _fused_forward_kernel(*refs, S, B, H, num_layers):
    """All data is time-major-flat (S*B, feat). refs = (in_refs..., out_ref)."""
    f32 = jnp.float32
    idx = [0]

    def nxt():
        r = refs[idx[0]]
        idx[0] += 1
        return r

    x = nxt()[...]                                   # (S*B, F)
    mw1 = nxt()[...]; mb1 = nxt()[...]
    mw2 = nxt()[...]; mb2 = nxt()[...]

    lstm_params = []
    for _ in range(num_layers):
        layer = []
        for _ in range(2):                           # fwd, bwd
            layer.append((nxt()[...], nxt()[...], nxt()[...]))  # wih_T, whh_T, bias
        lstm_params.append(layer)

    hw1 = nxt()[...]; hb1 = nxt()[...]
    hw2 = nxt()[...]; hb2 = nxt()[...]
    out_ref = refs[idx[0]]

    # ---- MLP: Linear -> ReLU -> Linear -> ReLU (all timesteps at once) ----
    h = jnp.maximum(jnp.dot(x, mw1, preferred_element_type=f32) + mb1, 0.0)
    seq = jnp.maximum(jnp.dot(h, mw2, preferred_element_type=f32) + mb2, 0.0)  # (S*B, D)

    # ---- Bidirectional LSTM stack (PyTorch gate order i,f,g,o) ----
    def cell(gx_t, h_prev, c_prev, whh):
        gates = gx_t + jnp.dot(h_prev, whh, preferred_element_type=f32)  # (B, 4H)
        i = jax.nn.sigmoid(gates[:, 0 * H:1 * H])
        f = jax.nn.sigmoid(gates[:, 1 * H:2 * H])
        g = jnp.tanh(gates[:, 2 * H:3 * H])
        o = jax.nn.sigmoid(gates[:, 3 * H:4 * H])
        c = f * c_prev + i * g
        return o * jnp.tanh(c), c

    for layer in lstm_params:
        (wih_f, whh_f, bias_f), (wih_b, whh_b, bias_b) = layer
        # Hoisted, non-recurrent input projections (one big matmul per dir).
        gx_f = jnp.dot(seq, wih_f, preferred_element_type=f32) + bias_f   # (S*B, 4H)
        gx_b = jnp.dot(seq, wih_b, preferred_element_type=f32) + bias_b   # (S*B, 4H)

        zeros = jnp.zeros((B, H), f32)
        h_f, c_f = zeros, zeros
        h_b, c_b = zeros, zeros
        fwd = [None] * S
        bwd = [None] * S
        # Fully unrolled time loop; fwd (step t) and bwd (step S-1-t) fused.
        for t in range(S):
            h_f, c_f = cell(gx_f[t * B:(t + 1) * B], h_f, c_f, whh_f)
            fwd[t] = h_f
            tb = S - 1 - t
            h_b, c_b = cell(gx_b[tb * B:(tb + 1) * B], h_b, c_b, whh_b)
            bwd[tb] = h_b

        seq = jnp.concatenate(
            [jnp.concatenate(fwd, axis=0), jnp.concatenate(bwd, axis=0)],
            axis=1,
        )                                                               # (S*B, 2H)

    # ---- Head: Linear -> ReLU -> Linear ----
    hh = jnp.maximum(jnp.dot(seq, hw1, preferred_element_type=f32) + hb1, 0.0)
    out_ref[...] = jnp.dot(hh, hw2, preferred_element_type=f32) + hb2   # (S*B, T)


# -----------------------------------------------------------------------------
# Wrapper
# -----------------------------------------------------------------------------
def custom_model_forward(x, prepared, cfg):
    """x: (B, S, F) float32. `prepared` is the pre-transposed parameter dict."""
    B, S, F = x.shape
    H = cfg["hidden_size"]
    L = cfg["num_layers"]
    T = cfg["target_size"]

    # Time-major flat layout for the kernel (one tiny layout permute outside).
    x_tm = jnp.transpose(x, (1, 0, 2)).reshape(S * B, F)

    args = [x_tm,
            prepared["mlp_w1"], prepared["mlp_b1"],
            prepared["mlp_w2"], prepared["mlp_b2"]]
    for l in range(L):
        for suf in ("", "_rev"):
            args += [prepared[f"w_ih_l{l}{suf}_T"],
                     prepared[f"w_hh_l{l}{suf}_T"],
                     prepared[f"b_l{l}{suf}"]]
    args += [prepared["head_w1"], prepared["head_b1"],
             prepared["head_w2"], prepared["head_b2"]]

    kernel = functools.partial(_fused_forward_kernel, S=S, B=B, H=H, num_layers=L)
    out_tm = pl.pallas_call(
        kernel,
        out_shape=jax.ShapeDtypeStruct((S * B, T), jnp.float32),
        in_specs=[pl.BlockSpec(memory_space=pltpu.MemorySpace.VMEM)] * len(args),
        out_specs=pl.BlockSpec(memory_space=pltpu.MemorySpace.VMEM),
    )(*args)

    # (S*B, T) time-major -> (B, S*T), matching output = head(features).view(bs, -1)
    return jnp.transpose(out_tm.reshape(S, B, T), (1, 0, 2)).reshape(B, S * T)


def prepare_params(p, cfg):
    """One-time conversion of PyTorch-convention params to kernel layout."""
    prep = {
        "mlp_w1": p["mlp_w1"], "mlp_b1": p["mlp_b1"][None, :],
        "mlp_w2": p["mlp_w2"], "mlp_b2": p["mlp_b2"][None, :],
        "head_w1": p["head_w1"], "head_b1": p["head_b1"][None, :],
        "head_w2": p["head_w2"], "head_b2": p["head_b2"][None, :],
    }
    for l in range(cfg["num_layers"]):
        for suf in ("", "_rev"):
            prep[f"w_ih_l{l}{suf}_T"] = p[f"w_ih_l{l}{suf}"].T                 # (In, 4H)
            prep[f"w_hh_l{l}{suf}_T"] = p[f"w_hh_l{l}{suf}"].T                 # (H, 4H)
            prep[f"b_l{l}{suf}"] = (p[f"b_ih_l{l}{suf}"] + p[f"b_hh_l{l}{suf}"])[None, :]
    return {k: jnp.asarray(v, jnp.float32) for k, v in prep.items()}


# -----------------------------------------------------------------------------
# Pure-JAX reference (for correctness check)
# -----------------------------------------------------------------------------
def _ref_forward(x, p, cfg):
    B, S, F = x.shape
    H = cfg["hidden_size"]
    h = jax.nn.relu(x.reshape(B * S, F) @ p["mlp_w1"] + p["mlp_b1"])
    feats = jax.nn.relu(h @ p["mlp_w2"] + p["mlp_b2"]).reshape(B, S, -1)
    seq = jnp.transpose(feats, (1, 0, 2))

    def run_dir(sq, w_ih, w_hh, b):
        B_ = sq.shape[1]

        def step(carry, x_t):
            hh, cc = carry
            g = x_t @ w_ih.T + hh @ w_hh.T + b
            i = jax.nn.sigmoid(g[:, :H]); f = jax.nn.sigmoid(g[:, H:2 * H])
            gg = jnp.tanh(g[:, 2 * H:3 * H]); o = jax.nn.sigmoid(g[:, 3 * H:])
            cc = f * cc + i * gg
            hh = o * jnp.tanh(cc)
            return (hh, cc), hh

        init = (jnp.zeros((B_, H)), jnp.zeros((B_, H)))
        _, ys = jax.lax.scan(step, init, sq)
        return ys

    for l in range(cfg["num_layers"]):
        fwd = run_dir(seq, p[f"w_ih_l{l}"], p[f"w_hh_l{l}"],
                      p[f"b_ih_l{l}"] + p[f"b_hh_l{l}"])
        bwd = run_dir(seq[::-1], p[f"w_ih_l{l}_rev"], p[f"w_hh_l{l}_rev"],
                      p[f"b_ih_l{l}_rev"] + p[f"b_hh_l{l}_rev"])[::-1]
        seq = jnp.concatenate([fwd, bwd], axis=-1)

    feats = jnp.transpose(seq, (1, 0, 2)).reshape(B * S, 2 * H)
    hh = jax.nn.relu(feats @ p["head_w1"] + p["head_b1"])
    out = hh @ p["head_w2"] + p["head_b2"]
    return out.reshape(B, -1)


# -----------------------------------------------------------------------------
# Deterministic parameter init (shapes from the module's __init__)
# -----------------------------------------------------------------------------
def init_params(key, cfg):
    F = cfg["n_features"]; D = cfg["dense_dim"]; H = cfg["hidden_size"]
    L = cfg["logit_dim"]; T = cfg["target_size"]
    p = {}

    def nrm(k, shape, scale=0.1):
        return scale * jax.random.normal(k, shape, dtype=jnp.float32)

    keys = iter(jax.random.split(key, 64))
    # MLP
    p["mlp_w1"] = nrm(next(keys), (F, D // 2))
    p["mlp_b1"] = nrm(next(keys), (D // 2,))
    p["mlp_w2"] = nrm(next(keys), (D // 2, D))
    p["mlp_b2"] = nrm(next(keys), (D,))
    # LSTM (PyTorch param shapes: w_ih (4H, In), w_hh (4H, H), biases (4H,))
    for l in range(cfg["num_layers"]):
        in_dim = D if l == 0 else 2 * H
        for suffix in ("", "_rev"):
            p[f"w_ih_l{l}{suffix}"] = nrm(next(keys), (4 * H, in_dim))
            p[f"w_hh_l{l}{suffix}"] = nrm(next(keys), (4 * H, H))
            p[f"b_ih_l{l}{suffix}"] = nrm(next(keys), (4 * H,))
            p[f"b_hh_l{l}{suffix}"] = nrm(next(keys), (4 * H,))
    # Head
    p["head_w1"] = nrm(next(keys), (2 * H, L))
    p["head_b1"] = nrm(next(keys), (L,))
    p["head_w2"] = nrm(next(keys), (L, T))
    p["head_b2"] = nrm(next(keys), (T,))
    return p


# -----------------------------------------------------------------------------
# Main
# -----------------------------------------------------------------------------
if __name__ == "__main__":
    key = jax.random.PRNGKey(0)
    pkey, xkey = jax.random.split(key)
    params = init_params(pkey, CFG)
    prepared = prepare_params(params, CFG)          # one-time layout prep
    x = jax.random.normal(xkey, (BATCH, SEQ, CFG["n_features"]), dtype=jnp.float32)

    fwd = jax.jit(lambda xx, pp: custom_model_forward(xx, pp, CFG))
    out = jax.block_until_ready(fwd(x, prepared))

    ref = jax.block_until_ready(_ref_forward(x, params, CFG))
    assert out.shape == (BATCH, SEQ * CFG["target_size"]), out.shape
    assert jnp.allclose(out, ref, atol=1e-5, rtol=1e-5), float(jnp.max(jnp.abs(out - ref)))

    print("KERNEL_OK")
</pallas_src>

<mosaic_0001>
module attributes {stable_mosaic.version = 11 : i64} {
  func.func @_fused_forward_kernel(%arg0: memref<16x4xf32, #tpu.memory_space<vmem>>, %arg1: memref<4x16xf32, #tpu.memory_space<vmem>>, %arg2: memref<1x16xf32, #tpu.memory_space<vmem>>, %arg3: memref<16x32xf32, #tpu.memory_space<vmem>>, %arg4: memref<1x32xf32, #tpu.memory_space<vmem>>, %arg5: memref<32x64xf32, #tpu.memory_space<vmem>>, %arg6: memref<16x64xf32, #tpu.memory_space<vmem>>, %arg7: memref<1x64xf32, #tpu.memory_space<vmem>>, %arg8: memref<32x64xf32, #tpu.memory_space<vmem>>, %arg9: memref<16x64xf32, #tpu.memory_space<vmem>>, %arg10: memref<1x64xf32, #tpu.memory_space<vmem>>, %arg11: memref<32x64xf32, #tpu.memory_space<vmem>>, %arg12: memref<16x64xf32, #tpu.memory_space<vmem>>, %arg13: memref<1x64xf32, #tpu.memory_space<vmem>>, %arg14: memref<32x64xf32, #tpu.memory_space<vmem>>, %arg15: memref<16x64xf32, #tpu.memory_space<vmem>>, %arg16: memref<1x64xf32, #tpu.memory_space<vmem>>, %arg17: memref<32x16xf32, #tpu.memory_space<vmem>>, %arg18: memref<1x16xf32, #tpu.memory_space<vmem>>, %arg19: memref<16x1xf32, #tpu.memory_space<vmem>>, %arg20: memref<1x1xf32, #tpu.memory_space<vmem>>, %arg21: memref<16x1xf32, #tpu.memory_space<vmem>>) attributes {dimension_semantics = [], scalar_prefetch = 0 : i64, scratch_operands = 0 : i64, tpu.core_type = #tpu.core_type<tc>} {
    %c0 = arith.constant 0 : index
    %c0_0 = arith.constant 0 : index
    %0 = vector.load %arg0[%c0, %c0_0] : memref<16x4xf32, #tpu.memory_space<vmem>>, vector<16x4xf32>
    %c0_1 = arith.constant 0 : index
    %c0_2 = arith.constant 0 : index
    %1 = vector.load %arg1[%c0_1, %c0_2] : memref<4x16xf32, #tpu.memory_space<vmem>>, vector<4x16xf32>
    %c0_3 = arith.constant 0 : index
    %c0_4 = arith.constant 0 : index
    %2 = vector.load %arg2[%c0_3, %c0_4] : memref<1x16xf32, #tpu.memory_space<vmem>>, vector<1x16xf32>
    %c0_5 = arith.constant 0 : index
    %c0_6 = arith.constant 0 : index
    %3 = vector.load %arg3[%c0_5, %c0_6] : memref<16x32xf32, #tpu.memory_space<vmem>>, vector<16x32xf32>
    %c0_7 = arith.constant 0 : index
    %c0_8 = arith.constant 0 : index
    %4 = vector.load %arg4[%c0_7, %c0_8] : memref<1x32xf32, #tpu.memory_space<vmem>>, vector<1x32xf32>
    %c0_9 = arith.constant 0 : index
    %c0_10 = arith.constant 0 : index
    %5 = vector.load %arg5[%c0_9, %c0_10] : memref<32x64xf32, #tpu.memory_space<vmem>>, vector<32x64xf32>
    %c0_11 = arith.constant 0 : index
    %c0_12 = arith.constant 0 : index
    %6 = vector.load %arg6[%c0_11, %c0_12] : memref<16x64xf32, #tpu.memory_space<vmem>>, vector<16x64xf32>
    %c0_13 = arith.constant 0 : index
    %c0_14 = arith.constant 0 : index
    %7 = vector.load %arg7[%c0_13, %c0_14] : memref<1x64xf32, #tpu.memory_space<vmem>>, vector<1x64xf32>
    %c0_15 = arith.constant 0 : index
    %c0_16 = arith.constant 0 : index
    %8 = vector.load %arg8[%c0_15, %c0_16] : memref<32x64xf32, #tpu.memory_space<vmem>>, vector<32x64xf32>
    %c0_17 = arith.constant 0 : index
    %c0_18 = arith.constant 0 : index
    %9 = vector.load %arg9[%c0_17, %c0_18] : memref<16x64xf32, #tpu.memory_space<vmem>>, vector<16x64xf32>
    %c0_19 = arith.constant 0 : index
    %c0_20 = arith.constant 0 : index
    %10 = vector.load %arg10[%c0_19, %c0_20] : memref<1x64xf32, #tpu.memory_space<vmem>>, vector<1x64xf32>
    %c0_21 = arith.constant 0 : index
    %c0_22 = arith.constant 0 : index
    %11 = vector.load %arg11[%c0_21, %c0_22] : memref<32x64xf32, #tpu.memory_space<vmem>>, vector<32x64xf32>
    %c0_23 = arith.constant 0 : index
    %c0_24 = arith.constant 0 : index
    %12 = vector.load %arg12[%c0_23, %c0_24] : memref<16x64xf32, #tpu.memory_space<vmem>>, vector<16x64xf32>
    %c0_25 = arith.constant 0 : index
    %c0_26 = arith.constant 0 : index
    %13 = vector.load %arg13[%c0_25, %c0_26] : memref<1x64xf32, #tpu.memory_space<vmem>>, vector<1x64xf32>
    %c0_27 = arith.constant 0 : index
    %c0_28 = arith.constant 0 : index
    %14 = vector.load %arg14[%c0_27, %c0_28] : memref<32x64xf32, #tpu.memory_space<vmem>>, vector<32x64xf32>
    %c0_29 = arith.constant 0 : index
    %c0_30 = arith.constant 0 : index
    %15 = vector.load %arg15[%c0_29, %c0_30] : memref<16x64xf32, #tpu.memory_space<vmem>>, vector<16x64xf32>
    %c0_31 = arith.constant 0 : index
    %c0_32 = arith.constant 0 : index
    %16 = vector.load %arg16[%c0_31, %c0_32] : memref<1x64xf32, #tpu.memory_space<vmem>>, vector<1x64xf32>
    %c0_33 = arith.constant 0 : index
    %c0_34 = arith.constant 0 : index
    %17 = vector.load %arg17[%c0_33, %c0_34] : memref<32x16xf32, #tpu.memory_space<vmem>>, vector<32x16xf32>
    %c0_35 = arith.constant 0 : index
    %c0_36 = arith.constant 0 : index
    %18 = vector.load %arg18[%c0_35, %c0_36] : memref<1x16xf32, #tpu.memory_space<vmem>>, vector<1x16xf32>
    %c0_37 = arith.constant 0 : index
    %c0_38 = arith.constant 0 : index
    %19 = vector.load %arg19[%c0_37, %c0_38] : memref<16x1xf32, #tpu.memory_space<vmem>>, vector<16x1xf32>
    %c0_39 = arith.constant 0 : index
    %c0_40 = arith.constant 0 : index
    %20 = vector.load %arg20[%c0_39, %c0_40] : memref<1x1xf32, #tpu.memory_space<vmem>>, vector<1x1xf32>
    %cst = arith.constant dense<0.000000e+00> : vector<16x16xf32>
    %21 = tpu.matmul %0, %1, %cst {dimension_numbers = #tpu.dot_dimension_numbers<[1], [0], [0], [1], [0, 0, 1, 1], [], []>} : vector<16x4xf32>, vector<4x16xf32>, vector<16x16xf32> -> vector<16x16xf32>
    %22 = vector.broadcast %2 : vector<1x16xf32> to vector<16x16xf32>
    %23 = arith.addf %21, %22 : vector<16x16xf32>
    %cst_41 = arith.constant 0.000000e+00 : f32
    %24 = vector.broadcast %cst_41 : f32 to vector<16x16xf32>
    %25 = arith.maximumf %23, %24 : vector<16x16xf32>
    %cst_42 = arith.constant dense<0.000000e+00> : vector<16x32xf32>
    %26 = tpu.matmul %25, %3, %cst_42 {dimension_numbers = #tpu.dot_dimension_numbers<[1], [0], [0], [1], [0, 0, 1, 1], [], []>} : vector<16x16xf32>, vector<16x32xf32>, vector<16x32xf32> -> vector<16x32xf32>
    %27 = vector.broadcast %4 : vector<1x32xf32> to vector<16x32xf32>
    %28 = arith.addf %26, %27 : vector<16x32xf32>
    %cst_43 = arith.constant 0.000000e+00 : f32
    %29 = vector.broadcast %cst_43 : f32 to vector<16x32xf32>
    %30 = arith.maximumf %28, %29 : vector<16x32xf32>
    %cst_44 = arith.constant dense<0.000000e+00> : vector<16x64xf32>
    %31 = tpu.matmul %30, %5, %cst_44 {dimension_numbers = #tpu.dot_dimension_numbers<[1], [0], [0], [1], [0, 0, 1, 1], [], []>} : vector<16x32xf32>, vector<32x64xf32>, vector<16x64xf32> -> vector<16x64xf32>
    %32 = vector.broadcast %7 : vector<1x64xf32> to vector<16x64xf32>
    %33 = arith.addf %31, %32 : vector<16x64xf32>
    %cst_45 = arith.constant dense<0.000000e+00> : vector<16x64xf32>
    %34 = tpu.matmul %30, %8, %cst_45 {dimension_numbers = #tpu.dot_dimension_numbers<[1], [0], [0], [1], [0, 0, 1, 1], [], []>} : vector<16x32xf32>, vector<32x64xf32>, vector<16x64xf32> -> vector<16x64xf32>
    %35 = vector.broadcast %10 : vector<1x64xf32> to vector<16x64xf32>
    %36 = arith.addf %34, %35 : vector<16x64xf32>
    %cst_46 = arith.constant 0.000000e+00 : f32
    %37 = vector.broadcast %cst_46 : f32 to vector<2x16xf32>
    %38 = vector.extract_strided_slice %33 {offsets = [0, 0], sizes = [2, 64], strides = [1, 1]} : vector<16x64xf32> to vector<2x64xf32>
    %cst_47 = arith.constant dense<0.000000e+00> : vector<2x64xf32>
    %39 = tpu.matmul %37, %6, %cst_47 {dimension_numbers = #tpu.dot_dimension_numbers<[1], [0], [0], [1], [0, 0, 1, 1], [], []>} : vector<2x16xf32>, vector<16x64xf32>, vector<2x64xf32> -> vector<2x64xf32>
    %40 = arith.addf %38, %39 : vector<2x64xf32>
    %41 = vector.extract_strided_slice %40 {offsets = [0, 0], sizes = [2, 16], strides = [1, 1]} : vector<2x64xf32> to vector<2x16xf32>
    %42 = arith.negf %41 : vector<2x16xf32>
    %43 = math.exp %42 : vector<2x16xf32>
    %cst_48 = arith.constant 1.000000e+00 : f32
    %44 = vector.broadcast %cst_48 : f32 to vector<2x16xf32>
    %45 = arith.addf %44, %43 : vector<2x16xf32>
    %46 = arith.divf %44, %45 : vector<2x16xf32>
    %47 = vector.extract_strided_slice %40 {offsets = [0, 16], sizes = [2, 16], strides = [1, 1]} : vector<2x64xf32> to vector<2x16xf32>
    %48 = arith.negf %47 : vector<2x16xf32>
    %49 = math.exp %48 : vector<2x16xf32>
    %cst_49 = arith.constant 1.000000e+00 : f32
    %50 = vector.broadcast %cst_49 : f32 to vector<2x16xf32>
    %51 = arith.addf %50, %49 : vector<2x16xf32>
    %52 = arith.divf %50, %51 : vector<2x16xf32>
    %53 = vector.extract_strided_slice %40 {offsets = [0, 32], sizes = [2, 16], strides = [1, 1]} : vector<2x64xf32> to vector<2x16xf32>
    %54 = math.tanh %53 : vector<2x16xf32>
    %55 = vector.extract_strided_slice %40 {offsets = [0, 48], sizes = [2, 16], strides = [1, 1]} : vector<2x64xf32> to vector<2x16xf32>
    %56 = arith.negf %55 : vector<2x16xf32>
    %57 = math.exp %56 : vector<2x16xf32>
    %cst_50 = arith.constant 1.000000e+00 : f32
    %58 = vector.broadcast %cst_50 : f32 to vector<2x16xf32>
    %59 = arith.addf %58, %57 : vector<2x16xf32>
    %60 = arith.divf %58, %59 : vector<2x16xf32>
    %61 = arith.mulf %52, %37 : vector<2x16xf32>
    %62 = arith.mulf %46, %54 : vector<2x16xf32>
    %63 = arith.addf %61, %62 : vector<2x16xf32>
    %64 = math.tanh %63 : vector<2x16xf32>
    %65 = arith.mulf %60, %64 : vector<2x16xf32>
    %66 = vector.extract_strided_slice %36 {offsets = [14, 0], sizes = [2, 64], strides = [1, 1]} : vector<16x64xf32> to vector<2x64xf32>
    %cst_51 = arith.constant dense<0.000000e+00> : vector<2x64xf32>
    %67 = tpu.matmul %37, %9, %cst_51 {dimension_numbers = #tpu.dot_dimension_numbers<[1], [0], [0], [1], [0, 0, 1, 1], [], []>} : vector<2x16xf32>, vector<16x64xf32>, vector<2x64xf32> -> vector<2x64xf32>
    %68 = arith.addf %66, %67 : vector<2x64xf32>
    %69 = vector.extract_strided_slice %68 {offsets = [0, 0], sizes = [2, 16], strides = [1, 1]} : vector<2x64xf32> to vector<2x16xf32>
    %70 = arith.negf %69 : vector<2x16xf32>
    %71 = math.exp %70 : vector<2x16xf32>
    %cst_52 = arith.constant 1.000000e+00 : f32
    %72 = vector.broadcast %cst_52 : f32 to vector<2x16xf32>
    %73 = arith.addf %72, %71 : vector<2x16xf32>
    %74 = arith.divf %72, %73 : vector<2x16xf32>
    %75 = vector.extract_strided_slice %68 {offsets = [0, 16], sizes = [2, 16], strides = [1, 1]} : vector<2x64xf32> to vector<2x16xf32>
    %76 = arith.negf %75 : vector<2x16xf32>
    %77 = math.exp %76 : vector<2x16xf32>
    %cst_53 = arith.constant 1.000000e+00 : f32
    %78 = vector.broadcast %cst_53 : f32 to vector<2x16xf32>
    %79 = arith.addf %78, %77 : vector<2x16xf32>
    %80 = arith.divf %78, %79 : vector<2x16xf32>
    %81 = vector.extract_strided_slice %68 {offsets = [0, 32], sizes = [2, 16], strides = [1, 1]} : vector<2x64xf32> to vector<2x16xf32>
    %82 = math.tanh %81 : vector<2x16xf32>
    %83 = vector.extract_strided_slice %68 {offsets = [0, 48], sizes = [2, 16], strides = [1, 1]} : vector<2x64xf32> to vector<2x16xf32>
    %84 = arith.negf %83 : vector<2x16xf32>
    %85 = math.exp %84 : vector<2x16xf32>
    %cst_54 = arith.constant 1.000000e+00 : f32
    %86 = vector.broadcast %cst_54 : f32 to vector<2x16xf32>
    %87 = arith.addf %86, %85 : vector<2x16xf32>
    %88 = arith.divf %86, %87 : vector<2x16xf32>
    %89 = arith.mulf %80, %37 : vector<2x16xf32>
    %90 = arith.mulf %74, %82 : vector<2x16xf32>
    %91 = arith.addf %89, %90 : vector<2x16xf32>
    %92 = math.tanh %91 : vector<2x16xf32>
    %93 = arith.mulf %88, %92 : vector<2x16xf32>
    %94 = vector.extract_strided_slice %33 {offsets = [2, 0], sizes = [2, 64], strides = [1, 1]} : vector<16x64xf32> to vector<2x64xf32>
    %cst_55 = arith.constant dense<0.000000e+00> : vector<2x64xf32>
    %95 = tpu.matmul %65, %6, %cst_55 {dimension_numbers = #tpu.dot_dimension_numbers<[1], [0], [0], [1], [0, 0, 1, 1], [], []>} : vector<2x16xf32>, vector<16x64xf32>, vector<2x64xf32> -> vector<2x64xf32>
    %96 = arith.addf %94, %95 : vector<2x64xf32>
    %97 = vector.extract_strided_slice %96 {offsets = [0, 0], sizes = [2, 16], strides = [1, 1]} : vector<2x64xf32> to vector<2x16xf32>
    %98 = arith.negf %97 : vector<2x16xf32>
    %99 = math.exp %98 : vector<2x16xf32>
    %cst_56 = arith.constant 1.000000e+00 : f32
    %100 = vector.broadcast %cst_56 : f32 to vector<2x16xf32>
    %101 = arith.addf %100, %99 : vector<2x16xf32>
    %102 = arith.divf %100, %101 : vector<2x16xf32>
    %103 = vector.extract_strided_slice %96 {offsets = [0, 16], sizes = [2, 16], strides = [1, 1]} : vector<2x64xf32> to vector<2x16xf32>
    %104 = arith.negf %103 : vector<2x16xf32>
    %105 = math.exp %104 : vector<2x16xf32>
    %cst_57 = arith.constant 1.000000e+00 : f32
    %106 = vector.broadcast %cst_57 : f32 to vector<2x16xf32>
    %107 = arith.addf %106, %105 : vector<2x16xf32>
    %108 = arith.divf %106, %107 : vector<2x16xf32>
    %109 = vector.extract_strided_slice %96 {offsets = [0, 32], sizes = [2, 16], strides = [1, 1]} : vector<2x64xf32> to vector<2x16xf32>
    %110 = math.tanh %109 : vector<2x16xf32>
    %111 = vector.extract_strided_slice %96 {offsets = [0, 48], sizes = [2, 16], strides = [1, 1]} : vector<2x64xf32> to vector<2x16xf32>
    %112 = arith.negf %111 : vector<2x16xf32>
    %113 = math.exp %112 : vector<2x16xf32>
    %cst_58 = arith.constant 1.000000e+00 : f32
    %114 = vector.broadcast %cst_58 : f32 to vector<2x16xf32>
    %115 = arith.addf %114, %113 : vector<2x16xf32>
    %116 = arith.divf %114, %115 : vector<2x16xf32>
    %117 = arith.mulf %108, %63 : vector<2x16xf32>
    %118 = arith.mulf %102, %110 : vector<2x16xf32>
    %119 = arith.addf %117, %118 : vector<2x16xf32>
    %120 = math.tanh %119 : vector<2x16xf32>
    %121 = arith.mulf %116, %120 : vector<2x16xf32>
    %122 = vector.extract_strided_slice %36 {offsets = [12, 0], sizes = [2, 64], strides = [1, 1]} : vector<16x64xf32> to vector<2x64xf32>
    %cst_59 = arith.constant dense<0.000000e+00> : vector<2x64xf32>
    %123 = tpu.matmul %93, %9, %cst_59 {dimension_numbers = #tpu.dot_dimension_numbers<[1], [0], [0], [1], [0, 0, 1, 1], [], []>} : vector<2x16xf32>, vector<16x64xf32>, vector<2x64xf32> -> vector<2x64xf32>
    %124 = arith.addf %122, %123 : vector<2x64xf32>
    %125 = vector.extract_strided_slice %124 {offsets = [0, 0], sizes = [2, 16], strides = [1, 1]} : vector<2x64xf32> to vector<2x16xf32>
    %126 = arith.negf %125 : vector<2x16xf32>
    %127 = math.exp %126 : vector<2x16xf32>
    %cst_60 = arith.constant 1.000000e+00 : f32
    %128 = vector.broadcast %cst_60 : f32 to vector<2x16xf32>
    %129 = arith.addf %128, %127 : vector<2x16xf32>
    %130 = arith.divf %128, %129 : vector<2x16xf32>
    %131 = vector.extract_strided_slice %124 {offsets = [0, 16], sizes = [2, 16], strides = [1, 1]} : vector<2x64xf32> to vector<2x16xf32>
    %132 = arith.negf %131 : vector<2x16xf32>
    %133 = math.exp %132 : vector<2x16xf32>
    %cst_61 = arith.constant 1.000000e+00 : f32
    %134 = vector.broadcast %cst_61 : f32 to vector<2x16xf32>
    %135 = arith.addf %134, %133 : vector<2x16xf32>
    %136 = arith.divf %134, %135 : vector<2x16xf32>
    %137 = vector.extract_strided_slice %124 {offsets = [0, 32], sizes = [2, 16], strides = [1, 1]} : vector<2x64xf32> to vector<2x16xf32>
    %138 = math.tanh %137 : vector<2x16xf32>
    %139 = vector.extract_strided_slice %124 {offsets = [0, 48], sizes = [2, 16], strides = [1, 1]} : vector<2x64xf32> to vector<2x16xf32>
    %140 = arith.negf %139 : vector<2x16xf32>
    %141 = math.exp %140 : vector<2x16xf32>
    %cst_62 = arith.constant 1.000000e+00 : f32
    %142 = vector.broadcast %cst_62 : f32 to vector<2x16xf32>
    %143 = arith.addf %142, %141 : vector<2x16xf32>
    %144 = arith.divf %142, %143 : vector<2x16xf32>
    %145 = arith.mulf %136, %91 : vector<2x16xf32>
    %146 = arith.mulf %130, %138 : vector<2x16xf32>
    %147 = arith.addf %145, %146 : vector<2x16xf32>
    %148 = math.tanh %147 : vector<2x16xf32>
    %149 = arith.mulf %144, %148 : vector<2x16xf32>
    %150 = vector.extract_strided_slice %33 {offsets = [4, 0], sizes = [2, 64], strides = [1, 1]} : vector<16x64xf32> to vector<2x64xf32>
    %cst_63 = arith.constant dense<0.000000e+00> : vector<2x64xf32>
    %151 = tpu.matmul %121, %6, %cst_63 {dimension_numbers = #tpu.dot_dimension_numbers<[1], [0], [0], [1], [0, 0, 1, 1], [], []>} : vector<2x16xf32>, vector<16x64xf32>, vector<2x64xf32> -> vector<2x64xf32>
    %152 = arith.addf %150, %151 : vector<2x64xf32>
    %153 = vector.extract_strided_slice %152 {offsets = [0, 0], sizes = [2, 16], strides = [1, 1]} : vector<2x64xf32> to vector<2x16xf32>
    %154 = arith.negf %153 : vector<2x16xf32>
    %155 = math.exp %154 : vector<2x16xf32>
    %cst_64 = arith.constant 1.000000e+00 : f32
    %156 = vector.broadcast %cst_64 : f32 to vector<2x16xf32>
    %157 = arith.addf %156, %155 : vector<2x16xf32>
    %158 = arith.divf %156, %157 : vector<2x16xf32>
    %159 = vector.extract_strided_slice %152 {offsets = [0, 16], sizes = [2, 16], strides = [1, 1]} : vector<2x64xf32> to vector<2x16xf32>
    %160 = arith.negf %159 : vector<2x16xf32>
    %161 = math.exp %160 : vector<2x16xf32>
    %cst_65 = arith.constant 1.000000e+00 : f32
    %162 = vector.broadcast %cst_65 : f32 to vector<2x16xf32>
    %163 = arith.addf %162, %161 : vector<2x16xf32>
    %164 = arith.divf %162, %163 : vector<2x16xf32>
    %165 = vector.extract_strided_slice %152 {offsets = [0, 32], sizes = [2, 16], strides = [1, 1]} : vector<2x64xf32> to vector<2x16xf32>
    %166 = math.tanh %165 : vector<2x16xf32>
    %167 = vector.extract_strided_slice %152 {offsets = [0, 48], sizes = [2, 16], strides = [1, 1]} : vector<2x64xf32> to vector<2x16xf32>
    %168 = arith.negf %167 : vector<2x16xf32>
    %169 = math.exp %168 : vector<2x16xf32>
    %cst_66 = arith.constant 1.000000e+00 : f32
    %170 = vector.broadcast %cst_66 : f32 to vector<2x16xf32>
    %171 = arith.addf %170, %169 : vector<2x16xf32>
    %172 = arith.divf %170, %171 : vector<2x16xf32>
    %173 = arith.mulf %164, %119 : vector<2x16xf32>
    %174 = arith.mulf %158, %166 : vector<2x16xf32>
    %175 = arith.addf %173, %174 : vector<2x16xf32>
    %176 = math.tanh %175 : vector<2x16xf32>
    %177 = arith.mulf %172, %176 : vector<2x16xf32>
    %178 = vector.extract_strided_slice %36 {offsets = [10, 0], sizes = [2, 64], strides = [1, 1]} : vector<16x64xf32> to vector<2x64xf32>
    %cst_67 = arith.constant dense<0.000000e+00> : vector<2x64xf32>
    %179 = tpu.matmul %149, %9, %cst_67 {dimension_numbers = #tpu.dot_dimension_numbers<[1], [0], [0], [1], [0, 0, 1, 1], [], []>} : vector<2x16xf32>, vector<16x64xf32>, vector<2x64xf32> -> vector<2x64xf32>
    %180 = arith.addf %178, %179 : vector<2x64xf32>
    %181 = vector.extract_strided_slice %180 {offsets = [0, 0], sizes = [2, 16], strides = [1, 1]} : vector<2x64xf32> to vector<2x16xf32>
    %182 = arith.negf %181 : vector<2x16xf32>
    %183 = math.exp %182 : vector<2x16xf32>
    %cst_68 = arith.constant 1.000000e+00 : f32
    %184 = vector.broadcast %cst_68 : f32 to vector<2x16xf32>
    %185 = arith.addf %184, %183 : vector<2x16xf32>
    %186 = arith.divf %184, %185 : vector<2x16xf32>
    %187 = vector.extract_strided_slice %180 {offsets = [0, 16], sizes = [2, 16], strides = [1, 1]} : vector<2x64xf32> to vector<2x16xf32>
    %188 = arith.negf %187 : vector<2x16xf32>
    %189 = math.exp %188 : vector<2x16xf32>
    %cst_69 = arith.constant 1.000000e+00 : f32
    %190 = vector.broadcast %cst_69 : f32 to vector<2x16xf32>
    %191 = arith.addf %190, %189 : vector<2x16xf32>
    %192 = arith.divf %190, %191 : vector<2x16xf32>
    %193 = vector.extract_strided_slice %180 {offsets = [0, 32], sizes = [2, 16], strides = [1, 1]} : vector<2x64xf32> to vector<2x16xf32>
    %194 = math.tanh %193 : vector<2x16xf32>
    %195 = vector.extract_strided_slice %180 {offsets = [0, 48], sizes = [2, 16], strides = [1, 1]} : vector<2x64xf32> to vector<2x16xf32>
    %196 = arith.negf %195 : vector<2x16xf32>
    %197 = math.exp %196 : vector<2x16xf32>
    %cst_70 = arith.constant 1.000000e+00 : f32
    %198 = vector.broadcast %cst_70 : f32 to vector<2x16xf32>
    %199 = arith.addf %198, %197 : vector<2x16xf32>
    %200 = arith.divf %198, %199 : vector<2x16xf32>
    %201 = arith.mulf %192, %147 : vector<2x16xf32>
    %202 = arith.mulf %186, %194 : vector<2x16xf32>
    %203 = arith.addf %201, %202 : vector<2x16xf32>
    %204 = math.tanh %203 : vector<2x16xf32>
    %205 = arith.mulf %200, %204 : vector<2x16xf32>
    %206 = vector.extract_strided_slice %33 {offsets = [6, 0], sizes = [2, 64], strides = [1, 1]} : vector<16x64xf32> to vector<2x64xf32>
    %cst_71 = arith.constant dense<0.000000e+00> : vector<2x64xf32>
    %207 = tpu.matmul %177, %6, %cst_71 {dimension_numbers = #tpu.dot_dimension_numbers<[1], [0], [0], [1], [0, 0, 1, 1], [], []>} : vector<2x16xf32>, vector<16x64xf32>, vector<2x64xf32> -> vector<2x64xf32>
    %208 = arith.addf %206, %207 : vector<2x64xf32>
    %209 = vector.extract_strided_slice %208 {offsets = [0, 0], sizes = [2, 16], strides = [1, 1]} : vector<2x64xf32> to vector<2x16xf32>
    %210 = arith.negf %209 : vector<2x16xf32>
    %211 = math.exp %210 : vector<2x16xf32>
    %cst_72 = arith.constant 1.000000e+00 : f32
    %212 = vector.broadcast %cst_72 : f32 to vector<2x16xf32>
    %213 = arith.addf %212, %211 : vector<2x16xf32>
    %214 = arith.divf %212, %213 : vector<2x16xf32>
    %215 = vector.extract_strided_slice %208 {offsets = [0, 16], sizes = [2, 16], strides = [1, 1]} : vector<2x64xf32> to vector<2x16xf32>
    %216 = arith.negf %215 : vector<2x16xf32>
    %217 = math.exp %216 : vector<2x16xf32>
    %cst_73 = arith.constant 1.000000e+00 : f32
    %218 = vector.broadcast %cst_73 : f32 to vector<2x16xf32>
    %219 = arith.addf %218, %217 : vector<2x16xf32>
    %220 = arith.divf %218, %219 : vector<2x16xf32>
    %221 = vector.extract_strided_slice %208 {offsets = [0, 32], sizes = [2, 16], strides = [1, 1]} : vector<2x64xf32> to vector<2x16xf32>
    %222 = math.tanh %221 : vector<2x16xf32>
    %223 = vector.extract_strided_slice %208 {offsets = [0, 48], sizes = [2, 16], strides = [1, 1]} : vector<2x64xf32> to vector<2x16xf32>
    %224 = arith.negf %223 : vector<2x16xf32>
    %225 = math.exp %224 : vector<2x16xf32>
    %cst_74 = arith.constant 1.000000e+00 : f32
    %226 = vector.broadcast %cst_74 : f32 to vector<2x16xf32>
    %227 = arith.addf %226, %225 : vector<2x16xf32>
    %228 = arith.divf %226, %227 : vector<2x16xf32>
    %229 = arith.mulf %220, %175 : vector<2x16xf32>
    %230 = arith.mulf %214, %222 : vector<2x16xf32>
    %231 = arith.addf %229, %230 : vector<2x16xf32>
    %232 = math.tanh %231 : vector<2x16xf32>
    %233 = arith.mulf %228, %232 : vector<2x16xf32>
    %234 = vector.extract_strided_slice %36 {offsets = [8, 0], sizes = [2, 64], strides = [1, 1]} : vector<16x64xf32> to vector<2x64xf32>
    %cst_75 = arith.constant dense<0.000000e+00> : vector<2x64xf32>
    %235 = tpu.matmul %205, %9, %cst_75 {dimension_numbers = #tpu.dot_dimension_numbers<[1], [0], [0], [1], [0, 0, 1, 1], [], []>} : vector<2x16xf32>, vector<16x64xf32>, vector<2x64xf32> -> vector<2x64xf32>
    %236 = arith.addf %234, %235 : vector<2x64xf32>
    %237 = vector.extract_strided_slice %236 {offsets = [0, 0], sizes = [2, 16], strides = [1, 1]} : vector<2x64xf32> to vector<2x16xf32>
    %238 = arith.negf %237 : vector<2x16xf32>
    %239 = math.exp %238 : vector<2x16xf32>
    %cst_76 = arith.constant 1.000000e+00 : f32
    %240 = vector.broadcast %cst_76 : f32 to vector<2x16xf32>
    %241 = arith.addf %240, %239 : vector<2x16xf32>
    %242 = arith.divf %240, %241 : vector<2x16xf32>
    %243 = vector.extract_strided_slice %236 {offsets = [0, 16], sizes = [2, 16], strides = [1, 1]} : vector<2x64xf32> to vector<2x16xf32>
    %244 = arith.negf %243 : vector<2x16xf32>
    %245 = math.exp %244 : vector<2x16xf32>
    %cst_77 = arith.constant 1.000000e+00 : f32
    %246 = vector.broadcast %cst_77 : f32 to vector<2x16xf32>
    %247 = arith.addf %246, %245 : vector<2x16xf32>
    %248 = arith.divf %246, %247 : vector<2x16xf32>
    %249 = vector.extract_strided_slice %236 {offsets = [0, 32], sizes = [2, 16], strides = [1, 1]} : vector<2x64xf32> to vector<2x16xf32>
    %250 = math.tanh %249 : vector<2x16xf32>
    %251 = vector.extract_strided_slice %236 {offsets = [0, 48], sizes = [2, 16], strides = [1, 1]} : vector<2x64xf32> to vector<2x16xf32>
    %252 = arith.negf %251 : vector<2x16xf32>
    %253 = math.exp %252 : vector<2x16xf32>
    %cst_78 = arith.constant 1.000000e+00 : f32
    %254 = vector.broadcast %cst_78 : f32 to vector<2x16xf32>
    %255 = arith.addf %254, %253 : vector<2x16xf32>
    %256 = arith.divf %254, %255 : vector<2x16xf32>
    %257 = arith.mulf %248, %203 : vector<2x16xf32>
    %258 = arith.mulf %242, %250 : vector<2x16xf32>
    %259 = arith.addf %257, %258 : vector<2x16xf32>
    %260 = math.tanh %259 : vector<2x16xf32>
    %261 = arith.mulf %256, %260 : vector<2x16xf32>
    %262 = vector.extract_strided_slice %33 {offsets = [8, 0], sizes = [2, 64], strides = [1, 1]} : vector<16x64xf32> to vector<2x64xf32>
    %cst_79 = arith.constant dense<0.000000e+00> : vector<2x64xf32>
    %263 = tpu.matmul %233, %6, %cst_79 {dimension_numbers = #tpu.dot_dimension_numbers<[1], [0], [0], [1], [0, 0, 1, 1], [], []>} : vector<2x16xf32>, vector<16x64xf32>, vector<2x64xf32> -> vector<2x64xf32>
    %264 = arith.addf %262, %263 : vector<2x64xf32>
    %265 = vector.extract_strided_slice %264 {offsets = [0, 0], sizes = [2, 16], strides = [1, 1]} : vector<2x64xf32> to vector<2x16xf32>
    %266 = arith.negf %265 : vector<2x16xf32>
    %267 = math.exp %266 : vector<2x16xf32>
    %cst_80 = arith.constant 1.000000e+00 : f32
    %268 = vector.broadcast %cst_80 : f32 to vector<2x16xf32>
    %269 = arith.addf %268, %267 : vector<2x16xf32>
    %270 = arith.divf %268, %269 : vector<2x16xf32>
    %271 = vector.extract_strided_slice %264 {offsets = [0, 16], sizes = [2, 16], strides = [1, 1]} : vector<2x64xf32> to vector<2x16xf32>
    %272 = arith.negf %271 : vector<2x16xf32>
    %273 = math.exp %272 : vector<2x16xf32>
    %cst_81 = arith.constant 1.000000e+00 : f32
    %274 = vector.broadcast %cst_81 : f32 to vector<2x16xf32>
    %275 = arith.addf %274, %273 : vector<2x16xf32>
    %276 = arith.divf %274, %275 : vector<2x16xf32>
    %277 = vector.extract_strided_slice %264 {offsets = [0, 32], sizes = [2, 16], strides = [1, 1]} : vector<2x64xf32> to vector<2x16xf32>
    %278 = math.tanh %277 : vector<2x16xf32>
    %279 = vector.extract_strided_slice %264 {offsets = [0, 48], sizes = [2, 16], strides = [1, 1]} : vector<2x64xf32> to vector<2x16xf32>
    %280 = arith.negf %279 : vector<2x16xf32>
    %281 = math.exp %280 : vector<2x16xf32>
    %cst_82 = arith.constant 1.000000e+00 : f32
    %282 = vector.broadcast %cst_82 : f32 to vector<2x16xf32>
    %283 = arith.addf %282, %281 : vector<2x16xf32>
    %284 = arith.divf %282, %283 : vector<2x16xf32>
    %285 = arith.mulf %276, %231 : vector<2x16xf32>
    %286 = arith.mulf %270, %278 : vector<2x16xf32>
    %287 = arith.addf %285, %286 : vector<2x16xf32>
    %288 = math.tanh %287 : vector<2x16xf32>
    %289 = arith.mulf %284, %288 : vector<2x16xf32>
    %290 = vector.extract_strided_slice %36 {offsets = [6, 0], sizes = [2, 64], strides = [1, 1]} : vector<16x64xf32> to vector<2x64xf32>
    %cst_83 = arith.constant dense<0.000000e+00> : vector<2x64xf32>
    %291 = tpu.matmul %261, %9, %cst_83 {dimension_numbers = #tpu.dot_dimension_numbers<[1], [0], [0], [1], [0, 0, 1, 1], [], []>} : vector<2x16xf32>, vector<16x64xf32>, vector<2x64xf32> -> vector<2x64xf32>
    %292 = arith.addf %290, %291 : vector<2x64xf32>
    %293 = vector.extract_strided_slice %292 {offsets = [0, 0], sizes = [2, 16], strides = [1, 1]} : vector<2x64xf32> to vector<2x16xf32>
    %294 = arith.negf %293 : vector<2x16xf32>
    %295 = math.exp %294 : vector<2x16xf32>
    %cst_84 = arith.constant 1.000000e+00 : f32
    %296 = vector.broadcast %cst_84 : f32 to vector<2x16xf32>
    %297 = arith.addf %296, %295 : vector<2x16xf32>
    %298 = arith.divf %296, %297 : vector<2x16xf32>
    %299 = vector.extract_strided_slice %292 {offsets = [0, 16], sizes = [2, 16], strides = [1, 1]} : vector<2x64xf32> to vector<2x16xf32>
    %300 = arith.negf %299 : vector<2x16xf32>
    %301 = math.exp %300 : vector<2x16xf32>
    %cst_85 = arith.constant 1.000000e+00 : f32
    %302 = vector.broadcast %cst_85 : f32 to vector<2x16xf32>
    %303 = arith.addf %302, %301 : vector<2x16xf32>
    %304 = arith.divf %302, %303 : vector<2x16xf32>
    %305 = vector.extract_strided_slice %292 {offsets = [0, 32], sizes = [2, 16], strides = [1, 1]} : vector<2x64xf32> to vector<2x16xf32>
    %306 = math.tanh %305 : vector<2x16xf32>
    %307 = vector.extract_strided_slice %292 {offsets = [0, 48], sizes = [2, 16], strides = [1, 1]} : vector<2x64xf32> to vector<2x16xf32>
    %308 = arith.negf %307 : vector<2x16xf32>
    %309 = math.exp %308 : vector<2x16xf32>
    %cst_86 = arith.constant 1.000000e+00 : f32
    %310 = vector.broadcast %cst_86 : f32 to vector<2x16xf32>
    %311 = arith.addf %310, %309 : vector<2x16xf32>
    %312 = arith.divf %310, %311 : vector<2x16xf32>
    %313 = arith.mulf %304, %259 : vector<2x16xf32>
    %314 = arith.mulf %298, %306 : vector<2x16xf32>
    %315 = arith.addf %313, %314 : vector<2x16xf32>
    %316 = math.tanh %315 : vector<2x16xf32>
    %317 = arith.mulf %312, %316 : vector<2x16xf32>
    %318 = vector.extract_strided_slice %33 {offsets = [10, 0], sizes = [2, 64], strides = [1, 1]} : vector<16x64xf32> to vector<2x64xf32>
    %cst_87 = arith.constant dense<0.000000e+00> : vector<2x64xf32>
    %319 = tpu.matmul %289, %6, %cst_87 {dimension_numbers = #tpu.dot_dimension_numbers<[1], [0], [0], [1], [0, 0, 1, 1], [], []>} : vector<2x16xf32>, vector<16x64xf32>, vector<2x64xf32> -> vector<2x64xf32>
    %320 = arith.addf %318, %319 : vector<2x64xf32>
    %321 = vector.extract_strided_slice %320 {offsets = [0, 0], sizes = [2, 16], strides = [1, 1]} : vector<2x64xf32> to vector<2x16xf32>
    %322 = arith.negf %321 : vector<2x16xf32>
    %323 = math.exp %322 : vector<2x16xf32>
    %cst_88 = arith.constant 1.000000e+00 : f32
    %324 = vector.broadcast %cst_88 : f32 to vector<2x16xf32>
    %325 = arith.addf %324, %323 : vector<2x16xf32>
    %326 = arith.divf %324, %325 : vector<2x16xf32>
    %327 = vector.extract_strided_slice %320 {offsets = [0, 16], sizes = [2, 16], strides = [1, 1]} : vector<2x64xf32> to vector<2x16xf32>
    %328 = arith.negf %327 : vector<2x16xf32>
    %329 = math.exp %328 : vector<2x16xf32>
    %cst_89 = arith.constant 1.000000e+00 : f32
    %330 = vector.broadcast %cst_89 : f32 to vector<2x16xf32>
    %331 = arith.addf %330, %329 : vector<2x16xf32>
    %332 = arith.divf %330, %331 : vector<2x16xf32>
    %333 = vector.extract_strided_slice %320 {offsets = [0, 32], sizes = [2, 16], strides = [1, 1]} : vector<2x64xf32> to vector<2x16xf32>
    %334 = math.tanh %333 : vector<2x16xf32>
    %335 = vector.extract_strided_slice %320 {offsets = [0, 48], sizes = [2, 16], strides = [1, 1]} : vector<2x64xf32> to vector<2x16xf32>
    %336 = arith.negf %335 : vector<2x16xf32>
    %337 = math.exp %336 : vector<2x16xf32>
    %cst_90 = arith.constant 1.000000e+00 : f32
    %338 = vector.broadcast %cst_90 : f32 to vector<2x16xf32>
    %339 = arith.addf %338, %337 : vector<2x16xf32>
    %340 = arith.divf %338, %339 : vector<2x16xf32>
    %341 = arith.mulf %332, %287 : vector<2x16xf32>
    %342 = arith.mulf %326, %334 : vector<2x16xf32>
    %343 = arith.addf %341, %342 : vector<2x16xf32>
    %344 = math.tanh %343 : vector<2x16xf32>
    %345 = arith.mulf %340, %344 : vector<2x16xf32>
    %346 = vector.extract_strided_slice %36 {offsets = [4, 0], sizes = [2, 64], strides = [1, 1]} : vector<16x64xf32> to vector<2x64xf32>
    %cst_91 = arith.constant dense<0.000000e+00> : vector<2x64xf32>
    %347 = tpu.matmul %317, %9, %cst_91 {dimension_numbers = #tpu.dot_dimension_numbers<[1], [0], [0], [1], [0, 0, 1, 1], [], []>} : vector<2x16xf32>, vector<16x64xf32>, vector<2x64xf32> -> vector<2x64xf32>
    %348 = arith.addf %346, %347 : vector<2x64xf32>
    %349 = vector.extract_strided_slice %348 {offsets = [0, 0], sizes = [2, 16], strides = [1, 1]} : vector<2x64xf32> to vector<2x16xf32>
    %350 = arith.negf %349 : vector<2x16xf32>
    %351 = math.exp %350 : vector<2x16xf32>
    %cst_92 = arith.constant 1.000000e+00 : f32
    %352 = vector.broadcast %cst_92 : f32 to vector<2x16xf32>
    %353 = arith.addf %352, %351 : vector<2x16xf32>
    %354 = arith.divf %352, %353 : vector<2x16xf32>
    %355 = vector.extract_strided_slice %348 {offsets = [0, 16], sizes = [2, 16], strides = [1, 1]} : vector<2x64xf32> to vector<2x16xf32>
    %356 = arith.negf %355 : vector<2x16xf32>
    %357 = math.exp %356 : vector<2x16xf32>
    %cst_93 = arith.constant 1.000000e+00 : f32
    %358 = vector.broadcast %cst_93 : f32 to vector<2x16xf32>
    %359 = arith.addf %358, %357 : vector<2x16xf32>
    %360 = arith.divf %358, %359 : vector<2x16xf32>
    %361 = vector.extract_strided_slice %348 {offsets = [0, 32], sizes = [2, 16], strides = [1, 1]} : vector<2x64xf32> to vector<2x16xf32>
    %362 = math.tanh %361 : vector<2x16xf32>
    %363 = vector.extract_strided_slice %348 {offsets = [0, 48], sizes = [2, 16], strides = [1, 1]} : vector<2x64xf32> to vector<2x16xf32>
    %364 = arith.negf %363 : vector<2x16xf32>
    %365 = math.exp %364 : vector<2x16xf32>
    %cst_94 = arith.constant 1.000000e+00 : f32
    %366 = vector.broadcast %cst_94 : f32 to vector<2x16xf32>
    %367 = arith.addf %366, %365 : vector<2x16xf32>
    %368 = arith.divf %366, %367 : vector<2x16xf32>
    %369 = arith.mulf %360, %315 : vector<2x16xf32>
    %370 = arith.mulf %354, %362 : vector<2x16xf32>
    %371 = arith.addf %369, %370 : vector<2x16xf32>
    %372 = math.tanh %371 : vector<2x16xf32>
    %373 = arith.mulf %368, %372 : vector<2x16xf32>
    %374 = vector.extract_strided_slice %33 {offsets = [12, 0], sizes = [2, 64], strides = [1, 1]} : vector<16x64xf32> to vector<2x64xf32>
    %cst_95 = arith.constant dense<0.000000e+00> : vector<2x64xf32>
    %375 = tpu.matmul %345, %6, %cst_95 {dimension_numbers = #tpu.dot_dimension_numbers<[1], [0], [0], [1], [0, 0, 1, 1], [], []>} : vector<2x16xf32>, vector<16x64xf32>, vector<2x64xf32> -> vector<2x64xf32>
    %376 = arith.addf %374, %375 : vector<2x64xf32>
    %377 = vector.extract_strided_slice %376 {offsets = [0, 0], sizes = [2, 16], strides = [1, 1]} : vector<2x64xf32> to vector<2x16xf32>
    %378 = arith.negf %377 : vector<2x16xf32>
    %379 = math.exp %378 : vector<2x16xf32>
    %cst_96 = arith.constant 1.000000e+00 : f32
    %380 = vector.broadcast %cst_96 : f32 to vector<2x16xf32>
    %381 = arith.addf %380, %379 : vector<2x16xf32>
    %382 = arith.divf %380, %381 : vector<2x16xf32>
    %383 = vector.extract_strided_slice %376 {offsets = [0, 16], sizes = [2, 16], strides = [1, 1]} : vector<2x64xf32> to vector<2x16xf32>
    %384 = arith.negf %383 : vector<2x16xf32>
    %385 = math.exp %384 : vector<2x16xf32>
    %cst_97 = arith.constant 1.000000e+00 : f32
    %386 = vector.broadcast %cst_97 : f32 to vector<2x16xf32>
    %387 = arith.addf %386, %385 : vector<2x16xf32>
    %388 = arith.divf %386, %387 : vector<2x16xf32>
    %389 = vector.extract_strided_slice %376 {offsets = [0, 32], sizes = [2, 16], strides = [1, 1]} : vector<2x64xf32> to vector<2x16xf32>
    %390 = math.tanh %389 : vector<2x16xf32>
    %391 = vector.extract_strided_slice %376 {offsets = [0, 48], sizes = [2, 16], strides = [1, 1]} : vector<2x64xf32> to vector<2x16xf32>
    %392 = arith.negf %391 : vector<2x16xf32>
    %393 = math.exp %392 : vector<2x16xf32>
    %cst_98 = arith.constant 1.000000e+00 : f32
    %394 = vector.broadcast %cst_98 : f32 to vector<2x16xf32>
    %395 = arith.addf %394, %393 : vector<2x16xf32>
    %396 = arith.divf %394, %395 : vector<2x16xf32>
    %397 = arith.mulf %388, %343 : vector<2x16xf32>
    %398 = arith.mulf %382, %390 : vector<2x16xf32>
    %399 = arith.addf %397, %398 : vector<2x16xf32>
    %400 = math.tanh %399 : vector<2x16xf32>
    %401 = arith.mulf %396, %400 : vector<2x16xf32>
    %402 = vector.extract_strided_slice %36 {offsets = [2, 0], sizes = [2, 64], strides = [1, 1]} : vector<16x64xf32> to vector<2x64xf32>
    %cst_99 = arith.constant dense<0.000000e+00> : vector<2x64xf32>
    %403 = tpu.matmul %373, %9, %cst_99 {dimension_numbers = #tpu.dot_dimension_numbers<[1], [0], [0], [1], [0, 0, 1, 1], [], []>} : vector<2x16xf32>, vector<16x64xf32>, vector<2x64xf32> -> vector<2x64xf32>
    %404 = arith.addf %402, %403 : vector<2x64xf32>
    %405 = vector.extract_strided_slice %404 {offsets = [0, 0], sizes = [2, 16], strides = [1, 1]} : vector<2x64xf32> to vector<2x16xf32>
    %406 = arith.negf %405 : vector<2x16xf32>
    %407 = math.exp %406 : vector<2x16xf32>
    %cst_100 = arith.constant 1.000000e+00 : f32
    %408 = vector.broadcast %cst_100 : f32 to vector<2x16xf32>
    %409 = arith.addf %408, %407 : vector<2x16xf32>
    %410 = arith.divf %408, %409 : vector<2x16xf32>
    %411 = vector.extract_strided_slice %404 {offsets = [0, 16], sizes = [2, 16], strides = [1, 1]} : vector<2x64xf32> to vector<2x16xf32>
    %412 = arith.negf %411 : vector<2x16xf32>
    %413 = math.exp %412 : vector<2x16xf32>
    %cst_101 = arith.constant 1.000000e+00 : f32
    %414 = vector.broadcast %cst_101 : f32 to vector<2x16xf32>
    %415 = arith.addf %414, %413 : vector<2x16xf32>
    %416 = arith.divf %414, %415 : vector<2x16xf32>
    %417 = vector.extract_strided_slice %404 {offsets = [0, 32], sizes = [2, 16], strides = [1, 1]} : vector<2x64xf32> to vector<2x16xf32>
    %418 = math.tanh %417 : vector<2x16xf32>
    %419 = vector.extract_strided_slice %404 {offsets = [0, 48], sizes = [2, 16], strides = [1, 1]} : vector<2x64xf32> to vector<2x16xf32>
    %420 = arith.negf %419 : vector<2x16xf32>
    %421 = math.exp %420 : vector<2x16xf32>
    %cst_102 = arith.constant 1.000000e+00 : f32
    %422 = vector.broadcast %cst_102 : f32 to vector<2x16xf32>
    %423 = arith.addf %422, %421 : vector<2x16xf32>
    %424 = arith.divf %422, %423 : vector<2x16xf32>
    %425 = arith.mulf %416, %371 : vector<2x16xf32>
    %426 = arith.mulf %410, %418 : vector<2x16xf32>
    %427 = arith.addf %425, %426 : vector<2x16xf32>
    %428 = math.tanh %427 : vector<2x16xf32>
    %429 = arith.mulf %424, %428 : vector<2x16xf32>
    %430 = vector.extract_strided_slice %33 {offsets = [14, 0], sizes = [2, 64], strides = [1, 1]} : vector<16x64xf32> to vector<2x64xf32>
    %cst_103 = arith.constant dense<0.000000e+00> : vector<2x64xf32>
    %431 = tpu.matmul %401, %6, %cst_103 {dimension_numbers = #tpu.dot_dimension_numbers<[1], [0], [0], [1], [0, 0, 1, 1], [], []>} : vector<2x16xf32>, vector<16x64xf32>, vector<2x64xf32> -> vector<2x64xf32>
    %432 = arith.addf %430, %431 : vector<2x64xf32>
    %433 = vector.extract_strided_slice %432 {offsets = [0, 0], sizes = [2, 16], strides = [1, 1]} : vector<2x64xf32> to vector<2x16xf32>
    %434 = arith.negf %433 : vector<2x16xf32>
    %435 = math.exp %434 : vector<2x16xf32>
    %cst_104 = arith.constant 1.000000e+00 : f32
    %436 = vector.broadcast %cst_104 : f32 to vector<2x16xf32>
    %437 = arith.addf %436, %435 : vector<2x16xf32>
    %438 = arith.divf %436, %437 : vector<2x16xf32>
    %439 = vector.extract_strided_slice %432 {offsets = [0, 16], sizes = [2, 16], strides = [1, 1]} : vector<2x64xf32> to vector<2x16xf32>
    %440 = arith.negf %439 : vector<2x16xf32>
    %441 = math.exp %440 : vector<2x16xf32>
    %cst_105 = arith.constant 1.000000e+00 : f32
    %442 = vector.broadcast %cst_105 : f32 to vector<2x16xf32>
    %443 = arith.addf %442, %441 : vector<2x16xf32>
    %444 = arith.divf %442, %443 : vector<2x16xf32>
    %445 = vector.extract_strided_slice %432 {offsets = [0, 32], sizes = [2, 16], strides = [1, 1]} : vector<2x64xf32> to vector<2x16xf32>
    %446 = math.tanh %445 : vector<2x16xf32>
    %447 = vector.extract_strided_slice %432 {offsets = [0, 48], sizes = [2, 16], strides = [1, 1]} : vector<2x64xf32> to vector<2x16xf32>
    %448 = arith.negf %447 : vector<2x16xf32>
    %449 = math.exp %448 : vector<2x16xf32>
    %cst_106 = arith.constant 1.000000e+00 : f32
    %450 = vector.broadcast %cst_106 : f32 to vector<2x16xf32>
    %451 = arith.addf %450, %449 : vector<2x16xf32>
    %452 = arith.divf %450, %451 : vector<2x16xf32>
    %453 = arith.mulf %444, %399 : vector<2x16xf32>
    %454 = arith.mulf %438, %446 : vector<2x16xf32>
    %455 = arith.addf %453, %454 : vector<2x16xf32>
    %456 = math.tanh %455 : vector<2x16xf32>
    %457 = arith.mulf %452, %456 : vector<2x16xf32>
    %458 = vector.extract_strided_slice %36 {offsets = [0, 0], sizes = [2, 64], strides = [1, 1]} : vector<16x64xf32> to vector<2x64xf32>
    %cst_107 = arith.constant dense<0.000000e+00> : vector<2x64xf32>
    %459 = tpu.matmul %429, %9, %cst_107 {dimension_numbers = #tpu.dot_dimension_numbers<[1], [0], [0], [1], [0, 0, 1, 1], [], []>} : vector<2x16xf32>, vector<16x64xf32>, vector<2x64xf32> -> vector<2x64xf32>
    %460 = arith.addf %458, %459 : vector<2x64xf32>
    %461 = vector.extract_strided_slice %460 {offsets = [0, 0], sizes = [2, 16], strides = [1, 1]} : vector<2x64xf32> to vector<2x16xf32>
    %462 = arith.negf %461 : vector<2x16xf32>
    %463 = math.exp %462 : vector<2x16xf32>
    %cst_108 = arith.constant 1.000000e+00 : f32
    %464 = vector.broadcast %cst_108 : f32 to vector<2x16xf32>
    %465 = arith.addf %464, %463 : vector<2x16xf32>
    %466 = arith.divf %464, %465 : vector<2x16xf32>
    %467 = vector.extract_strided_slice %460 {offsets = [0, 16], sizes = [2, 16], strides = [1, 1]} : vector<2x64xf32> to vector<2x16xf32>
    %468 = arith.negf %467 : vector<2x16xf32>
    %469 = math.exp %468 : vector<2x16xf32>
    %cst_109 = arith.constant 1.000000e+00 : f32
    %470 = vector.broadcast %cst_109 : f32 to vector<2x16xf32>
    %471 = arith.addf %470, %469 : vector<2x16xf32>
    %472 = arith.divf %470, %471 : vector<2x16xf32>
    %473 = vector.extract_strided_slice %460 {offsets = [0, 32], sizes = [2, 16], strides = [1, 1]} : vector<2x64xf32> to vector<2x16xf32>
    %474 = math.tanh %473 : vector<2x16xf32>
    %475 = vector.extract_strided_slice %460 {offsets = [0, 48], sizes = [2, 16], strides = [1, 1]} : vector<2x64xf32> to vector<2x16xf32>
    %476 = arith.negf %475 : vector<2x16xf32>
    %477 = math.exp %476 : vector<2x16xf32>
    %cst_110 = arith.constant 1.000000e+00 : f32
    %478 = vector.broadcast %cst_110 : f32 to vector<2x16xf32>
    %479 = arith.addf %478, %477 : vector<2x16xf32>
    %480 = arith.divf %478, %479 : vector<2x16xf32>
    %481 = arith.mulf %472, %427 : vector<2x16xf32>
    %482 = arith.mulf %466, %474 : vector<2x16xf32>
    %483 = arith.addf %481, %482 : vector<2x16xf32>
    %484 = math.tanh %483 : vector<2x16xf32>
    %485 = arith.mulf %480, %484 : vector<2x16xf32>
    %486 = tpu.concatenate %65, %121, %177, %233, %289, %345, %401, %457 in 0 : vector<2x16xf32>, vector<2x16xf32>, vector<2x16xf32>, vector<2x16xf32>, vector<2x16xf32>, vector<2x16xf32>, vector<2x16xf32>, vector<2x16xf32> -> vector<16x16xf32>
    %487 = tpu.concatenate %485, %429, %373, %317, %261, %205, %149, %93 in 0 : vector<2x16xf32>, vector<2x16xf32>, vector<2x16xf32>, vector<2x16xf32>, vector<2x16xf32>, vector<2x16xf32>, vector<2x16xf32>, vector<2x16xf32> -> vector<16x16xf32>
    %488 = tpu.concatenate %486, %487 in 1 : vector<16x16xf32>, vector<16x16xf32> -> vector<16x32xf32>
    %cst_111 = arith.constant dense<0.000000e+00> : vector<16x64xf32>
    %489 = tpu.matmul %488, %11, %cst_111 {dimension_numbers = #tpu.dot_dimension_numbers<[1], [0], [0], [1], [0, 0, 1, 1], [], []>} : vector<16x32xf32>, vector<32x64xf32>, vector<16x64xf32> -> vector<16x64xf32>
    %490 = vector.broadcast %13 : vector<1x64xf32> to vector<16x64xf32>
    %491 = arith.addf %489, %490 : vector<16x64xf32>
    %cst_112 = arith.constant dense<0.000000e+00> : vector<16x64xf32>
    %492 = tpu.matmul %488, %14, %cst_112 {dimension_numbers = #tpu.dot_dimension_numbers<[1], [0], [0], [1], [0, 0, 1, 1], [], []>} : vector<16x32xf32>, vector<32x64xf32>, vector<16x64xf32> -> vector<16x64xf32>
    %493 = vector.broadcast %16 : vector<1x64xf32> to vector<16x64xf32>
    %494 = arith.addf %492, %493 : vector<16x64xf32>
    %cst_113 = arith.constant 0.000000e+00 : f32
    %495 = vector.broadcast %cst_113 : f32 to vector<2x16xf32>
    %496 = vector.extract_strided_slice %491 {offsets = [0, 0], sizes = [2, 64], strides = [1, 1]} : vector<16x64xf32> to vector<2x64xf32>
    %cst_114 = arith.constant dense<0.000000e+00> : vector<2x64xf32>
    %497 = tpu.matmul %495, %12, %cst_114 {dimension_numbers = #tpu.dot_dimension_numbers<[1], [0], [0], [1], [0, 0, 1, 1], [], []>} : vector<2x16xf32>, vector<16x64xf32>, vector<2x64xf32> -> vector<2x64xf32>
    %498 = arith.addf %496, %497 : vector<2x64xf32>
    %499 = vector.extract_strided_slice %498 {offsets = [0, 0], sizes = [2, 16], strides = [1, 1]} : vector<2x64xf32> to vector<2x16xf32>
    %500 = arith.negf %499 : vector<2x16xf32>
    %501 = math.exp %500 : vector<2x16xf32>
    %cst_115 = arith.constant 1.000000e+00 : f32
    %502 = vector.broadcast %cst_115 : f32 to vector<2x16xf32>
    %503 = arith.addf %502, %501 : vector<2x16xf32>
    %504 = arith.divf %502, %503 : vector<2x16xf32>
    %505 = vector.extract_strided_slice %498 {offsets = [0, 16], sizes = [2, 16], strides = [1, 1]} : vector<2x64xf32> to vector<2x16xf32>
    %506 = arith.negf %505 : vector<2x16xf32>
    %507 = math.exp %506 : vector<2x16xf32>
    %cst_116 = arith.constant 1.000000e+00 : f32
    %508 = vector.broadcast %cst_116 : f32 to vector<2x16xf32>
    %509 = arith.addf %508, %507 : vector<2x16xf32>
    %510 = arith.divf %508, %509 : vector<2x16xf32>
    %511 = vector.extract_strided_slice %498 {offsets = [0, 32], sizes = [2, 16], strides = [1, 1]} : vector<2x64xf32> to vector<2x16xf32>
    %512 = math.tanh %511 : vector<2x16xf32>
    %513 = vector.extract_strided_slice %498 {offsets = [0, 48], sizes = [2, 16], strides = [1, 1]} : vector<2x64xf32> to vector<2x16xf32>
    %514 = arith.negf %513 : vector<2x16xf32>
    %515 = math.exp %514 : vector<2x16xf32>
    %cst_117 = arith.constant 1.000000e+00 : f32
    %516 = vector.broadcast %cst_117 : f32 to vector<2x16xf32>
    %517 = arith.addf %516, %515 : vector<2x16xf32>
    %518 = arith.divf %516, %517 : vector<2x16xf32>
    %519 = arith.mulf %510, %495 : vector<2x16xf32>
    %520 = arith.mulf %504, %512 : vector<2x16xf32>
    %521 = arith.addf %519, %520 : vector<2x16xf32>
    %522 = math.tanh %521 : vector<2x16xf32>
    %523 = arith.mulf %518, %522 : vector<2x16xf32>
    %524 = vector.extract_strided_slice %494 {offsets = [14, 0], sizes = [2, 64], strides = [1, 1]} : vector<16x64xf32> to vector<2x64xf32>
    %cst_118 = arith.constant dense<0.000000e+00> : vector<2x64xf32>
    %525 = tpu.matmul %495, %15, %cst_118 {dimension_numbers = #tpu.dot_dimension_numbers<[1], [0], [0], [1], [0, 0, 1, 1], [], []>} : vector<2x16xf32>, vector<16x64xf32>, vector<2x64xf32> -> vector<2x64xf32>
    %526 = arith.addf %524, %525 : vector<2x64xf32>
    %527 = vector.extract_strided_slice %526 {offsets = [0, 0], sizes = [2, 16], strides = [1, 1]} : vector<2x64xf32> to vector<2x16xf32>
    %528 = arith.negf %527 : vector<2x16xf32>
    %529 = math.exp %528 : vector<2x16xf32>
    %cst_119 = arith.constant 1.000000e+00 : f32
    %530 = vector.broadcast %cst_119 : f32 to vector<2x16xf32>
    %531 = arith.addf %530, %529 : vector<2x16xf32>
    %532 = arith.divf %530, %531 : vector<2x16xf32>
    %533 = vector.extract_strided_slice %526 {offsets = [0, 16], sizes = [2, 16], strides = [1, 1]} : vector<2x64xf32> to vector<2x16xf32>
    %534 = arith.negf %533 : vector<2x16xf32>
    %535 = math.exp %534 : vector<2x16xf32>
    %cst_120 = arith.constant 1.000000e+00 : f32
    %536 = vector.broadcast %cst_120 : f32 to vector<2x16xf32>
    %537 = arith.addf %536, %535 : vector<2x16xf32>
    %538 = arith.divf %536, %537 : vector<2x16xf32>
    %539 = vector.extract_strided_slice %526 {offsets = [0, 32], sizes = [2, 16], strides = [1, 1]} : vector<2x64xf32> to vector<2x16xf32>
    %540 = math.tanh %539 : vector<2x16xf32>
    %541 = vector.extract_strided_slice %526 {offsets = [0, 48], sizes = [2, 16], strides = [1, 1]} : vector<2x64xf32> to vector<2x16xf32>
    %542 = arith.negf %541 : vector<2x16xf32>
    %543 = math.exp %542 : vector<2x16xf32>
    %cst_121 = arith.constant 1.000000e+00 : f32
    %544 = vector.broadcast %cst_121 : f32 to vector<2x16xf32>
    %545 = arith.addf %544, %543 : vector<2x16xf32>
    %546 = arith.divf %544, %545 : vector<2x16xf32>
    %547 = arith.mulf %538, %495 : vector<2x16xf32>
    %548 = arith.mulf %532, %540 : vector<2x16xf32>
    %549 = arith.addf %547, %548 : vector<2x16xf32>
    %550 = math.tanh %549 : vector<2x16xf32>
    %551 = arith.mulf %546, %550 : vector<2x16xf32>
    %552 = vector.extract_strided_slice %491 {offsets = [2, 0], sizes = [2, 64], strides = [1, 1]} : vector<16x64xf32> to vector<2x64xf32>
    %cst_122 = arith.constant dense<0.000000e+00> : vector<2x64xf32>
    %553 = tpu.matmul %523, %12, %cst_122 {dimension_numbers = #tpu.dot_dimension_numbers<[1], [0], [0], [1], [0, 0, 1, 1], [], []>} : vector<2x16xf32>, vector<16x64xf32>, vector<2x64xf32> -> vector<2x64xf32>
    %554 = arith.addf %552, %553 : vector<2x64xf32>
    %555 = vector.extract_strided_slice %554 {offsets = [0, 0], sizes = [2, 16], strides = [1, 1]} : vector<2x64xf32> to vector<2x16xf32>
    %556 = arith.negf %555 : vector<2x16xf32>
    %557 = math.exp %556 : vector<2x16xf32>
    %cst_123 = arith.constant 1.000000e+00 : f32
    %558 = vector.broadcast %cst_123 : f32 to vector<2x16xf32>
    %559 = arith.addf %558, %557 : vector<2x16xf32>
    %560 = arith.divf %558, %559 : vector<2x16xf32>
    %561 = vector.extract_strided_slice %554 {offsets = [0, 16], sizes = [2, 16], strides = [1, 1]} : vector<2x64xf32> to vector<2x16xf32>
    %562 = arith.negf %561 : vector<2x16xf32>
    %563 = math.exp %562 : vector<2x16xf32>
    %cst_124 = arith.constant 1.000000e+00 : f32
    %564 = vector.broadcast %cst_124 : f32 to vector<2x16xf32>
    %565 = arith.addf %564, %563 : vector<2x16xf32>
    %566 = arith.divf %564, %565 : vector<2x16xf32>
    %567 = vector.extract_strided_slice %554 {offsets = [0, 32], sizes = [2, 16], strides = [1, 1]} : vector<2x64xf32> to vector<2x16xf32>
    %568 = math.tanh %567 : vector<2x16xf32>
    %569 = vector.extract_strided_slice %554 {offsets = [0, 48], sizes = [2, 16], strides = [1, 1]} : vector<2x64xf32> to vector<2x16xf32>
    %570 = arith.negf %569 : vector<2x16xf32>
    %571 = math.exp %570 : vector<2x16xf32>
    %cst_125 = arith.constant 1.000000e+00 : f32
    %572 = vector.broadcast %cst_125 : f32 to vector<2x16xf32>
    %573 = arith.addf %572, %571 : vector<2x16xf32>
    %574 = arith.divf %572, %573 : vector<2x16xf32>
    %575 = arith.mulf %566, %521 : vector<2x16xf32>
    %576 = arith.mulf %560, %568 : vector<2x16xf32>
    %577 = arith.addf %575, %576 : vector<2x16xf32>
    %578 = math.tanh %577 : vector<2x16xf32>
    %579 = arith.mulf %574, %578 : vector<2x16xf32>
    %580 = vector.extract_strided_slice %494 {offsets = [12, 0], sizes = [2, 64], strides = [1, 1]} : vector<16x64xf32> to vector<2x64xf32>
    %cst_126 = arith.constant dense<0.000000e+00> : vector<2x64xf32>
    %581 = tpu.matmul %551, %15, %cst_126 {dimension_numbers = #tpu.dot_dimension_numbers<[1], [0], [0], [1], [0, 0, 1, 1], [], []>} : vector<2x16xf32>, vector<16x64xf32>, vector<2x64xf32> -> vector<2x64xf32>
    %582 = arith.addf %580, %581 : vector<2x64xf32>
    %583 = vector.extract_strided_slice %582 {offsets = [0, 0], sizes = [2, 16], strides = [1, 1]} : vector<2x64xf32> to vector<2x16xf32>
    %584 = arith.negf %583 : vector<2x16xf32>
    %585 = math.exp %584 : vector<2x16xf32>
    %cst_127 = arith.constant 1.000000e+00 : f32
    %586 = vector.broadcast %cst_127 : f32 to vector<2x16xf32>
    %587 = arith.addf %586, %585 : vector<2x16xf32>
    %588 = arith.divf %586, %587 : vector<2x16xf32>
    %589 = vector.extract_strided_slice %582 {offsets = [0, 16], sizes = [2, 16], strides = [1, 1]} : vector<2x64xf32> to vector<2x16xf32>
    %590 = arith.negf %589 : vector<2x16xf32>
    %591 = math.exp %590 : vector<2x16xf32>
    %cst_128 = arith.constant 1.000000e+00 : f32
    %592 = vector.broadcast %cst_128 : f32 to vector<2x16xf32>
    %593 = arith.addf %592, %591 : vector<2x16xf32>
    %594 = arith.divf %592, %593 : vector<2x16xf32>
    %595 = vector.extract_strided_slice %582 {offsets = [0, 32], sizes = [2, 16], strides = [1, 1]} : vector<2x64xf32> to vector<2x16xf32>
    %596 = math.tanh %595 : vector<2x16xf32>
    %597 = vector.extract_strided_slice %582 {offsets = [0, 48], sizes = [2, 16], strides = [1, 1]} : vector<2x64xf32> to vector<2x16xf32>
    %598 = arith.negf %597 : vector<2x16xf32>
    %599 = math.exp %598 : vector<2x16xf32>
    %cst_129 = arith.constant 1.000000e+00 : f32
    %600 = vector.broadcast %cst_129 : f32 to vector<2x16xf32>
    %601 = arith.addf %600, %599 : vector<2x16xf32>
    %602 = arith.divf %600, %601 : vector<2x16xf32>
    %603 = arith.mulf %594, %549 : vector<2x16xf32>
    %604 = arith.mulf %588, %596 : vector<2x16xf32>
    %605 = arith.addf %603, %604 : vector<2x16xf32>
    %606 = math.tanh %605 : vector<2x16xf32>
    %607 = arith.mulf %602, %606 : vector<2x16xf32>
    %608 = vector.extract_strided_slice %491 {offsets = [4, 0], sizes = [2, 64], strides = [1, 1]} : vector<16x64xf32> to vector<2x64xf32>
    %cst_130 = arith.constant dense<0.000000e+00> : vector<2x64xf32>
    %609 = tpu.matmul %579, %12, %cst_130 {dimension_numbers = #tpu.dot_dimension_numbers<[1], [0], [0], [1], [0, 0, 1, 1], [], []>} : vector<2x16xf32>, vector<16x64xf32>, vector<2x64xf32> -> vector<2x64xf32>
    %610 = arith.addf %608, %609 : vector<2x64xf32>
    %611 = vector.extract_strided_slice %610 {offsets = [0, 0], sizes = [2, 16], strides = [1, 1]} : vector<2x64xf32> to vector<2x16xf32>
    %612 = arith.negf %611 : vector<2x16xf32>
    %613 = math.exp %612 : vector<2x16xf32>
    %cst_131 = arith.constant 1.000000e+00 : f32
    %614 = vector.broadcast %cst_131 : f32 to vector<2x16xf32>
    %615 = arith.addf %614, %613 : vector<2x16xf32>
    %616 = arith.divf %614, %615 : vector<2x16xf32>
    %617 = vector.extract_strided_slice %610 {offsets = [0, 16], sizes = [2, 16], strides = [1, 1]} : vector<2x64xf32> to vector<2x16xf32>
    %618 = arith.negf %617 : vector<2x16xf32>
    %619 = math.exp %618 : vector<2x16xf32>
    %cst_132 = arith.constant 1.000000e+00 : f32
    %620 = vector.broadcast %cst_132 : f32 to vector<2x16xf32>
    %621 = arith.addf %620, %619 : vector<2x16xf32>
    %622 = arith.divf %620, %621 : vector<2x16xf32>
    %623 = vector.extract_strided_slice %610 {offsets = [0, 32], sizes = [2, 16], strides = [1, 1]} : vector<2x64xf32> to vector<2x16xf32>
    %624 = math.tanh %623 : vector<2x16xf32>
    %625 = vector.extract_strided_slice %610 {offsets = [0, 48], sizes = [2, 16], strides = [1, 1]} : vector<2x64xf32> to vector<2x16xf32>
    %626 = arith.negf %625 : vector<2x16xf32>
    %627 = math.exp %626 : vector<2x16xf32>
    %cst_133 = arith.constant 1.000000e+00 : f32
    %628 = vector.broadcast %cst_133 : f32 to vector<2x16xf32>
    %629 = arith.addf %628, %627 : vector<2x16xf32>
    %630 = arith.divf %628, %629 : vector<2x16xf32>
    %631 = arith.mulf %622, %577 : vector<2x16xf32>
    %632 = arith.mulf %616, %624 : vector<2x16xf32>
    %633 = arith.addf %631, %632 : vector<2x16xf32>
    %634 = math.tanh %633 : vector<2x16xf32>
    %635 = arith.mulf %630, %634 : vector<2x16xf32>
    %636 = vector.extract_strided_slice %494 {offsets = [10, 0], sizes = [2, 64], strides = [1, 1]} : vector<16x64xf32> to vector<2x64xf32>
    %cst_134 = arith.constant dense<0.000000e+00> : vector<2x64xf32>
    %637 = tpu.matmul %607, %15, %cst_134 {dimension_numbers = #tpu.dot_dimension_numbers<[1], [0], [0], [1], [0, 0, 1, 1], [], []>} : vector<2x16xf32>, vector<16x64xf32>, vector<2x64xf32> -> vector<2x64xf32>
    %638 = arith.addf %636, %637 : vector<2x64xf32>
    %639 = vector.extract_strided_slice %638 {offsets = [0, 0], sizes = [2, 16], strides = [1, 1]} : vector<2x64xf32> to vector<2x16xf32>
    %640 = arith.negf %639 : vector<2x16xf32>
    %641 = math.exp %640 : vector<2x16xf32>
    %cst_135 = arith.constant 1.000000e+00 : f32
    %642 = vector.broadcast %cst_135 : f32 to vector<2x16xf32>
    %643 = arith.addf %642, %641 : vector<2x16xf32>
    %644 = arith.divf %642, %643 : vector<2x16xf32>
    %645 = vector.extract_strided_slice %638 {offsets = [0, 16], sizes = [2, 16], strides = [1, 1]} : vector<2x64xf32> to vector<2x16xf32>
    %646 = arith.negf %645 : vector<2x16xf32>
    %647 = math.exp %646 : vector<2x16xf32>
    %cst_136 = arith.constant 1.000000e+00 : f32
    %648 = vector.broadcast %cst_136 : f32 to vector<2x16xf32>
    %649 = arith.addf %648, %647 : vector<2x16xf32>
    %650 = arith.divf %648, %649 : vector<2x16xf32>
    %651 = vector.extract_strided_slice %638 {offsets = [0, 32], sizes = [2, 16], strides = [1, 1]} : vector<2x64xf32> to vector<2x16xf32>
    %652 = math.tanh %651 : vector<2x16xf32>
    %653 = vector.extract_strided_slice %638 {offsets = [0, 48], sizes = [2, 16], strides = [1, 1]} : vector<2x64xf32> to vector<2x16xf32>
    %654 = arith.negf %653 : vector<2x16xf32>
    %655 = math.exp %654 : vector<2x16xf32>
    %cst_137 = arith.constant 1.000000e+00 : f32
    %656 = vector.broadcast %cst_137 : f32 to vector<2x16xf32>
    %657 = arith.addf %656, %655 : vector<2x16xf32>
    %658 = arith.divf %656, %657 : vector<2x16xf32>
    %659 = arith.mulf %650, %605 : vector<2x16xf32>
    %660 = arith.mulf %644, %652 : vector<2x16xf32>
    %661 = arith.addf %659, %660 : vector<2x16xf32>
    %662 = math.tanh %661 : vector<2x16xf32>
    %663 = arith.mulf %658, %662 : vector<2x16xf32>
    %664 = vector.extract_strided_slice %491 {offsets = [6, 0], sizes = [2, 64], strides = [1, 1]} : vector<16x64xf32> to vector<2x64xf32>
    %cst_138 = arith.constant dense<0.000000e+00> : vector<2x64xf32>
    %665 = tpu.matmul %635, %12, %cst_138 {dimension_numbers = #tpu.dot_dimension_numbers<[1], [0], [0], [1], [0, 0, 1, 1], [], []>} : vector<2x16xf32>, vector<16x64xf32>, vector<2x64xf32> -> vector<2x64xf32>
    %666 = arith.addf %664, %665 : vector<2x64xf32>
    %667 = vector.extract_strided_slice %666 {offsets = [0, 0], sizes = [2, 16], strides = [1, 1]} : vector<2x64xf32> to vector<2x16xf32>
    %668 = arith.negf %667 : vector<2x16xf32>
    %669 = math.exp %668 : vector<2x16xf32>
    %cst_139 = arith.constant 1.000000e+00 : f32
    %670 = vector.broadcast %cst_139 : f32 to vector<2x16xf32>
    %671 = arith.addf %670, %669 : vector<2x16xf32>
    %672 = arith.divf %670, %671 : vector<2x16xf32>
    %673 = vector.extract_strided_slice %666 {offsets = [0, 16], sizes = [2, 16], strides = [1, 1]} : vector<2x64xf32> to vector<2x16xf32>
    %674 = arith.negf %673 : vector<2x16xf32>
    %675 = math.exp %674 : vector<2x16xf32>
    %cst_140 = arith.constant 1.000000e+00 : f32
    %676 = vector.broadcast %cst_140 : f32 to vector<2x16xf32>
    %677 = arith.addf %676, %675 : vector<2x16xf32>
    %678 = arith.divf %676, %677 : vector<2x16xf32>
    %679 = vector.extract_strided_slice %666 {offsets = [0, 32], sizes = [2, 16], strides = [1, 1]} : vector<2x64xf32> to vector<2x16xf32>
    %680 = math.tanh %679 : vector<2x16xf32>
    %681 = vector.extract_strided_slice %666 {offsets = [0, 48], sizes = [2, 16], strides = [1, 1]} : vector<2x64xf32> to vector<2x16xf32>
    %682 = arith.negf %681 : vector<2x16xf32>
    %683 = math.exp %682 : vector<2x16xf32>
    %cst_141 = arith.constant 1.000000e+00 : f32
    %684 = vector.broadcast %cst_141 : f32 to vector<2x16xf32>
    %685 = arith.addf %684, %683 : vector<2x16xf32>
    %686 = arith.divf %684, %685 : vector<2x16xf32>
    %687 = arith.mulf %678, %633 : vector<2x16xf32>
    %688 = arith.mulf %672, %680 : vector<2x16xf32>
    %689 = arith.addf %687, %688 : vector<2x16xf32>
    %690 = math.tanh %689 : vector<2x16xf32>
    %691 = arith.mulf %686, %690 : vector<2x16xf32>
    %692 = vector.extract_strided_slice %494 {offsets = [8, 0], sizes = [2, 64], strides = [1, 1]} : vector<16x64xf32> to vector<2x64xf32>
    %cst_142 = arith.constant dense<0.000000e+00> : vector<2x64xf32>
    %693 = tpu.matmul %663, %15, %cst_142 {dimension_numbers = #tpu.dot_dimension_numbers<[1], [0], [0], [1], [0, 0, 1, 1], [], []>} : vector<2x16xf32>, vector<16x64xf32>, vector<2x64xf32> -> vector<2x64xf32>
    %694 = arith.addf %692, %693 : vector<2x64xf32>
    %695 = vector.extract_strided_slice %694 {offsets = [0, 0], sizes = [2, 16], strides = [1, 1]} : vector<2x64xf32> to vector<2x16xf32>
    %696 = arith.negf %695 : vector<2x16xf32>
    %697 = math.exp %696 : vector<2x16xf32>
    %cst_143 = arith.constant 1.000000e+00 : f32
    %698 = vector.broadcast %cst_143 : f32 to vector<2x16xf32>
    %699 = arith.addf %698, %697 : vector<2x16xf32>
    %700 = arith.divf %698, %699 : vector<2x16xf32>
    %701 = vector.extract_strided_slice %694 {offsets = [0, 16], sizes = [2, 16], strides = [1, 1]} : vector<2x64xf32> to vector<2x16xf32>
    %702 = arith.negf %701 : vector<2x16xf32>
    %703 = math.exp %702 : vector<2x16xf32>
    %cst_144 = arith.constant 1.000000e+00 : f32
    %704 = vector.broadcast %cst_144 : f32 to vector<2x16xf32>
    %705 = arith.addf %704, %703 : vector<2x16xf32>
    %706 = arith.divf %704, %705 : vector<2x16xf32>
    %707 = vector.extract_strided_slice %694 {offsets = [0, 32], sizes = [2, 16], strides = [1, 1]} : vector<2x64xf32> to vector<2x16xf32>
    %708 = math.tanh %707 : vector<2x16xf32>
    %709 = vector.extract_strided_slice %694 {offsets = [0, 48], sizes = [2, 16], strides = [1, 1]} : vector<2x64xf32> to vector<2x16xf32>
    %710 = arith.negf %709 : vector<2x16xf32>
    %711 = math.exp %710 : vector<2x16xf32>
    %cst_145 = arith.constant 1.000000e+00 : f32
    %712 = vector.broadcast %cst_145 : f32 to vector<2x16xf32>
    %713 = arith.addf %712, %711 : vector<2x16xf32>
    %714 = arith.divf %712, %713 : vector<2x16xf32>
    %715 = arith.mulf %706, %661 : vector<2x16xf32>
    %716 = arith.mulf %700, %708 : vector<2x16xf32>
    %717 = arith.addf %715, %716 : vector<2x16xf32>
    %718 = math.tanh %717 : vector<2x16xf32>
    %719 = arith.mulf %714, %718 : vector<2x16xf32>
    %720 = vector.extract_strided_slice %491 {offsets = [8, 0], sizes = [2, 64], strides = [1, 1]} : vector<16x64xf32> to vector<2x64xf32>
    %cst_146 = arith.constant dense<0.000000e+00> : vector<2x64xf32>
    %721 = tpu.matmul %691, %12, %cst_146 {dimension_numbers = #tpu.dot_dimension_numbers<[1], [0], [0], [1], [0, 0, 1, 1], [], []>} : vector<2x16xf32>, vector<16x64xf32>, vector<2x64xf32> -> vector<2x64xf32>
    %722 = arith.addf %720, %721 : vector<2x64xf32>
    %723 = vector.extract_strided_slice %722 {offsets = [0, 0], sizes = [2, 16], strides = [1, 1]} : vector<2x64xf32> to vector<2x16xf32>
    %724 = arith.negf %723 : vector<2x16xf32>
    %725 = math.exp %724 : vector<2x16xf32>
    %cst_147 = arith.constant 1.000000e+00 : f32
    %726 = vector.broadcast %cst_147 : f32 to vector<2x16xf32>
    %727 = arith.addf %726, %725 : vector<2x16xf32>
    %728 = arith.divf %726, %727 : vector<2x16xf32>
    %729 = vector.extract_strided_slice %722 {offsets = [0, 16], sizes = [2, 16], strides = [1, 1]} : vector<2x64xf32> to vector<2x16xf32>
    %730 = arith.negf %729 : vector<2x16xf32>
    %731 = math.exp %730 : vector<2x16xf32>
    %cst_148 = arith.constant 1.000000e+00 : f32
    %732 = vector.broadcast %cst_148 : f32 to vector<2x16xf32>
    %733 = arith.addf %732, %731 : vector<2x16xf32>
    %734 = arith.divf %732, %733 : vector<2x16xf32>
    %735 = vector.extract_strided_slice %722 {offsets = [0, 32], sizes = [2, 16], strides = [1, 1]} : vector<2x64xf32> to vector<2x16xf32>
    %736 = math.tanh %735 : vector<2x16xf32>
    %737 = vector.extract_strided_slice %722 {offsets = [0, 48], sizes = [2, 16], strides = [1, 1]} : vector<2x64xf32> to vector<2x16xf32>
    %738 = arith.negf %737 : vector<2x16xf32>
    %739 = math.exp %738 : vector<2x16xf32>
    %cst_149 = arith.constant 1.000000e+00 : f32
    %740 = vector.broadcast %cst_149 : f32 to vector<2x16xf32>
    %741 = arith.addf %740, %739 : vector<2x16xf32>
    %742 = arith.divf %740, %741 : vector<2x16xf32>
    %743 = arith.mulf %734, %689 : vector<2x16xf32>
    %744 = arith.mulf %728, %736 : vector<2x16xf32>
    %745 = arith.addf %743, %744 : vector<2x16xf32>
    %746 = math.tanh %745 : vector<2x16xf32>
    %747 = arith.mulf %742, %746 : vector<2x16xf32>
    %748 = vector.extract_strided_slice %494 {offsets = [6, 0], sizes = [2, 64], strides = [1, 1]} : vector<16x64xf32> to vector<2x64xf32>
    %cst_150 = arith.constant dense<0.000000e+00> : vector<2x64xf32>
    %749 = tpu.matmul %719, %15, %cst_150 {dimension_numbers = #tpu.dot_dimension_numbers<[1], [0], [0], [1], [0, 0, 1, 1], [], []>} : vector<2x16xf32>, vector<16x64xf32>, vector<2x64xf32> -> vector<2x64xf32>
    %750 = arith.addf %748, %749 : vector<2x64xf32>
    %751 = vector.extract_strided_slice %750 {offsets = [0, 0], sizes = [2, 16], strides = [1, 1]} : vector<2x64xf32> to vector<2x16xf32>
    %752 = arith.negf %751 : vector<2x16xf32>
    %753 = math.exp %752 : vector<2x16xf32>
    %cst_151 = arith.constant 1.000000e+00 : f32
    %754 = vector.broadcast %cst_151 : f32 to vector<2x16xf32>
    %755 = arith.addf %754, %753 : vector<2x16xf32>
    %756 = arith.divf %754, %755 : vector<2x16xf32>
    %757 = vector.extract_strided_slice %750 {offsets = [0, 16], sizes = [2, 16], strides = [1, 1]} : vector<2x64xf32> to vector<2x16xf32>
    %758 = arith.negf %757 : vector<2x16xf32>
    %759 = math.exp %758 : vector<2x16xf32>
    %cst_152 = arith.constant 1.000000e+00 : f32
    %760 = vector.broadcast %cst_152 : f32 to vector<2x16xf32>
    %761 = arith.addf %760, %759 : vector<2x16xf32>
    %762 = arith.divf %760, %761 : vector<2x16xf32>
    %763 = vector.extract_strided_slice %750 {offsets = [0, 32], sizes = [2, 16], strides = [1, 1]} : vector<2x64xf32> to vector<2x16xf32>
    %764 = math.tanh %763 : vector<2x16xf32>
    %765 = vector.extract_strided_slice %750 {offsets = [0, 48], sizes = [2, 16], strides = [1, 1]} : vector<2x64xf32> to vector<2x16xf32>
    %766 = arith.negf %765 : vector<2x16xf32>
    %767 = math.exp %766 : vector<2x16xf32>
    %cst_153 = arith.constant 1.000000e+00 : f32
    %768 = vector.broadcast %cst_153 : f32 to vector<2x16xf32>
    %769 = arith.addf %768, %767 : vector<2x16xf32>
    %770 = arith.divf %768, %769 : vector<2x16xf32>
    %771 = arith.mulf %762, %717 : vector<2x16xf32>
    %772 = arith.mulf %756, %764 : vector<2x16xf32>
    %773 = arith.addf %771, %772 : vector<2x16xf32>
    %774 = math.tanh %773 : vector<2x16xf32>
    %775 = arith.mulf %770, %774 : vector<2x16xf32>
    %776 = vector.extract_strided_slice %491 {offsets = [10, 0], sizes = [2, 64], strides = [1, 1]} : vector<16x64xf32> to vector<2x64xf32>
    %cst_154 = arith.constant dense<0.000000e+00> : vector<2x64xf32>
    %777 = tpu.matmul %747, %12, %cst_154 {dimension_numbers = #tpu.dot_dimension_numbers<[1], [0], [0], [1], [0, 0, 1, 1], [], []>} : vector<2x16xf32>, vector<16x64xf32>, vector<2x64xf32> -> vector<2x64xf32>
    %778 = arith.addf %776, %777 : vector<2x64xf32>
    %779 = vector.extract_strided_slice %778 {offsets = [0, 0], sizes = [2, 16], strides = [1, 1]} : vector<2x64xf32> to vector<2x16xf32>
    %780 = arith.negf %779 : vector<2x16xf32>
    %781 = math.exp %780 : vector<2x16xf32>
    %cst_155 = arith.constant 1.000000e+00 : f32
    %782 = vector.broadcast %cst_155 : f32 to vector<2x16xf32>
    %783 = arith.addf %782, %781 : vector<2x16xf32>
    %784 = arith.divf %782, %783 : vector<2x16xf32>
    %785 = vector.extract_strided_slice %778 {offsets = [0, 16], sizes = [2, 16], strides = [1, 1]} : vector<2x64xf32> to vector<2x16xf32>
    %786 = arith.negf %785 : vector<2x16xf32>
    %787 = math.exp %786 : vector<2x16xf32>
    %cst_156 = arith.constant 1.000000e+00 : f32
    %788 = vector.broadcast %cst_156 : f32 to vector<2x16xf32>
    %789 = arith.addf %788, %787 : vector<2x16xf32>
    %790 = arith.divf %788, %789 : vector<2x16xf32>
    %791 = vector.extract_strided_slice %778 {offsets = [0, 32], sizes = [2, 16], strides = [1, 1]} : vector<2x64xf32> to vector<2x16xf32>
    %792 = math.tanh %791 : vector<2x16xf32>
    %793 = vector.extract_strided_slice %778 {offsets = [0, 48], sizes = [2, 16], strides = [1, 1]} : vector<2x64xf32> to vector<2x16xf32>
    %794 = arith.negf %793 : vector<2x16xf32>
    %795 = math.exp %794 : vector<2x16xf32>
    %cst_157 = arith.constant 1.000000e+00 : f32
    %796 = vector.broadcast %cst_157 : f32 to vector<2x16xf32>
    %797 = arith.addf %796, %795 : vector<2x16xf32>
    %798 = arith.divf %796, %797 : vector<2x16xf32>
    %799 = arith.mulf %790, %745 : vector<2x16xf32>
    %800 = arith.mulf %784, %792 : vector<2x16xf32>
    %801 = arith.addf %799, %800 : vector<2x16xf32>
    %802 = math.tanh %801 : vector<2x16xf32>
    %803 = arith.mulf %798, %802 : vector<2x16xf32>
    %804 = vector.extract_strided_slice %494 {offsets = [4, 0], sizes = [2, 64], strides = [1, 1]} : vector<16x64xf32> to vector<2x64xf32>
    %cst_158 = arith.constant dense<0.000000e+00> : vector<2x64xf32>
    %805 = tpu.matmul %775, %15, %cst_158 {dimension_numbers = #tpu.dot_dimension_numbers<[1], [0], [0], [1], [0, 0, 1, 1], [], []>} : vector<2x16xf32>, vector<16x64xf32>, vector<2x64xf32> -> vector<2x64xf32>
    %806 = arith.addf %804, %805 : vector<2x64xf32>
    %807 = vector.extract_strided_slice %806 {offsets = [0, 0], sizes = [2, 16], strides = [1, 1]} : vector<2x64xf32> to vector<2x16xf32>
    %808 = arith.negf %807 : vector<2x16xf32>
    %809 = math.exp %808 : vector<2x16xf32>
    %cst_159 = arith.constant 1.000000e+00 : f32
    %810 = vector.broadcast %cst_159 : f32 to vector<2x16xf32>
    %811 = arith.addf %810, %809 : vector<2x16xf32>
    %812 = arith.divf %810, %811 : vector<2x16xf32>
    %813 = vector.extract_strided_slice %806 {offsets = [0, 16], sizes = [2, 16], strides = [1, 1]} : vector<2x64xf32> to vector<2x16xf32>
    %814 = arith.negf %813 : vector<2x16xf32>
    %815 = math.exp %814 : vector<2x16xf32>
    %cst_160 = arith.constant 1.000000e+00 : f32
    %816 = vector.broadcast %cst_160 : f32 to vector<2x16xf32>
    %817 = arith.addf %816, %815 : vector<2x16xf32>
    %818 = arith.divf %816, %817 : vector<2x16xf32>
    %819 = vector.extract_strided_slice %806 {offsets = [0, 32], sizes = [2, 16], strides = [1, 1]} : vector<2x64xf32> to vector<2x16xf32>
    %820 = math.tanh %819 : vector<2x16xf32>
    %821 = vector.extract_strided_slice %806 {offsets = [0, 48], sizes = [2, 16], strides = [1, 1]} : vector<2x64xf32> to vector<2x16xf32>
    %822 = arith.negf %821 : vector<2x16xf32>
    %823 = math.exp %822 : vector<2x16xf32>
    %cst_161 = arith.constant 1.000000e+00 : f32
    %824 = vector.broadcast %cst_161 : f32 to vector<2x16xf32>
    %825 = arith.addf %824, %823 : vector<2x16xf32>
    %826 = arith.divf %824, %825 : vector<2x16xf32>
    %827 = arith.mulf %818, %773 : vector<2x16xf32>
    %828 = arith.mulf %812, %820 : vector<2x16xf32>
    %829 = arith.addf %827, %828 : vector<2x16xf32>
    %830 = math.tanh %829 : vector<2x16xf32>
    %831 = arith.mulf %826, %830 : vector<2x16xf32>
    %832 = vector.extract_strided_slice %491 {offsets = [12, 0], sizes = [2, 64], strides = [1, 1]} : vector<16x64xf32> to vector<2x64xf32>
    %cst_162 = arith.constant dense<0.000000e+00> : vector<2x64xf32>
    %833 = tpu.matmul %803, %12, %cst_162 {dimension_numbers = #tpu.dot_dimension_numbers<[1], [0], [0], [1], [0, 0, 1, 1], [], []>} : vector<2x16xf32>, vector<16x64xf32>, vector<2x64xf32> -> vector<2x64xf32>
    %834 = arith.addf %832, %833 : vector<2x64xf32>
    %835 = vector.extract_strided_slice %834 {offsets = [0, 0], sizes = [2, 16], strides = [1, 1]} : vector<2x64xf32> to vector<2x16xf32>
    %836 = arith.negf %835 : vector<2x16xf32>
    %837 = math.exp %836 : vector<2x16xf32>
    %cst_163 = arith.constant 1.000000e+00 : f32
    %838 = vector.broadcast %cst_163 : f32 to vector<2x16xf32>
    %839 = arith.addf %838, %837 : vector<2x16xf32>
    %840 = arith.divf %838, %839 : vector<2x16xf32>
    %841 = vector.extract_strided_slice %834 {offsets = [0, 16], sizes = [2, 16], strides = [1, 1]} : vector<2x64xf32> to vector<2x16xf32>
    %842 = arith.negf %841 : vector<2x16xf32>
    %843 = math.exp %842 : vector<2x16xf32>
    %cst_164 = arith.constant 1.000000e+00 : f32
    %844 = vector.broadcast %cst_164 : f32 to vector<2x16xf32>
    %845 = arith.addf %844, %843 : vector<2x16xf32>
    %846 = arith.divf %844, %845 : vector<2x16xf32>
    %847 = vector.extract_strided_slice %834 {offsets = [0, 32], sizes = [2, 16], strides = [1, 1]} : vector<2x64xf32> to vector<2x16xf32>
    %848 = math.tanh %847 : vector<2x16xf32>
    %849 = vector.extract_strided_slice %834 {offsets = [0, 48], sizes = [2, 16], strides = [1, 1]} : vector<2x64xf32> to vector<2x16xf32>
    %850 = arith.negf %849 : vector<2x16xf32>
    %851 = math.exp %850 : vector<2x16xf32>
    %cst_165 = arith.constant 1.000000e+00 : f32
    %852 = vector.broadcast %cst_165 : f32 to vector<2x16xf32>
    %853 = arith.addf %852, %851 : vector<2x16xf32>
    %854 = arith.divf %852, %853 : vector<2x16xf32>
    %855 = arith.mulf %846, %801 : vector<2x16xf32>
    %856 = arith.mulf %840, %848 : vector<2x16xf32>
    %857 = arith.addf %855, %856 : vector<2x16xf32>
    %858 = math.tanh %857 : vector<2x16xf32>
    %859 = arith.mulf %854, %858 : vector<2x16xf32>
    %860 = vector.extract_strided_slice %494 {offsets = [2, 0], sizes = [2, 64], strides = [1, 1]} : vector<16x64xf32> to vector<2x64xf32>
    %cst_166 = arith.constant dense<0.000000e+00> : vector<2x64xf32>
    %861 = tpu.matmul %831, %15, %cst_166 {dimension_numbers = #tpu.dot_dimension_numbers<[1], [0], [0], [1], [0, 0, 1, 1], [], []>} : vector<2x16xf32>, vector<16x64xf32>, vector<2x64xf32> -> vector<2x64xf32>
    %862 = arith.addf %860, %861 : vector<2x64xf32>
    %863 = vector.extract_strided_slice %862 {offsets = [0, 0], sizes = [2, 16], strides = [1, 1]} : vector<2x64xf32> to vector<2x16xf32>
    %864 = arith.negf %863 : vector<2x16xf32>
    %865 = math.exp %864 : vector<2x16xf32>
    %cst_167 = arith.constant 1.000000e+00 : f32
    %866 = vector.broadcast %cst_167 : f32 to vector<2x16xf32>
    %867 = arith.addf %866, %865 : vector<2x16xf32>
    %868 = arith.divf %866, %867 : vector<2x16xf32>
    %869 = vector.extract_strided_slice %862 {offsets = [0, 16], sizes = [2, 16], strides = [1, 1]} : vector<2x64xf32> to vector<2x16xf32>
    %870 = arith.negf %869 : vector<2x16xf32>
    %871 = math.exp %870 : vector<2x16xf32>
    %cst_168 = arith.constant 1.000000e+00 : f32
    %872 = vector.broadcast %cst_168 : f32 to vector<2x16xf32>
    %873 = arith.addf %872, %871 : vector<2x16xf32>
    %874 = arith.divf %872, %873 : vector<2x16xf32>
    %875 = vector.extract_strided_slice %862 {offsets = [0, 32], sizes = [2, 16], strides = [1, 1]} : vector<2x64xf32> to vector<2x16xf32>
    %876 = math.tanh %875 : vector<2x16xf32>
    %877 = vector.extract_strided_slice %862 {offsets = [0, 48], sizes = [2, 16], strides = [1, 1]} : vector<2x64xf32> to vector<2x16xf32>
    %878 = arith.negf %877 : vector<2x16xf32>
    %879 = math.exp %878 : vector<2x16xf32>
    %cst_169 = arith.constant 1.000000e+00 : f32
    %880 = vector.broadcast %cst_169 : f32 to vector<2x16xf32>
    %881 = arith.addf %880, %879 : vector<2x16xf32>
    %882 = arith.divf %880, %881 : vector<2x16xf32>
    %883 = arith.mulf %874, %829 : vector<2x16xf32>
    %884 = arith.mulf %868, %876 : vector<2x16xf32>
    %885 = arith.addf %883, %884 : vector<2x16xf32>
    %886 = math.tanh %885 : vector<2x16xf32>
    %887 = arith.mulf %882, %886 : vector<2x16xf32>
    %888 = vector.extract_strided_slice %491 {offsets = [14, 0], sizes = [2, 64], strides = [1, 1]} : vector<16x64xf32> to vector<2x64xf32>
    %cst_170 = arith.constant dense<0.000000e+00> : vector<2x64xf32>
    %889 = tpu.matmul %859, %12, %cst_170 {dimension_numbers = #tpu.dot_dimension_numbers<[1], [0], [0], [1], [0, 0, 1, 1], [], []>} : vector<2x16xf32>, vector<16x64xf32>, vector<2x64xf32> -> vector<2x64xf32>
    %890 = arith.addf %888, %889 : vector<2x64xf32>
    %891 = vector.extract_strided_slice %890 {offsets = [0, 0], sizes = [2, 16], strides = [1, 1]} : vector<2x64xf32> to vector<2x16xf32>
    %892 = arith.negf %891 : vector<2x16xf32>
    %893 = math.exp %892 : vector<2x16xf32>
    %cst_171 = arith.constant 1.000000e+00 : f32
    %894 = vector.broadcast %cst_171 : f32 to vector<2x16xf32>
    %895 = arith.addf %894, %893 : vector<2x16xf32>
    %896 = arith.divf %894, %895 : vector<2x16xf32>
    %897 = vector.extract_strided_slice %890 {offsets = [0, 16], sizes = [2, 16], strides = [1, 1]} : vector<2x64xf32> to vector<2x16xf32>
    %898 = arith.negf %897 : vector<2x16xf32>
    %899 = math.exp %898 : vector<2x16xf32>
    %cst_172 = arith.constant 1.000000e+00 : f32
    %900 = vector.broadcast %cst_172 : f32 to vector<2x16xf32>
    %901 = arith.addf %900, %899 : vector<2x16xf32>
    %902 = arith.divf %900, %901 : vector<2x16xf32>
    %903 = vector.extract_strided_slice %890 {offsets = [0, 32], sizes = [2, 16], strides = [1, 1]} : vector<2x64xf32> to vector<2x16xf32>
    %904 = math.tanh %903 : vector<2x16xf32>
    %905 = vector.extract_strided_slice %890 {offsets = [0, 48], sizes = [2, 16], strides = [1, 1]} : vector<2x64xf32> to vector<2x16xf32>
    %906 = arith.negf %905 : vector<2x16xf32>
    %907 = math.exp %906 : vector<2x16xf32>
    %cst_173 = arith.constant 1.000000e+00 : f32
    %908 = vector.broadcast %cst_173 : f32 to vector<2x16xf32>
    %909 = arith.addf %908, %907 : vector<2x16xf32>
    %910 = arith.divf %908, %909 : vector<2x16xf32>
    %911 = arith.mulf %902, %857 : vector<2x16xf32>
    %912 = arith.mulf %896, %904 : vector<2x16xf32>
    %913 = arith.addf %911, %912 : vector<2x16xf32>
    %914 = math.tanh %913 : vector<2x16xf32>
    %915 = arith.mulf %910, %914 : vector<2x16xf32>
    %916 = vector.extract_strided_slice %494 {offsets = [0, 0], sizes = [2, 64], strides = [1, 1]} : vector<16x64xf32> to vector<2x64xf32>
    %cst_174 = arith.constant dense<0.000000e+00> : vector<2x64xf32>
    %917 = tpu.matmul %887, %15, %cst_174 {dimension_numbers = #tpu.dot_dimension_numbers<[1], [0], [0], [1], [0, 0, 1, 1], [], []>} : vector<2x16xf32>, vector<16x64xf32>, vector<2x64xf32> -> vector<2x64xf32>
    %918 = arith.addf %916, %917 : vector<2x64xf32>
    %919 = vector.extract_strided_slice %918 {offsets = [0, 0], sizes = [2, 16], strides = [1, 1]} : vector<2x64xf32> to vector<2x16xf32>
    %920 = arith.negf %919 : vector<2x16xf32>
    %921 = math.exp %920 : vector<2x16xf32>
    %cst_175 = arith.constant 1.000000e+00 : f32
    %922 = vector.broadcast %cst_175 : f32 to vector<2x16xf32>
    %923 = arith.addf %922, %921 : vector<2x16xf32>
    %924 = arith.divf %922, %923 : vector<2x16xf32>
    %925 = vector.extract_strided_slice %918 {offsets = [0, 16], sizes = [2, 16], strides = [1, 1]} : vector<2x64xf32> to vector<2x16xf32>
    %926 = arith.negf %925 : vector<2x16xf32>
    %927 = math.exp %926 : vector<2x16xf32>
    %cst_176 = arith.constant 1.000000e+00 : f32
    %928 = vector.broadcast %cst_176 : f32 to vector<2x16xf32>
    %929 = arith.addf %928, %927 : vector<2x16xf32>
    %930 = arith.divf %928, %929 : vector<2x16xf32>
    %931 = vector.extract_strided_slice %918 {offsets = [0, 32], sizes = [2, 16], strides = [1, 1]} : vector<2x64xf32> to vector<2x16xf32>
    %932 = math.tanh %931 : vector<2x16xf32>
    %933 = vector.extract_strided_slice %918 {offsets = [0, 48], sizes = [2, 16], strides = [1, 1]} : vector<2x64xf32> to vector<2x16xf32>
    %934 = arith.negf %933 : vector<2x16xf32>
    %935 = math.exp %934 : vector<2x16xf32>
    %cst_177 = arith.constant 1.000000e+00 : f32
    %936 = vector.broadcast %cst_177 : f32 to vector<2x16xf32>
    %937 = arith.addf %936, %935 : vector<2x16xf32>
    %938 = arith.divf %936, %937 : vector<2x16xf32>
    %939 = arith.mulf %930, %885 : vector<2x16xf32>
    %940 = arith.mulf %924, %932 : vector<2x16xf32>
    %941 = arith.addf %939, %940 : vector<2x16xf32>
    %942 = math.tanh %941 : vector<2x16xf32>
    %943 = arith.mulf %938, %942 : vector<2x16xf32>
    %944 = tpu.concatenate %523, %579, %635, %691, %747, %803, %859, %915 in 0 : vector<2x16xf32>, vector<2x16xf32>, vector<2x16xf32>, vector<2x16xf32>, vector<2x16xf32>, vector<2x16xf32>, vector<2x16xf32>, vector<2x16xf32> -> vector<16x16xf32>
    %945 = tpu.concatenate %943, %887, %831, %775, %719, %663, %607, %551 in 0 : vector<2x16xf32>, vector<2x16xf32>, vector<2x16xf32>, vector<2x16xf32>, vector<2x16xf32>, vector<2x16xf32>, vector<2x16xf32>, vector<2x16xf32> -> vector<16x16xf32>
    %946 = tpu.concatenate %944, %945 in 1 : vector<16x16xf32>, vector<16x16xf32> -> vector<16x32xf32>
    %cst_178 = arith.constant dense<0.000000e+00> : vector<16x16xf32>
    %947 = tpu.matmul %946, %17, %cst_178 {dimension_numbers = #tpu.dot_dimension_numbers<[1], [0], [0], [1], [0, 0, 1, 1], [], []>} : vector<16x32xf32>, vector<32x16xf32>, vector<16x16xf32> -> vector<16x16xf32>
    %948 = vector.broadcast %18 : vector<1x16xf32> to vector<16x16xf32>
    %949 = arith.addf %947, %948 : vector<16x16xf32>
    %cst_179 = arith.constant 0.000000e+00 : f32
    %950 = vector.broadcast %cst_179 : f32 to vector<16x16xf32>
    %951 = arith.maximumf %949, %950 : vector<16x16xf32>
    %cst_180 = arith.constant dense<0.000000e+00> : vector<16x1xf32>
    %952 = tpu.matmul %951, %19, %cst_180 {dimension_numbers = #tpu.dot_dimension_numbers<[1], [0], [0], [1], [0, 0, 1, 1], [], []>} : vector<16x16xf32>, vector<16x1xf32>, vector<16x1xf32> -> vector<16x1xf32>
    %953 = vector.broadcast %20 : vector<1x1xf32> to vector<16x1xf32>
    %954 = arith.addf %952, %953 : vector<16x1xf32>
    %c0_181 = arith.constant 0 : index
    %c0_182 = arith.constant 0 : index
    %955 = vector.load %arg21[%c0_181, %c0_182] : memref<16x1xf32, #tpu.memory_space<vmem>>, vector<16x1xf32>
    tpu.vector_store %arg21[%c0_181, %c0_182], %954 {strides = array<i32>} : memref<16x1xf32, #tpu.memory_space<vmem>>, vector<16x1xf32>,
    return
  }
}

</mosaic_0001>

<llo_original>
// kernel: _lambda_.1
$region0: #{_lambda_.1}
  #allocation0 [shape = 'u32[]', space=smem, size = 0x4, offset = 0x4, fixed_abs, tag = 'smem constant byte address 0x4 - core index']
  #allocation1 [shape = 'u32[72,128]{1,0:T(1,128)}', space=vmem, size = 0x9000, scoped, tag = 'internal scratch']
  #allocation2 [shape = 'f32[1,1]{1,0:T(1,128)S(1)}', space=vmem, size = 0x200, scoped, tag = 'scoped memory for _lambda_.1']
  %s0 = inlined_call_operand.vmem [shape: f32[16,4], index: 0, kind: input, shape index: {}]
  %s1 = inlined_call_operand.vmem [shape: f32[4,16], index: 1, kind: input, shape index: {}]
  %s2 = inlined_call_operand.vmem [shape: f32[1,16], index: 2, kind: input, shape index: {}]
  %s3 = inlined_call_operand.vmem [shape: f32[16,32], index: 3, kind: input, shape index: {}]
  %s4 = inlined_call_operand.hbm [shape: f32[1,32], index: 4, kind: input, shape index: {}]
  %s5 = inlined_call_operand.vmem [shape: f32[32,64], index: 5, kind: input, shape index: {}]
  %s6 = inlined_call_operand.hbm [shape: f32[16,64], index: 6, kind: input, shape index: {}]
  %s7 = inlined_call_operand.hbm [shape: f32[1,64], index: 7, kind: input, shape index: {}]
  %s8 = inlined_call_operand.vmem [shape: f32[32,64], index: 8, kind: input, shape index: {}]
  %s9 = inlined_call_operand.hbm [shape: f32[16,64], index: 9, kind: input, shape index: {}]
  %s10 = inlined_call_operand.hbm [shape: f32[1,64], index: 10, kind: input, shape index: {}]
  %s11 = inlined_call_operand.hbm [shape: f32[32,64], index: 11, kind: input, shape index: {}]
  %s12 = inlined_call_operand.hbm [shape: f32[16,64], index: 12, kind: input, shape index: {}]
  %s13 = inlined_call_operand.hbm [shape: f32[1,64], index: 13, kind: input, shape index: {}]
  %s14 = inlined_call_operand.hbm [shape: f32[32,64], index: 14, kind: input, shape index: {}]
  %s15 = inlined_call_operand.hbm [shape: f32[16,64], index: 15, kind: input, shape index: {}]
  %s16 = inlined_call_operand.hbm [shape: f32[1,64], index: 16, kind: input, shape index: {}]
  %s17 = inlined_call_operand.vmem [shape: f32[32,16], index: 17, kind: input, shape index: {}]
  %s18 = inlined_call_operand.hbm [shape: f32[1,16], index: 18, kind: input, shape index: {}]
  %s19 = inlined_call_operand.vmem [shape: f32[16,1], index: 19, kind: input, shape index: {}]
  %s20 = inlined_call_operand.<no memory space> [shape: f32[1,1], index: 20, kind: input, shape index: {}]
  %s21 = inlined_call_operand.vmem [shape: f32[16,1], index: 21, kind: output, shape index: {}]
  %s22 = sld [smem:[#allocation0]]
  $region142: #{_lambda_.1} parent=0
    _
  %s24 = ssub.s32 1, %s22
  %s25 = scalar_select 0, %s24, %s22
  %v26 = vstv %s20
  %27 = vst [vmem:[#allocation2] sm:$0x1] %v26
  $region1: #{_lambda_.1} parent=0
    #allocation3 [shape = 'u8[512]{0}', space=vmem, size = 0x400, scoped, tag = 'input window, operand 4, single buffered']
    #allocation4 [shape = 's32[1]{0}', space=sflag, size = 0x4, scoped, tag = 'scoped memory for _lambda_.1']
    #allocation5 [shape = 'u8[8192]{0}', space=vmem, size = 0x2000, scoped, tag = 'input window, operand 6, single buffered']
    #allocation6 [shape = 's32[1]{0}', space=sflag, size = 0x4, scoped, tag = 'scoped memory for _lambda_.1']
    #allocation7 [shape = 'u8[512]{0}', space=vmem, size = 0x400, scoped, tag = 'input window, operand 7, single buffered']
    #allocation8 [shape = 'u8[8192]{0}', space=vmem, size = 0x2000, scoped, tag = 'input window, operand 9, single buffered']
    #allocation9 [shape = 's32[1]{0}', space=sflag, size = 0x4, scoped, tag = 'scoped memory for _lambda_.1']
    #allocation10 [shape = 'u8[512]{0}', space=vmem, size = 0x400, scoped, tag = 'input window, operand 10, single buffered']
    #allocation11 [shape = 'u8[16384]{0}', space=vmem, size = 0x4000, scoped, tag = 'input window, operand 11, single buffered']
    #allocation12 [shape = 's32[1]{0}', space=sflag, size = 0x4, scoped, tag = 'scoped memory for _lambda_.1']
    #allocation13 [shape = 'u8[8192]{0}', space=vmem, size = 0x2000, scoped, tag = 'input window, operand 12, single buffered']
    #allocation14 [shape = 'u8[512]{0}', space=vmem, size = 0x400, scoped, tag = 'input window, operand 13, single buffered']
    #allocation15 [shape = 's32[1]{0}', space=sflag, size = 0x4, scoped, tag = 'scoped memory for _lambda_.1']
    #allocation16 [shape = 'u8[16384]{0}', space=vmem, size = 0x4000, scoped, tag = 'input window, operand 14, single buffered']
    #allocation17 [shape = 'u8[8192]{0}', space=vmem, size = 0x2000, scoped, tag = 'input window, operand 15, single buffered']
    #allocation18 [shape = 's32[1]{0}', space=sflag, size = 0x4, scoped, tag = 'scoped memory for _lambda_.1']
    #allocation19 [shape = 'u8[512]{0}', space=vmem, size = 0x400, scoped, tag = 'input window, operand 16, single buffered']
    #allocation20 [shape = 'u8[512]{0}', space=vmem, size = 0x400, scoped, tag = 'input window, operand 18, single buffered']
    #allocation21 [shape = 's32[1]{0}', space=sflag, size = 0x4, scoped, tag = 'scoped memory for _lambda_.1']
    %28 = vsyncpa [#allocation4], 0
    %29 = vsyncpa [#allocation6], 0
    %30 = vsyncpa [#allocation9], 0
    %31 = vsyncpa [#allocation12], 0
    %32 = vsyncpa [#allocation15], 0
    %33 = vsyncpa [#allocation18], 0
    %34 = vsyncpa [#allocation21], 0
    // Predicated region
    $region2: #{_lambda_.1} parent=1 // pred_check
      _
    $region3: #{_lambda_.1} parent=1 // pred_check_branch
      %36 = sbr.rel (0) target = $region5
    $region4: #{_lambda_.1} parent=1 // pred_region
      _
    $region5: #{_lambda_.1} parent=1 // pred_fallthru
      _
    // Predicated region
    $region6: #{_lambda_.1} parent=1 // pred_check
      _
    $region7: #{_lambda_.1} parent=1 // pred_check_branch
      %38 = sbr.rel (0) target = $region9
    $region8: #{_lambda_.1} parent=1 // pred_region
      _
    $region9: #{_lambda_.1} parent=1 // pred_fallthru
      _
    // Predicated region
    $region10: #{_lambda_.1} parent=1 // pred_check
      _
    $region11: #{_lambda_.1} parent=1 // pred_check_branch
      %40 = sbr.rel (0) target = $region13
    $region12: #{_lambda_.1} parent=1 // pred_region
      _
    $region13: #{_lambda_.1} parent=1 // pred_fallthru
      _
    // Predicated region
    $region14: #{_lambda_.1} parent=1 // pred_check
      _
    $region15: #{_lambda_.1} parent=1 // pred_check_branch
      %42 = sbr.rel (0) target = $region17
    $region16: #{_lambda_.1} parent=1 // pred_region
      _
    $region17: #{_lambda_.1} parent=1 // pred_fallthru
      _
    // Predicated region
    $region18: #{_lambda_.1} parent=1 // pred_check
      _
    $region19: #{_lambda_.1} parent=1 // pred_check_branch
      %44 = sbr.rel (0) target = $region21
    $region20: #{_lambda_.1} parent=1 // pred_region
      %46 = vsyncadd [#allocation4], 0
      %s48 = sshll.u32 %s4, 4
      %s49 = int_to_ptr.hbm [resolvable:$true] %s48
      %s50 = sshll.u32 [#allocation3], 4
      %s51 = int_to_ptr.vmem [resolvable:$true] %s50
      %53 = dma.hbm_to_vmem [thread:$0]  %s49, 16, %s51, [#allocation4]
    $region21: #{_lambda_.1} parent=1 // pred_fallthru
      _
    // Predicated region
    $region22: #{_lambda_.1} parent=1 // pred_check
      _
    $region23: #{_lambda_.1} parent=1 // pred_check_branch
      %55 = sbr.rel (0) target = $region25
    $region24: #{_lambda_.1} parent=1 // pred_region
      _
    $region25: #{_lambda_.1} parent=1 // pred_fallthru
      _
    // Predicated region
    $region26: #{_lambda_.1} parent=1 // pred_check
      _
    $region27: #{_lambda_.1} parent=1 // pred_check_branch
      %57 = sbr.rel (0) target = $region29
    $region28: #{_lambda_.1} parent=1 // pred_region
      %59 = vsyncadd [#allocation6], 0
      %s60 = sshll.u32 %s6, 4
      %s61 = int_to_ptr.hbm [resolvable:$true] %s60
      %s62 = sshll.u32 [#allocation5], 4
      %s63 = int_to_ptr.vmem [resolvable:$true] %s62
      %68 = dma.hbm_to_vmem [thread:$0]  %s61, 256, %s63, [#allocation6], 128, 128, 8
    $region29: #{_lambda_.1} parent=1 // pred_fallthru
      _
    // Predicated region
    $region30: #{_lambda_.1} parent=1 // pred_check
      _
    $region31: #{_lambda_.1} parent=1 // pred_check_branch
      %70 = sbr.rel (0) target = $region33
    $region32: #{_lambda_.1} parent=1 // pred_region
      %72 = vsyncadd [#allocation6], 0
      %s74 = sshll.u32 %s7, 4
      %s75 = int_to_ptr.hbm [resolvable:$true] %s74
      %s76 = sshll.u32 [#allocation7], 4
      %s77 = int_to_ptr.vmem [resolvable:$true] %s76
      %79 = dma.hbm_to_vmem [thread:$0]  %s75, 16, %s77, [#allocation6]
    $region33: #{_lambda_.1} parent=1 // pred_fallthru
      _
    // Predicated region
    $region34: #{_lambda_.1} parent=1 // pred_check
      _
    $region35: #{_lambda_.1} parent=1 // pred_check_branch
      %81 = sbr.rel (0) target = $region37
    $region36: #{_lambda_.1} parent=1 // pred_region
      _
    $region37: #{_lambda_.1} parent=1 // pred_fallthru
      _
    // Predicated region
    $region38: #{_lambda_.1} parent=1 // pred_check
      _
    $region39: #{_lambda_.1} parent=1 // pred_check_branch
      %83 = sbr.rel (0) target = $region41
    $region40: #{_lambda_.1} parent=1 // pred_region
      %85 = vsyncadd [#allocation9], 0
      %s86 = sshll.u32 %s9, 4
      %s87 = int_to_ptr.hbm [resolvable:$true] %s86
      %s88 = sshll.u32 [#allocation8], 4
      %s89 = int_to_ptr.vmem [resolvable:$true] %s88
      %94 = dma.hbm_to_vmem [thread:$0]  %s87, 256, %s89, [#allocation9], 128, 128, 8
    $region41: #{_lambda_.1} parent=1 // pred_fallthru
      _
    // Predicated region
    $region42: #{_lambda_.1} parent=1 // pred_check
      _
    $region43: #{_lambda_.1} parent=1 // pred_check_branch
      %96 = sbr.rel (0) target = $region45
    $region44: #{_lambda_.1} parent=1 // pred_region
      %98 = vsyncadd [#allocation9], 0
      %s100 = sshll.u32 %s10, 4
      %s101 = int_to_ptr.hbm [resolvable:$true] %s100
      %s102 = sshll.u32 [#allocation10], 4
      %s103 = int_to_ptr.vmem [resolvable:$true] %s102
      %105 = dma.hbm_to_vmem [thread:$0]  %s101, 16, %s103, [#allocation9]
    $region45: #{_lambda_.1} parent=1 // pred_fallthru
      _
    // Predicated region
    $region46: #{_lambda_.1} parent=1 // pred_check
      _
    $region47: #{_lambda_.1} parent=1 // pred_check_branch
      %107 = sbr.rel (0) target = $region49
    $region48: #{_lambda_.1} parent=1 // pred_region
      %109 = vsyncadd [#allocation12], 0
      %s110 = sshll.u32 %s11, 4
      %s111 = int_to_ptr.hbm [resolvable:$true] %s110
      %s112 = sshll.u32 [#allocation11], 4
      %s113 = int_to_ptr.vmem [resolvable:$true] %s112
      %118 = dma.hbm_to_vmem [thread:$0]  %s111, 512, %s113, [#allocation12], 128, 128, 8
    $region49: #{_lambda_.1} parent=1 // pred_fallthru
      _
    // Predicated region
    $region50: #{_lambda_.1} parent=1 // pred_check
      _
    $region51: #{_lambda_.1} parent=1 // pred_check_branch
      %120 = sbr.rel (0) target = $region53
    $region52: #{_lambda_.1} parent=1 // pred_region
      %122 = vsyncadd [#allocation12], 0
      %s123 = sshll.u32 %s12, 4
      %s124 = int_to_ptr.hbm [resolvable:$true] %s123
      %s125 = sshll.u32 [#allocation13], 4
      %s126 = int_to_ptr.vmem [resolvable:$true] %s125
      %131 = dma.hbm_to_vmem [thread:$0]  %s124, 256, %s126, [#allocation12], 128, 128, 8
    $region53: #{_lambda_.1} parent=1 // pred_fallthru
      _
    // Predicated region
    $region54: #{_lambda_.1} parent=1 // pred_check
      _
    $region55: #{_lambda_.1} parent=1 // pred_check_branch
      %133 = sbr.rel (0) target = $region57
    $region56: #{_lambda_.1} parent=1 // pred_region
      %135 = vsyncadd [#allocation15], 0
      %s137 = sshll.u32 %s13, 4
      %s138 = int_to_ptr.hbm [resolvable:$true] %s137
      %s139 = sshll.u32 [#allocation14], 4
      %s140 = int_to_ptr.vmem [resolvable:$true] %s139
      %142 = dma.hbm_to_vmem [thread:$0]  %s138, 16, %s140, [#allocation15]
    $region57: #{_lambda_.1} parent=1 // pred_fallthru
      _
    // Predicated region
    $region58: #{_lambda_.1} parent=1 // pred_check
      _
    $region59: #{_lambda_.1} parent=1 // pred_check_branch
      %144 = sbr.rel (0) target = $region61
    $region60: #{_lambda_.1} parent=1 // pred_region
      %146 = vsyncadd [#allocation15], 0
      %s147 = sshll.u32 %s14, 4
      %s148 = int_to_ptr.hbm [resolvable:$true] %s147
      %s149 = sshll.u32 [#allocation16], 4
      %s150 = int_to_ptr.vmem [resolvable:$true] %s149
      %155 = dma.hbm_to_vmem [thread:$0]  %s148, 512, %s150, [#allocation15], 128, 128, 8
    $region61: #{_lambda_.1} parent=1 // pred_fallthru
      _
    // Predicated region
    $region62: #{_lambda_.1} parent=1 // pred_check
      _
    $region63: #{_lambda_.1} parent=1 // pred_check_branch
      %157 = sbr.rel (0) target = $region65
    $region64: #{_lambda_.1} parent=1 // pred_region
      %159 = vsyncadd [#allocation18], 0
      %s160 = sshll.u32 %s15, 4
      %s161 = int_to_ptr.hbm [resolvable:$true] %s160
      %s162 = sshll.u32 [#allocation17], 4
      %s163 = int_to_ptr.vmem [resolvable:$true] %s162
      %168 = dma.hbm_to_vmem [thread:$0]  %s161, 256, %s163, [#allocation18], 128, 128, 8
    $region65: #{_lambda_.1} parent=1 // pred_fallthru
      _
    // Predicated region
    $region66: #{_lambda_.1} parent=1 // pred_check
      _
    $region67: #{_lambda_.1} parent=1 // pred_check_branch
      %170 = sbr.rel (0) target = $region69
    $region68: #{_lambda_.1} parent=1 // pred_region
      %172 = vsyncadd [#allocation18], 0
      %s174 = sshll.u32 %s16, 4
      %s175 = int_to_ptr.hbm [resolvable:$true] %s174
      %s176 = sshll.u32 [#allocation19], 4
      %s177 = int_to_ptr.vmem [resolvable:$true] %s176
      %179 = dma.hbm_to_vmem [thread:$0]  %s175, 16, %s177, [#allocation18]
    $region69: #{_lambda_.1} parent=1 // pred_fallthru
      _
    // Predicated region
    $region70: #{_lambda_.1} parent=1 // pred_check
      _
    $region71: #{_lambda_.1} parent=1 // pred_check_branch
      %181 = sbr.rel (0) target = $region73
    $region72: #{_lambda_.1} parent=1 // pred_region
      _
    $region73: #{_lambda_.1} parent=1 // pred_fallthru
      _
    // Predicated region
    $region74: #{_lambda_.1} parent=1 // pred_check
      _
    $region75: #{_lambda_.1} parent=1 // pred_check_branch
      %183 = sbr.rel (0) target = $region77
    $region76: #{_lambda_.1} parent=1 // pred_region
      %185 = vsyncadd [#allocation21], 0
      %s187 = sshll.u32 %s18, 4
      %s188 = int_to_ptr.hbm [resolvable:$true] %s187
      %s189 = sshll.u32 [#allocation20], 4
      %s190 = int_to_ptr.vmem [resolvable:$true] %s189
      %192 = dma.hbm_to_vmem [thread:$0]  %s188, 16, %s190, [#allocation21]
    $region77: #{_lambda_.1} parent=1 // pred_fallthru
      _
    // Predicated region
    $region78: #{_lambda_.1} parent=1 // pred_check
      _
    $region79: #{_lambda_.1} parent=1 // pred_check_branch
      %194 = sbr.rel (0) target = $region81
    $region80: #{_lambda_.1} parent=1 // pred_region
      _
    $region81: #{_lambda_.1} parent=1 // pred_fallthru
      _
    // Predicated region
    $region82: #{_lambda_.1} parent=1 // pred_check
      _
    $region83: #{_lambda_.1} parent=1 // pred_check_branch
      %196 = sbr.rel (0) target = $region85
    $region84: #{_lambda_.1} parent=1 // pred_region
      _
    $region85: #{_lambda_.1} parent=1 // pred_fallthru
      _
    // Predicated region
    $region86: #{_lambda_.1} parent=1 // pred_check
      _
    $region87: #{_lambda_.1} parent=1 // pred_check_branch
      %198 = sbr.rel (0) target = $region89
    $region88: #{_lambda_.1} parent=1 // pred_region
      %200 = dma.done [#allocation4], 16
    $region89: #{_lambda_.1} parent=1 // pred_fallthru
      _
    // Predicated region
    $region90: #{_lambda_.1} parent=1 // pred_check
      _
    $region91: #{_lambda_.1} parent=1 // pred_check_branch
      %202 = sbr.rel (0) target = $region93
    $region92: #{_lambda_.1} parent=1 // pred_region
      %204 = dma.done [#allocation6], 256
    $region93: #{_lambda_.1} parent=1 // pred_fallthru
      _
    // Predicated region
    $region94: #{_lambda_.1} parent=1 // pred_check
      _
    $region95: #{_lambda_.1} parent=1 // pred_check_branch
      %206 = sbr.rel (0) target = $region97
    $region96: #{_lambda_.1} parent=1 // pred_region
      %208 = dma.done [#allocation6], 16
    $region97: #{_lambda_.1} parent=1 // pred_fallthru
      _
    // Predicated region
    $region98: #{_lambda_.1} parent=1 // pred_check
      _
    $region99: #{_lambda_.1} parent=1 // pred_check_branch
      %210 = sbr.rel (0) target = $region101
    $region100: #{_lambda_.1} parent=1 // pred_region
      %212 = dma.done [#allocation9], 256
    $region101: #{_lambda_.1} parent=1 // pred_fallthru
      _
    // Predicated region
    $region102: #{_lambda_.1} parent=1 // pred_check
      _
    $region103: #{_lambda_.1} parent=1 // pred_check_branch
      %214 = sbr.rel (0) target = $region105
    $region104: #{_lambda_.1} parent=1 // pred_region
      %216 = dma.done [#allocation9], 16
    $region105: #{_lambda_.1} parent=1 // pred_fallthru
      _
    // Predicated region
    $region106: #{_lambda_.1} parent=1 // pred_check
      _
    $region107: #{_lambda_.1} parent=1 // pred_check_branch
      %218 = sbr.rel (0) target = $region109
    $region108: #{_lambda_.1} parent=1 // pred_region
      %220 = dma.done [#allocation12], 512
    $region109: #{_lambda_.1} parent=1 // pred_fallthru
      _
    // Predicated region
    $region110: #{_lambda_.1} parent=1 // pred_check
      _
    $region111: #{_lambda_.1} parent=1 // pred_check_branch
      %222 = sbr.rel (0) target = $region113
    $region112: #{_lambda_.1} parent=1 // pred_region
      %224 = dma.done [#allocation12], 256
    $region113: #{_lambda_.1} parent=1 // pred_fallthru
      _
    // Predicated region
    $region114: #{_lambda_.1} parent=1 // pred_check
      _
    $region115: #{_lambda_.1} parent=1 // pred_check_branch
      %226 = sbr.rel (0) target = $region117
    $region116: #{_lambda_.1} parent=1 // pred_region
      %228 = dma.done [#allocation15], 16
    $region117: #{_lambda_.1} parent=1 // pred_fallthru
      _
    // Predicated region
    $region118: #{_lambda_.1} parent=1 // pred_check
      _
    $region119: #{_lambda_.1} parent=1 // pred_check_branch
      %230 = sbr.rel (0) target = $region121
    $region120: #{_lambda_.1} parent=1 // pred_region
      %232 = dma.done [#allocation15], 512
    $region121: #{_lambda_.1} parent=1 // pred_fallthru
      _
    // Predicated region
    $region122: #{_lambda_.1} parent=1 // pred_check
      _
    $region123: #{_lambda_.1} parent=1 // pred_check_branch
      %234 = sbr.rel (0) target = $region125
    $region124: #{_lambda_.1} parent=1 // pred_region
      %236 = dma.done [#allocation18], 256
    $region125: #{_lambda_.1} parent=1 // pred_fallthru
      _
    // Predicated region
    $region126: #{_lambda_.1} parent=1 // pred_check
      _
    $region127: #{_lambda_.1} parent=1 // pred_check_branch
      %238 = sbr.rel (0) target = $region129
    $region128: #{_lambda_.1} parent=1 // pred_region
      %240 = dma.done [#allocation18], 16
    $region129: #{_lambda_.1} parent=1 // pred_fallthru
      _
    // Predicated region
    $region130: #{_lambda_.1} parent=1 // pred_check
      _
    $region131: #{_lambda_.1} parent=1 // pred_check_branch
      %242 = sbr.rel (0) target = $region133
    $region132: #{_lambda_.1} parent=1 // pred_region
      %244 = dma.done [#allocation21], 16
    $region133: #{_lambda_.1} parent=1 // pred_fallthru
      _
    %v245 = vld [vmem:[%s0] sm:$0xff]
    %v246 = vld [vmem:[%s0 + $0x8] sm:$0xff]
    %v247 = vld [vmem:[%s1] sm:$0xf]
    %v248 = vld [vmem:[%s2] sm:$0x1]
    %v249 = vld [vmem:[%s3] sm:$0xff]
    %v250 = vld [vmem:[%s3 + $0x8] sm:$0xff]
    %v251 = vld [vmem:[#allocation3] sm:$0x1]
    %v252 = vld [vmem:[%s5] sm:$0xff]
    %v253 = vld [vmem:[%s5 + $0x8] sm:$0xff]
    %v254 = vld [vmem:[%s5 + $0x10] sm:$0xff]
    %v255 = vld [vmem:[%s5 + $0x18] sm:$0xff]
    %v256 = vld [vmem:[#allocation5] sm:$0xff]
    %v257 = vld [vmem:[#allocation5 + $0x8] sm:$0xff]
    %v258 = vld [vmem:[#allocation7] sm:$0x1]
    %v259 = vld [vmem:[%s8] sm:$0xff]
    %v260 = vld [vmem:[%s8 + $0x8] sm:$0xff]
    %v261 = vld [vmem:[%s8 + $0x10] sm:$0xff]
    %v262 = vld [vmem:[%s8 + $0x18] sm:$0xff]
    %v263 = vld [vmem:[#allocation8] sm:$0xff]
    %v264 = vld [vmem:[#allocation8 + $0x8] sm:$0xff]
    %v265 = vld [vmem:[#allocation10] sm:$0x1]
    %v266 = vld [vmem:[#allocation11] sm:$0xff]
    %v267 = vld [vmem:[#allocation11 + $0x8] sm:$0xff]
    %v268 = vld [vmem:[#allocation11 + $0x10] sm:$0xff]
    %v269 = vld [vmem:[#allocation11 + $0x18] sm:$0xff]
    %v270 = vld [vmem:[#allocation13] sm:$0xff]
    %v271 = vld [vmem:[#allocation13 + $0x8] sm:$0xff]
    %v272 = vld [vmem:[#allocation14] sm:$0x1]
    %v273 = vld [vmem:[#allocation16] sm:$0xff]
    %v274 = vld [vmem:[#allocation16 + $0x8] sm:$0xff]
    %v275 = vld [vmem:[#allocation16 + $0x10] sm:$0xff]
    %v276 = vld [vmem:[#allocation16 + $0x18] sm:$0xff]
    %v277 = vld [vmem:[#allocation17] sm:$0xff]
    %v278 = vld [vmem:[#allocation17 + $0x8] sm:$0xff]
    %v279 = vld [vmem:[#allocation19] sm:$0x1]
    %v280 = vld [vmem:[%s17] sm:$0xff]
    %v281 = vld [vmem:[%s17 + $0x8] sm:$0xff]
    %v282 = vld [vmem:[%s17 + $0x10] sm:$0xff]
    %v283 = vld [vmem:[%s17 + $0x18] sm:$0xff]
    %v284 = vld [vmem:[#allocation20] sm:$0x1]
    %v285 = vld [vmem:[%s19] sm:$0xff]
    %v286 = vld [vmem:[%s19 + $0x8] sm:$0xff]
    %v287 = vld [vmem:[#allocation2] sm:$0x1]
    %v289 = vperm.slane %v248, 0
    %vm291 = vcmask 31744
    %v293 = vsel %vm291, %v245, 0
    %v296 = vsel %vm291, %v246, 0
    %vm298 = vcmask 1043456
    %v300 = vsel %vm298, %v247, 0
    %302 = vmatpush.msra.mxu0 0.0
    %303 = vmatpush.msra.mxu0 0.0
    %304 = vmatpush.msra.mxu0 0.0
    %305 = vmatpush.msra.mxu0 0.0
    %306 = vmatpush.msra.mxu0 0.0
    %307 = vmatpush.msra.mxu0 0.0
    %308 = vmatpush.msra.mxu0 0.0
    %309 = vmatpush.msra.mxu0 0.0
    %310 = vmatpush.msra.mxu0 0.0
    %311 = vmatpush.msra.mxu0 0.0
    %312 = vmatpush.msra.mxu0 0.0
    %313 = vmatpush.msra.mxu0 0.0
    %314 = vmatpush.msra.mxu0 0.0
    %315 = vmatpush.msra.mxu0 0.0
    %316 = vmatpush.msra.mxu0 0.0
    %317 = vmatpush.msra.mxu0 %v300
    %318 = vmatmul.f32.gmra.mxu0 %v293
    %v319 = vpop.f32.mrf.mxu0
    %v320 = vadd.f32 %v289, %v319
    %321 = vmatmul.f32.gmra.mxu0 %v296
    %v322 = vpop.f32.mrf.mxu0
    %v323 = vadd.f32 %v289, %v322
    %324 = vdwg.mxu0
    %v325 = vmax.f32 %v320, 0.0
    %v326 = vmax.f32 %v323, 0.0
    %v328 = vperm.slane %v251, 0
    %vm330 = vcmask 130048
    %v332 = vsel %vm330, %v325, 0
    %v335 = vsel %vm330, %v326, 0
    %337 = vmatpush.msra.mxu0 0.0
    %338 = vmatpush.msra.mxu0 0.0
    %339 = vmatpush.msra.mxu0 0.0
    %340 = vmatpush.msra.mxu0 0.0
    %341 = vmatpush.msra.mxu0 0.0
    %342 = vmatpush.msra.mxu0 0.0
    %343 = vmatpush.msra.mxu0 0.0
    %344 = vmatpush.msra.mxu0 0.0
    %345 = vmatpush.msra.mxu0 0.0
    %346 = vmatpush.msra.mxu0 0.0
    %347 = vmatpush.msra.mxu0 0.0
    %348 = vmatpush.msra.mxu0 0.0
    %349 = vmatpush.msra.mxu0 0.0
    %350 = vmatpush.msra.mxu0 0.0
    %351 = vmatpush.msra.mxu0 %v250
    %352 = vmatpush.msra.mxu0 %v249
    %353 = vmatmul.f32.gmra.mxu0 %v332
    %v354 = vpop.f32.mrf.mxu0
    %v355 = vadd.f32 %v328, %v354
    %356 = vmatmul.f32.gmra.mxu0 %v335
    %v357 = vpop.f32.mrf.mxu0
    %v358 = vadd.f32 %v328, %v357
    %359 = vdwg.mxu0
    %v360 = vmax.f32 %v355, 0.0
    %v361 = vmax.f32 %v358, 0.0
    %v363 = vperm.slane %v258, 0
    %vm365 = vcmask 261120
    %v367 = vsel %vm365, %v360, 0
    %v370 = vsel %vm365, %v361, 0
    %372 = vmatpush.msra.mxu0 0.0
    %373 = vmatpush.msra.mxu0 0.0
    %374 = vmatpush.msra.mxu0 0.0
    %375 = vmatpush.msra.mxu0 0.0
    %376 = vmatpush.msra.mxu0 0.0
    %377 = vmatpush.msra.mxu0 0.0
    %378 = vmatpush.msra.mxu0 0.0
    %379 = vmatpush.msra.mxu0 0.0
    %380 = vmatpush.msra.mxu0 0.0
    %381 = vmatpush.msra.mxu0 0.0
    %382 = vmatpush.msra.mxu0 0.0
    %383 = vmatpush.msra.mxu0 0.0
    %384 = vmatpush.msra.mxu0 %v255
    %385 = vmatpush.msra.mxu0 %v254
    %386 = vmatpush.msra.mxu0 %v253
    %387 = vmatpush.msra.mxu0 %v252
    %388 = vmatmul.f32.gmra.mxu0 %v367
    %v389 = vpop.f32.mrf.mxu0
    %v390 = vadd.f32 %v363, %v389
    %391 = vmatmul.f32.gmra.mxu0 %v370
    %v392 = vpop.f32.mrf.mxu0
    %v393 = vadd.f32 %v363, %v392
    %394 = vdwg.mxu0
    %v396 = vperm.slane %v265, 0
    %398 = vmatpush.msra.mxu0 0.0
    %399 = vmatpush.msra.mxu0 0.0
    %400 = vmatpush.msra.mxu0 0.0
    %401 = vmatpush.msra.mxu0 0.0
    %402 = vmatpush.msra.mxu0 0.0
    %403 = vmatpush.msra.mxu0 0.0
    %404 = vmatpush.msra.mxu0 0.0
    %405 = vmatpush.msra.mxu0 0.0
    %406 = vmatpush.msra.mxu0 0.0
    %407 = vmatpush.msra.mxu0 0.0
    %408 = vmatpush.msra.mxu0 0.0
    %409 = vmatpush.msra.mxu0 0.0
    %410 = vmatpush.msra.mxu0 %v262
    %411 = vmatpush.msra.mxu0 %v261
    %412 = vmatpush.msra.mxu0 %v260
    %413 = vmatpush.msra.mxu0 %v259
    %414 = vmatmul.f32.gmra.mxu0 %v367
    %v415 = vpop.f32.mrf.mxu0
    %v416 = vadd.f32 %v396, %v415
    %417 = vmatmul.f32.gmra.mxu0 %v370
    %v418 = vpop.f32.mrf.mxu0
    %v419 = vadd.f32 %v396, %v418
    %420 = vdwg.mxu0
    %v422 = vsel %vm330, 0.0, 0
    %424 = vmatpush.msra.mxu0 0.0
    %425 = vmatpush.msra.mxu0 0.0
    %426 = vmatpush.msra.mxu0 0.0
    %427 = vmatpush.msra.mxu0 0.0
    %428 = vmatpush.msra.mxu0 0.0
    %429 = vmatpush.msra.mxu0 0.0
    %430 = vmatpush.msra.mxu0 0.0
    %431 = vmatpush.msra.mxu0 0.0
    %432 = vmatpush.msra.mxu0 0.0
    %433 = vmatpush.msra.mxu0 0.0
    %434 = vmatpush.msra.mxu0 0.0
    %435 = vmatpush.msra.mxu0 0.0
    %436 = vmatpush.msra.mxu0 0.0
    %437 = vmatpush.msra.mxu0 0.0
    %438 = vmatpush.msra.mxu0 %v257
    %439 = vmatpush.msra.mxu0 %v256
    %440 = vmatmul.f32.gmra.mxu0 %v422
    %v441 = vpop.f32.mrf.mxu0
    %v442 = vadd.f32 0.0, %v441
    %443 = vdwg.mxu0
    %v444 = vadd.f32 %v390, %v442
    %v445 = vxor.u32 %v444, 2147483648
    %v446 = vmul.f32 %v445, 1.442695
    %v447 = vpow.pop %v446
    %v448 = vadd.f32 %v447, 1.0
    %v449 = vrcp.pop %v448
    %v450 = vmul.f32 %v448, %v449
    %v451 = vsub.f32 1.0, %v450
    %v452 = vmul.f32 %v449, %v451
    %v453 = vadd.f32 %v449, %v452
    %vm454 = vweird.f32 %v448
    %vm455 = vweird.f32 %v449
    %vm456 = vmor %vm454, %vm455
    %v457 = vsel %vm456, %v449, %v453
    %v458 = vand.u32 2147483647, %v448
    %vm459 = vcmp.eq.f32.partialorder %v458, 8.507059e+37
    %v460 = vand.u32 %v448, 2147483648
    %v461 = vor.u32 1.1754944e-38, %v460
    %v462 = vsel %vm459, %v461, %v457
    %v463 = vmul.f32 1.0, %v462
    %v464 = vtanh.pop %v444
    %v465 = vmul.f32 %v463, 0.0
    %467 = vrot.lane.b32.xlu0 %v464, 96
    %v468 = vpop.permute.xlu0 %467
    %v470 = vmul.f32 %v463, %v468
    %472 = vrot.lane.b32.xlu0 %v470, 16
    %v473 = vpop.permute.xlu0 %472
    %v475 = vadd.f32 %v465, %v473
    %v476 = vtanh.pop %v475
    %478 = vrot.lane.b32.xlu0 %v476, 32
    %v479 = vpop.permute.xlu0 %478
    %v481 = vmul.f32 %v463, %v479
    %482 = vmatpush.msra.mxu0 0.0
    %483 = vmatpush.msra.mxu0 0.0
    %484 = vmatpush.msra.mxu0 0.0
    %485 = vmatpush.msra.mxu0 0.0
    %486 = vmatpush.msra.mxu0 0.0
    %487 = vmatpush.msra.mxu0 0.0
    %488 = vmatpush.msra.mxu0 0.0
    %489 = vmatpush.msra.mxu0 0.0
    %490 = vmatpush.msra.mxu0 0.0
    %491 = vmatpush.msra.mxu0 0.0
    %492 = vmatpush.msra.mxu0 0.0
    %493 = vmatpush.msra.mxu0 0.0
    %494 = vmatpush.msra.mxu0 0.0
    %495 = vmatpush.msra.mxu0 0.0
    %496 = vmatpush.msra.mxu0 %v264
    %497 = vmatpush.msra.mxu0 %v263
    %498 = vmatmul.f32.gmra.mxu0 %v422
    %v499 = vpop.f32.mrf.mxu0
    %v500 = vadd.f32 0.0, %v499
    %501 = vdwg.mxu0
    %v503 = vrot.slane %v500, 2
    %v505 = vadd.f32 %v419, %v503
    %v506 = vxor.u32 %v505, 2147483648
    %v507 = vmul.f32 %v506, 1.442695
    %v508 = vpow.pop %v507
    %v509 = vadd.f32 %v508, 1.0
    %v510 = vrcp.pop %v509
    %v511 = vmul.f32 %v509, %v510
    %v512 = vsub.f32 1.0, %v511
    %v513 = vmul.f32 %v510, %v512
    %v514 = vadd.f32 %v510, %v513
    %vm515 = vweird.f32 %v509
    %vm516 = vweird.f32 %v510
    %vm517 = vmor %vm515, %vm516
    %v518 = vsel %vm517, %v510, %v514
    %v519 = vand.u32 2147483647, %v509
    %vm520 = vcmp.eq.f32.partialorder %v519, 8.507059e+37
    %v521 = vand.u32 %v509, 2147483648
    %v522 = vor.u32 1.1754944e-38, %v521
    %v523 = vsel %vm520, %v522, %v518
    %v524 = vmul.f32 1.0, %v523
    %v525 = vtanh.pop %v505
    %v526 = vmul.f32 %v524, 0.0
    %528 = vrot.lane.b32.xlu0 %v525, 96
    %v529 = vpop.permute.xlu0 %528
    %v531 = vmul.f32 %v524, %v529
    %533 = vrot.lane.b32.xlu0 %v531, 16
    %v534 = vpop.permute.xlu0 %533
    %v536 = vadd.f32 %v526, %v534
    %v537 = vtanh.pop %v536
    %539 = vrot.lane.b32.xlu0 %v537, 32
    %v540 = vpop.permute.xlu0 %539
    %v542 = vmul.f32 %v524, %v540
    %544 = vrot.lane.b32.xlu0 %v481, 80
    %v545 = vpop.permute.xlu0 %544
    %v546 = vsel %vm330, %v545, 0
    %548 = vmatpush.msra.mxu0 0.0
    %549 = vmatpush.msra.mxu0 0.0
    %550 = vmatpush.msra.mxu0 0.0
    %551 = vmatpush.msra.mxu0 0.0
    %552 = vmatpush.msra.mxu0 0.0
    %553 = vmatpush.msra.mxu0 0.0
    %554 = vmatpush.msra.mxu0 0.0
    %555 = vmatpush.msra.mxu0 0.0
    %556 = vmatpush.msra.mxu0 0.0
    %557 = vmatpush.msra.mxu0 0.0
    %558 = vmatpush.msra.mxu0 0.0
    %559 = vmatpush.msra.mxu0 0.0
    %560 = vmatpush.msra.mxu0 0.0
    %561 = vmatpush.msra.mxu0 0.0
    %562 = vmatpush.msra.mxu0 %v257
    %563 = vmatpush.msra.mxu0 %v256
    %564 = vmatmul.f32.gmra.mxu0 %v546
    %v565 = vpop.f32.mrf.mxu0
    %v566 = vadd.f32 0.0, %v565
    %567 = vdwg.mxu0
    %v569 = vrot.slane %v566, 6
    %v571 = vadd.f32 %v390, %v569
    %v572 = vxor.u32 %v571, 2147483648
    %v573 = vmul.f32 %v572, 1.442695
    %v574 = vpow.pop %v573
    %v575 = vadd.f32 %v574, 1.0
    %v576 = vrcp.pop %v575
    %v577 = vmul.f32 %v575, %v576
    %v578 = vsub.f32 1.0, %v577
    %v579 = vmul.f32 %v576, %v578
    %v580 = vadd.f32 %v576, %v579
    %vm581 = vweird.f32 %v575
    %vm582 = vweird.f32 %v576
    %vm583 = vmor %vm581, %vm582
    %v584 = vsel %vm583, %v576, %v580
    %v585 = vand.u32 2147483647, %v575
    %vm586 = vcmp.eq.f32.partialorder %v585, 8.507059e+37
    %v587 = vand.u32 %v575, 2147483648
    %v588 = vor.u32 1.1754944e-38, %v587
    %v589 = vsel %vm586, %v588, %v584
    %v590 = vmul.f32 1.0, %v589
    %v591 = vtanh.pop %v571
    %v593 = vrot.slane %v475, 6
    %v595 = vmul.f32 %v590, %v593
    %597 = vrot.lane.b32.xlu0 %v591, 96
    %v598 = vpop.permute.xlu0 %597
    %v600 = vmul.f32 %v590, %v598
    %602 = vrot.lane.b32.xlu0 %v600, 16
    %v603 = vpop.permute.xlu0 %602
    %v605 = vadd.f32 %v595, %v603
    %v606 = vtanh.pop %v605
    %608 = vrot.lane.b32.xlu0 %v606, 32
    %v609 = vpop.permute.xlu0 %608
    %v611 = vmul.f32 %v590, %v609
    %v613 = vrot.slane %v542, 6
    %614 = vrot.lane.b32.xlu0 %v613, 80
    %v615 = vpop.permute.xlu0 %614
    %v616 = vsel %vm330, %v615, 0
    %618 = vmatpush.msra.mxu0 0.0
    %619 = vmatpush.msra.mxu0 0.0
    %620 = vmatpush.msra.mxu0 0.0
    %621 = vmatpush.msra.mxu0 0.0
    %622 = vmatpush.msra.mxu0 0.0
    %623 = vmatpush.msra.mxu0 0.0
    %624 = vmatpush.msra.mxu0 0.0
    %625 = vmatpush.msra.mxu0 0.0
    %626 = vmatpush.msra.mxu0 0.0
    %627 = vmatpush.msra.mxu0 0.0
    %628 = vmatpush.msra.mxu0 0.0
    %629 = vmatpush.msra.mxu0 0.0
    %630 = vmatpush.msra.mxu0 0.0
    %631 = vmatpush.msra.mxu0 0.0
    %632 = vmatpush.msra.mxu0 %v264
    %633 = vmatpush.msra.mxu0 %v263
    %634 = vmatmul.f32.gmra.mxu0 %v616
    %v635 = vpop.f32.mrf.mxu0
    %v636 = vadd.f32 0.0, %v635
    %637 = vdwg.mxu0
    %v639 = vrot.slane %v636, 4
    %v641 = vadd.f32 %v419, %v639
    %v642 = vxor.u32 %v641, 2147483648
    %v643 = vmul.f32 %v642, 1.442695
    %v644 = vpow.pop %v643
    %v645 = vadd.f32 %v644, 1.0
    %v646 = vrcp.pop %v645
    %v647 = vmul.f32 %v645, %v646
    %v648 = vsub.f32 1.0, %v647
    %v649 = vmul.f32 %v646, %v648
    %v650 = vadd.f32 %v646, %v649
    %vm651 = vweird.f32 %v645
    %vm652 = vweird.f32 %v646
    %vm653 = vmor %vm651, %vm652
    %v654 = vsel %vm653, %v646, %v650
    %v655 = vand.u32 2147483647, %v645
    %vm656 = vcmp.eq.f32.partialorder %v655, 8.507059e+37
    %v657 = vand.u32 %v645, 2147483648
    %v658 = vor.u32 1.1754944e-38, %v657
    %v659 = vsel %vm656, %v658, %v654
    %v660 = vmul.f32 1.0, %v659
    %v661 = vtanh.pop %v641
    %v663 = vrot.slane %v536, 2
    %v665 = vmul.f32 %v660, %v663
    %667 = vrot.lane.b32.xlu0 %v661, 96
    %v668 = vpop.permute.xlu0 %667
    %v670 = vmul.f32 %v660, %v668
    %672 = vrot.lane.b32.xlu0 %v670, 16
    %v673 = vpop.permute.xlu0 %672
    %v675 = vadd.f32 %v665, %v673
    %v676 = vtanh.pop %v675
    %678 = vrot.lane.b32.xlu0 %v676, 32
    %v679 = vpop.permute.xlu0 %678
    %v681 = vmul.f32 %v660, %v679
    %v683 = vrot.slane %v611, 2
    %684 = vrot.lane.b32.xlu0 %v683, 80
    %v685 = vpop.permute.xlu0 %684
    %v686 = vsel %vm330, %v685, 0
    %688 = vmatpush.msra.mxu0 0.0
    %689 = vmatpush.msra.mxu0 0.0
    %690 = vmatpush.msra.mxu0 0.0
    %691 = vmatpush.msra.mxu0 0.0
    %692 = vmatpush.msra.mxu0 0.0
    %693 = vmatpush.msra.mxu0 0.0
    %694 = vmatpush.msra.mxu0 0.0
    %695 = vmatpush.msra.mxu0 0.0
    %696 = vmatpush.msra.mxu0 0.0
    %697 = vmatpush.msra.mxu0 0.0
    %698 = vmatpush.msra.mxu0 0.0
    %699 = vmatpush.msra.mxu0 0.0
    %700 = vmatpush.msra.mxu0 0.0
    %701 = vmatpush.msra.mxu0 0.0
    %702 = vmatpush.msra.mxu0 %v257
    %703 = vmatpush.msra.mxu0 %v256
    %704 = vmatmul.f32.gmra.mxu0 %v686
    %v705 = vpop.f32.mrf.mxu0
    %v706 = vadd.f32 0.0, %v705
    %707 = vdwg.mxu0
    %v709 = vrot.slane %v706, 4
    %v711 = vadd.f32 %v390, %v709
    %v712 = vxor.u32 %v711, 2147483648
    %v713 = vmul.f32 %v712, 1.442695
    %v714 = vpow.pop %v713
    %v715 = vadd.f32 %v714, 1.0
    %v716 = vrcp.pop %v715
    %v717 = vmul.f32 %v715, %v716
    %v718 = vsub.f32 1.0, %v717
    %v719 = vmul.f32 %v716, %v718
    %v720 = vadd.f32 %v716, %v719
    %vm721 = vweird.f32 %v715
    %vm722 = vweird.f32 %v716
    %vm723 = vmor %vm721, %vm722
    %v724 = vsel %vm723, %v716, %v720
    %v725 = vand.u32 2147483647, %v715
    %vm726 = vcmp.eq.f32.partialorder %v725, 8.507059e+37
    %v727 = vand.u32 %v715, 2147483648
    %v728 = vor.u32 1.1754944e-38, %v727
    %v729 = vsel %vm726, %v728, %v724
    %v730 = vmul.f32 1.0, %v729
    %v731 = vtanh.pop %v711
    %v733 = vrot.slane %v605, 6
    %v735 = vmul.f32 %v730, %v733
    %737 = vrot.lane.b32.xlu0 %v731, 96
    %v738 = vpop.permute.xlu0 %737
    %v740 = vmul.f32 %v730, %v738
    %742 = vrot.lane.b32.xlu0 %v740, 16
    %v743 = vpop.permute.xlu0 %742
    %v745 = vadd.f32 %v735, %v743
    %v746 = vtanh.pop %v745
    %748 = vrot.lane.b32.xlu0 %v746, 32
    %v749 = vpop.permute.xlu0 %748
    %v751 = vmul.f32 %v730, %v749
    %v753 = vrot.slane %v681, 4
    %754 = vrot.lane.b32.xlu0 %v753, 80
    %v755 = vpop.permute.xlu0 %754
    %v756 = vsel %vm330, %v755, 0
    %758 = vmatpush.msra.mxu0 0.0
    %759 = vmatpush.msra.mxu0 0.0
    %760 = vmatpush.msra.mxu0 0.0
    %761 = vmatpush.msra.mxu0 0.0
    %762 = vmatpush.msra.mxu0 0.0
    %763 = vmatpush.msra.mxu0 0.0
    %764 = vmatpush.msra.mxu0 0.0
    %765 = vmatpush.msra.mxu0 0.0
    %766 = vmatpush.msra.mxu0 0.0
    %767 = vmatpush.msra.mxu0 0.0
    %768 = vmatpush.msra.mxu0 0.0
    %769 = vmatpush.msra.mxu0 0.0
    %770 = vmatpush.msra.mxu0 0.0
    %771 = vmatpush.msra.mxu0 0.0
    %772 = vmatpush.msra.mxu0 %v264
    %773 = vmatpush.msra.mxu0 %v263
    %774 = vmatmul.f32.gmra.mxu0 %v756
    %v775 = vpop.f32.mrf.mxu0
    %v776 = vadd.f32 0.0, %v775
    %777 = vdwg.mxu0
    %v779 = vrot.slane %v776, 6
    %v781 = vadd.f32 %v419, %v779
    %v782 = vxor.u32 %v781, 2147483648
    %v783 = vmul.f32 %v782, 1.442695
    %v784 = vpow.pop %v783
    %v785 = vadd.f32 %v784, 1.0
    %v786 = vrcp.pop %v785
    %v787 = vmul.f32 %v785, %v786
    %v788 = vsub.f32 1.0, %v787
    %v789 = vmul.f32 %v786, %v788
    %v790 = vadd.f32 %v786, %v789
    %vm791 = vweird.f32 %v785
    %vm792 = vweird.f32 %v786
    %vm793 = vmor %vm791, %vm792
    %v794 = vsel %vm793, %v786, %v790
    %v795 = vand.u32 2147483647, %v785
    %vm796 = vcmp.eq.f32.partialorder %v795, 8.507059e+37
    %v797 = vand.u32 %v785, 2147483648
    %v798 = vor.u32 1.1754944e-38, %v797
    %v799 = vsel %vm796, %v798, %v794
    %v800 = vmul.f32 1.0, %v799
    %v801 = vtanh.pop %v781
    %v803 = vrot.slane %v675, 2
    %v805 = vmul.f32 %v800, %v803
    %807 = vrot.lane.b32.xlu0 %v801, 96
    %v808 = vpop.permute.xlu0 %807
    %v810 = vmul.f32 %v800, %v808
    %812 = vrot.lane.b32.xlu0 %v810, 16
    %v813 = vpop.permute.xlu0 %812
    %v815 = vadd.f32 %v805, %v813
    %v816 = vtanh.pop %v815
    %818 = vrot.lane.b32.xlu0 %v816, 32
    %v819 = vpop.permute.xlu0 %818
    %v821 = vmul.f32 %v800, %v819
    %v823 = vrot.slane %v751, 4
    %824 = vrot.lane.b32.xlu0 %v823, 80
    %v825 = vpop.permute.xlu0 %824
    %v826 = vsel %vm330, %v825, 0
    %828 = vmatpush.msra.mxu0 0.0
    %829 = vmatpush.msra.mxu0 0.0
    %830 = vmatpush.msra.mxu0 0.0
    %831 = vmatpush.msra.mxu0 0.0
    %832 = vmatpush.msra.mxu0 0.0
    %833 = vmatpush.msra.mxu0 0.0
    %834 = vmatpush.msra.mxu0 0.0
    %835 = vmatpush.msra.mxu0 0.0
    %836 = vmatpush.msra.mxu0 0.0
    %837 = vmatpush.msra.mxu0 0.0
    %838 = vmatpush.msra.mxu0 0.0
    %839 = vmatpush.msra.mxu0 0.0
    %840 = vmatpush.msra.mxu0 0.0
    %841 = vmatpush.msra.mxu0 0.0
    %842 = vmatpush.msra.mxu0 %v257
    %843 = vmatpush.msra.mxu0 %v256
    %844 = vmatmul.f32.gmra.mxu0 %v826
    %v845 = vpop.f32.mrf.mxu0
    %v846 = vadd.f32 0.0, %v845
    %847 = vdwg.mxu0
    %v849 = vrot.slane %v846, 2
    %v851 = vadd.f32 %v390, %v849
    %v852 = vxor.u32 %v851, 2147483648
    %v853 = vmul.f32 %v852, 1.442695
    %v854 = vpow.pop %v853
    %v855 = vadd.f32 %v854, 1.0
    %v856 = vrcp.pop %v855
    %v857 = vmul.f32 %v855, %v856
    %v858 = vsub.f32 1.0, %v857
    %v859 = vmul.f32 %v856, %v858
    %v860 = vadd.f32 %v856, %v859
    %vm861 = vweird.f32 %v855
    %vm862 = vweird.f32 %v856
    %vm863 = vmor %vm861, %vm862
    %v864 = vsel %vm863, %v856, %v860
    %v865 = vand.u32 2147483647, %v855
    %vm866 = vcmp.eq.f32.partialorder %v865, 8.507059e+37
    %v867 = vand.u32 %v855, 2147483648
    %v868 = vor.u32 1.1754944e-38, %v867
    %v869 = vsel %vm866, %v868, %v864
    %v870 = vmul.f32 1.0, %v869
    %v871 = vtanh.pop %v851
    %v873 = vrot.slane %v745, 6
    %v875 = vmul.f32 %v870, %v873
    %877 = vrot.lane.b32.xlu0 %v871, 96
    %v878 = vpop.permute.xlu0 %877
    %v880 = vmul.f32 %v870, %v878
    %882 = vrot.lane.b32.xlu0 %v880, 16
    %v883 = vpop.permute.xlu0 %882
    %v885 = vadd.f32 %v875, %v883
    %v886 = vtanh.pop %v885
    %888 = vrot.lane.b32.xlu0 %v886, 32
    %v889 = vpop.permute.xlu0 %888
    %v891 = vmul.f32 %v870, %v889
    %v893 = vrot.slane %v821, 2
    %894 = vrot.lane.b32.xlu0 %v893, 80
    %v895 = vpop.permute.xlu0 %894
    %v896 = vsel %vm330, %v895, 0
    %898 = vmatpush.msra.mxu0 0.0
    %899 = vmatpush.msra.mxu0 0.0
    %900 = vmatpush.msra.mxu0 0.0
    %901 = vmatpush.msra.mxu0 0.0
    %902 = vmatpush.msra.mxu0 0.0
    %903 = vmatpush.msra.mxu0 0.0
    %904 = vmatpush.msra.mxu0 0.0
    %905 = vmatpush.msra.mxu0 0.0
    %906 = vmatpush.msra.mxu0 0.0
    %907 = vmatpush.msra.mxu0 0.0
    %908 = vmatpush.msra.mxu0 0.0
    %909 = vmatpush.msra.mxu0 0.0
    %910 = vmatpush.msra.mxu0 0.0
    %911 = vmatpush.msra.mxu0 0.0
    %912 = vmatpush.msra.mxu0 %v264
    %913 = vmatpush.msra.mxu0 %v263
    %914 = vmatmul.f32.gmra.mxu0 %v896
    %v915 = vpop.f32.mrf.mxu0
    %v916 = vadd.f32 0.0, %v915
    %917 = vdwg.mxu0
    %v918 = vadd.f32 %v419, %v916
    %v919 = vxor.u32 %v918, 2147483648
    %v920 = vmul.f32 %v919, 1.442695
    %v921 = vpow.pop %v920
    %v922 = vadd.f32 %v921, 1.0
    %v923 = vrcp.pop %v922
    %v924 = vmul.f32 %v922, %v923
    %v925 = vsub.f32 1.0, %v924
    %v926 = vmul.f32 %v923, %v925
    %v927 = vadd.f32 %v923, %v926
    %vm928 = vweird.f32 %v922
    %vm929 = vweird.f32 %v923
    %vm930 = vmor %vm928, %vm929
    %v931 = vsel %vm930, %v923, %v927
    %v932 = vand.u32 2147483647, %v922
    %vm933 = vcmp.eq.f32.partialorder %v932, 8.507059e+37
    %v934 = vand.u32 %v922, 2147483648
    %v935 = vor.u32 1.1754944e-38, %v934
    %v936 = vsel %vm933, %v935, %v931
    %v937 = vmul.f32 1.0, %v936
    %v938 = vtanh.pop %v918
    %v940 = vrot.slane %v815, 2
    %v942 = vmul.f32 %v937, %v940
    %944 = vrot.lane.b32.xlu0 %v938, 96
    %v945 = vpop.permute.xlu0 %944
    %v947 = vmul.f32 %v937, %v945
    %949 = vrot.lane.b32.xlu0 %v947, 16
    %v950 = vpop.permute.xlu0 %949
    %v952 = vadd.f32 %v942, %v950
    %v953 = vtanh.pop %v952
    %955 = vrot.lane.b32.xlu0 %v953, 32
    %v956 = vpop.permute.xlu0 %955
    %v958 = vmul.f32 %v937, %v956
    %v960 = vrot.slane %v891, 6
    %961 = vrot.lane.b32.xlu0 %v960, 80
    %v962 = vpop.permute.xlu0 %961
    %v963 = vsel %vm330, %v962, 0
    %965 = vmatpush.msra.mxu0 0.0
    %966 = vmatpush.msra.mxu0 0.0
    %967 = vmatpush.msra.mxu0 0.0
    %968 = vmatpush.msra.mxu0 0.0
    %969 = vmatpush.msra.mxu0 0.0
    %970 = vmatpush.msra.mxu0 0.0
    %971 = vmatpush.msra.mxu0 0.0
    %972 = vmatpush.msra.mxu0 0.0
    %973 = vmatpush.msra.mxu0 0.0
    %974 = vmatpush.msra.mxu0 0.0
    %975 = vmatpush.msra.mxu0 0.0
    %976 = vmatpush.msra.mxu0 0.0
    %977 = vmatpush.msra.mxu0 0.0
    %978 = vmatpush.msra.mxu0 0.0
    %979 = vmatpush.msra.mxu0 %v257
    %980 = vmatpush.msra.mxu0 %v256
    %981 = vmatmul.f32.gmra.mxu0 %v963
    %v982 = vpop.f32.mrf.mxu0
    %v983 = vadd.f32 0.0, %v982
    %984 = vdwg.mxu0
    %v985 = vadd.f32 %v393, %v983
    %v986 = vxor.u32 %v985, 2147483648
    %v987 = vmul.f32 %v986, 1.442695
    %v988 = vpow.pop %v987
    %v989 = vadd.f32 %v988, 1.0
    %v990 = vrcp.pop %v989
    %v991 = vmul.f32 %v989, %v990
    %v992 = vsub.f32 1.0, %v991
    %v993 = vmul.f32 %v990, %v992
    %v994 = vadd.f32 %v990, %v993
    %vm995 = vweird.f32 %v989
    %vm996 = vweird.f32 %v990
    %vm997 = vmor %vm995, %vm996
    %v998 = vsel %vm997, %v990, %v994
    %v999 = vand.u32 2147483647, %v989
    %vm1000 = vcmp.eq.f32.partialorder %v999, 8.507059e+37
    %v1001 = vand.u32 %v989, 2147483648
    %v1002 = vor.u32 1.1754944e-38, %v1001
    %v1003 = vsel %vm1000, %v1002, %v998
    %v1004 = vmul.f32 1.0, %v1003
    %v1005 = vtanh.pop %v985
    %v1007 = vrot.slane %v885, 6
    %v1009 = vmul.f32 %v1004, %v1007
    %1011 = vrot.lane.b32.xlu0 %v1005, 96
    %v1012 = vpop.permute.xlu0 %1011
    %v1014 = vmul.f32 %v1004, %v1012
    %1016 = vrot.lane.b32.xlu0 %v1014, 16
    %v1017 = vpop.permute.xlu0 %1016
    %v1019 = vadd.f32 %v1009, %v1017
    %v1020 = vtanh.pop %v1019
    %1022 = vrot.lane.b32.xlu0 %v1020, 32
    %v1023 = vpop.permute.xlu0 %1022
    %v1025 = vmul.f32 %v1004, %v1023
    %1027 = vrot.lane.b32.xlu0 %v958, 80
    %v1028 = vpop.permute.xlu0 %1027
    %v1029 = vsel %vm330, %v1028, 0
    %1031 = vmatpush.msra.mxu0 0.0
    %1032 = vmatpush.msra.mxu0 0.0
    %1033 = vmatpush.msra.mxu0 0.0
    %1034 = vmatpush.msra.mxu0 0.0
    %1035 = vmatpush.msra.mxu0 0.0
    %1036 = vmatpush.msra.mxu0 0.0
    %1037 = vmatpush.msra.mxu0 0.0
    %1038 = vmatpush.msra.mxu0 0.0
    %1039 = vmatpush.msra.mxu0 0.0
    %1040 = vmatpush.msra.mxu0 0.0
    %1041 = vmatpush.msra.mxu0 0.0
    %1042 = vmatpush.msra.mxu0 0.0
    %1043 = vmatpush.msra.mxu0 0.0
    %1044 = vmatpush.msra.mxu0 0.0
    %1045 = vmatpush.msra.mxu0 %v264
    %1046 = vmatpush.msra.mxu0 %v263
    %1047 = vmatmul.f32.gmra.mxu0 %v1029
    %v1048 = vpop.f32.mrf.mxu0
    %v1049 = vadd.f32 0.0, %v1048
    %1050 = vdwg.mxu0
    %v1052 = vrot.slane %v1049, 2
    %v1054 = vadd.f32 %v416, %v1052
    %v1055 = vxor.u32 %v1054, 2147483648
    %v1056 = vmul.f32 %v1055, 1.442695
    %v1057 = vpow.pop %v1056
    %v1058 = vadd.f32 %v1057, 1.0
    %v1059 = vrcp.pop %v1058
    %v1060 = vmul.f32 %v1058, %v1059
    %v1061 = vsub.f32 1.0, %v1060
    %v1062 = vmul.f32 %v1059, %v1061
    %v1063 = vadd.f32 %v1059, %v1062
    %vm1064 = vweird.f32 %v1058
    %vm1065 = vweird.f32 %v1059
    %vm1066 = vmor %vm1064, %vm1065
    %v1067 = vsel %vm1066, %v1059, %v1063
    %v1068 = vand.u32 2147483647, %v1058
    %vm1069 = vcmp.eq.f32.partialorder %v1068, 8.507059e+37
    %v1070 = vand.u32 %v1058, 2147483648
    %v1071 = vor.u32 1.1754944e-38, %v1070
    %v1072 = vsel %vm1069, %v1071, %v1067
    %v1073 = vmul.f32 1.0, %v1072
    %v1074 = vtanh.pop %v1054
    %v1076 = vrot.slane %v952, 2
    %v1078 = vmul.f32 %v1073, %v1076
    %1080 = vrot.lane.b32.xlu0 %v1074, 96
    %v1081 = vpop.permute.xlu0 %1080
    %v1083 = vmul.f32 %v1073, %v1081
    %1085 = vrot.lane.b32.xlu0 %v1083, 16
    %v1086 = vpop.permute.xlu0 %1085
    %v1088 = vadd.f32 %v1078, %v1086
    %v1089 = vtanh.pop %v1088
    %1091 = vrot.lane.b32.xlu0 %v1089, 32
    %v1092 = vpop.permute.xlu0 %1091
    %v1094 = vmul.f32 %v1073, %v1092
    %1096 = vrot.lane.b32.xlu0 %v1025, 80
    %v1097 = vpop.permute.xlu0 %1096
    %v1098 = vsel %vm330, %v1097, 0
    %1100 = vmatpush.msra.mxu0 0.0
    %1101 = vmatpush.msra.mxu0 0.0
    %1102 = vmatpush.msra.mxu0 0.0
    %1103 = vmatpush.msra.mxu0 0.0
    %1104 = vmatpush.msra.mxu0 0.0
    %1105 = vmatpush.msra.mxu0 0.0
    %1106 = vmatpush.msra.mxu0 0.0
    %1107 = vmatpush.msra.mxu0 0.0
    %1108 = vmatpush.msra.mxu0 0.0
    %1109 = vmatpush.msra.mxu0 0.0
    %1110 = vmatpush.msra.mxu0 0.0
    %1111 = vmatpush.msra.mxu0 0.0
    %1112 = vmatpush.msra.mxu0 0.0
    %1113 = vmatpush.msra.mxu0 0.0
    %1114 = vmatpush.msra.mxu0 %v257
    %1115 = vmatpush.msra.mxu0 %v256
    %1116 = vmatmul.f32.gmra.mxu0 %v1098
    %v1117 = vpop.f32.mrf.mxu0
    %v1118 = vadd.f32 0.0, %v1117
    %1119 = vdwg.mxu0
    %v1121 = vrot.slane %v1118, 6
    %v1123 = vadd.f32 %v393, %v1121
    %v1124 = vxor.u32 %v1123, 2147483648
    %v1125 = vmul.f32 %v1124, 1.442695
    %v1126 = vpow.pop %v1125
    %v1127 = vadd.f32 %v1126, 1.0
    %v1128 = vrcp.pop %v1127
    %v1129 = vmul.f32 %v1127, %v1128
    %v1130 = vsub.f32 1.0, %v1129
    %v1131 = vmul.f32 %v1128, %v1130
    %v1132 = vadd.f32 %v1128, %v1131
    %vm1133 = vweird.f32 %v1127
    %vm1134 = vweird.f32 %v1128
    %vm1135 = vmor %vm1133, %vm1134
    %v1136 = vsel %vm1135, %v1128, %v1132
    %v1137 = vand.u32 2147483647, %v1127
    %vm1138 = vcmp.eq.f32.partialorder %v1137, 8.507059e+37
    %v1139 = vand.u32 %v1127, 2147483648
    %v1140 = vor.u32 1.1754944e-38, %v1139
    %v1141 = vsel %vm1138, %v1140, %v1136
    %v1142 = vmul.f32 1.0, %v1141
    %v1143 = vtanh.pop %v1123
    %v1145 = vrot.slane %v1019, 6
    %v1147 = vmul.f32 %v1142, %v1145
    %1149 = vrot.lane.b32.xlu0 %v1143, 96
    %v1150 = vpop.permute.xlu0 %1149
    %v1152 = vmul.f32 %v1142, %v1150
    %1154 = vrot.lane.b32.xlu0 %v1152, 16
    %v1155 = vpop.permute.xlu0 %1154
    %v1157 = vadd.f32 %v1147, %v1155
    %v1158 = vtanh.pop %v1157
    %1160 = vrot.lane.b32.xlu0 %v1158, 32
    %v1161 = vpop.permute.xlu0 %1160
    %v1163 = vmul.f32 %v1142, %v1161
    %v1165 = vrot.slane %v1094, 6
    %1166 = vrot.lane.b32.xlu0 %v1165, 80
    %v1167 = vpop.permute.xlu0 %1166
    %v1168 = vsel %vm330, %v1167, 0
    %1170 = vmatpush.msra.mxu0 0.0
    %1171 = vmatpush.msra.mxu0 0.0
    %1172 = vmatpush.msra.mxu0 0.0
    %1173 = vmatpush.msra.mxu0 0.0
    %1174 = vmatpush.msra.mxu0 0.0
    %1175 = vmatpush.msra.mxu0 0.0
    %1176 = vmatpush.msra.mxu0 0.0
    %1177 = vmatpush.msra.mxu0 0.0
    %1178 = vmatpush.msra.mxu0 0.0
    %1179 = vmatpush.msra.mxu0 0.0
    %1180 = vmatpush.msra.mxu0 0.0
    %1181 = vmatpush.msra.mxu0 0.0
    %1182 = vmatpush.msra.mxu0 0.0
    %1183 = vmatpush.msra.mxu0 0.0
    %1184 = vmatpush.msra.mxu0 %v264
    %1185 = vmatpush.msra.mxu0 %v263
    %1186 = vmatmul.f32.gmra.mxu0 %v1168
    %v1187 = vpop.f32.mrf.mxu0
    %v1188 = vadd.f32 0.0, %v1187
    %1189 = vdwg.mxu0
    %v1191 = vrot.slane %v1188, 4
    %v1193 = vadd.f32 %v416, %v1191
    %v1194 = vxor.u32 %v1193, 2147483648
    %v1195 = vmul.f32 %v1194, 1.442695
    %v1196 = vpow.pop %v1195
    %v1197 = vadd.f32 %v1196, 1.0
    %v1198 = vrcp.pop %v1197
    %v1199 = vmul.f32 %v1197, %v1198
    %v1200 = vsub.f32 1.0, %v1199
    %v1201 = vmul.f32 %v1198, %v1200
    %v1202 = vadd.f32 %v1198, %v1201
    %vm1203 = vweird.f32 %v1197
    %vm1204 = vweird.f32 %v1198
    %vm1205 = vmor %vm1203, %vm1204
    %v1206 = vsel %vm1205, %v1198, %v1202
    %v1207 = vand.u32 2147483647, %v1197
    %vm1208 = vcmp.eq.f32.partialorder %v1207, 8.507059e+37
    %v1209 = vand.u32 %v1197, 2147483648
    %v1210 = vor.u32 1.1754944e-38, %v1209
    %v1211 = vsel %vm1208, %v1210, %v1206
    %v1212 = vmul.f32 1.0, %v1211
    %v1213 = vtanh.pop %v1193
    %v1215 = vrot.slane %v1088, 2
    %v1217 = vmul.f32 %v1212, %v1215
    %1219 = vrot.lane.b32.xlu0 %v1213, 96
    %v1220 = vpop.permute.xlu0 %1219
    %v1222 = vmul.f32 %v1212, %v1220
    %1224 = vrot.lane.b32.xlu0 %v1222, 16
    %v1225 = vpop.permute.xlu0 %1224
    %v1227 = vadd.f32 %v1217, %v1225
    %v1228 = vtanh.pop %v1227
    %1230 = vrot.lane.b32.xlu0 %v1228, 32
    %v1231 = vpop.permute.xlu0 %1230
    %v1233 = vmul.f32 %v1212, %v1231
    %v1235 = vrot.slane %v1163, 2
    %1236 = vrot.lane.b32.xlu0 %v1235, 80
    %v1237 = vpop.permute.xlu0 %1236
    %v1238 = vsel %vm330, %v1237, 0
    %1240 = vmatpush.msra.mxu0 0.0
    %1241 = vmatpush.msra.mxu0 0.0
    %1242 = vmatpush.msra.mxu0 0.0
    %1243 = vmatpush.msra.mxu0 0.0
    %1244 = vmatpush.msra.mxu0 0.0
    %1245 = vmatpush.msra.mxu0 0.0
    %1246 = vmatpush.msra.mxu0 0.0
    %1247 = vmatpush.msra.mxu0 0.0
    %1248 = vmatpush.msra.mxu0 0.0
    %1249 = vmatpush.msra.mxu0 0.0
    %1250 = vmatpush.msra.mxu0 0.0
    %1251 = vmatpush.msra.mxu0 0.0
    %1252 = vmatpush.msra.mxu0 0.0
    %1253 = vmatpush.msra.mxu0 0.0
    %1254 = vmatpush.msra.mxu0 %v257
    %1255 = vmatpush.msra.mxu0 %v256
    %1256 = vmatmul.f32.gmra.mxu0 %v1238
    %v1257 = vpop.f32.mrf.mxu0
    %v1258 = vadd.f32 0.0, %v1257
    %1259 = vdwg.mxu0
    %v1261 = vrot.slane %v1258, 4
    %v1263 = vadd.f32 %v393, %v1261
    %v1264 = vxor.u32 %v1263, 2147483648
    %v1265 = vmul.f32 %v1264, 1.442695
    %v1266 = vpow.pop %v1265
    %v1267 = vadd.f32 %v1266, 1.0
    %v1268 = vrcp.pop %v1267
    %v1269 = vmul.f32 %v1267, %v1268
    %v1270 = vsub.f32 1.0, %v1269
    %v1271 = vmul.f32 %v1268, %v1270
    %v1272 = vadd.f32 %v1268, %v1271
    %vm1273 = vweird.f32 %v1267
    %vm1274 = vweird.f32 %v1268
    %vm1275 = vmor %vm1273, %vm1274
    %v1276 = vsel %vm1275, %v1268, %v1272
    %v1277 = vand.u32 2147483647, %v1267
    %vm1278 = vcmp.eq.f32.partialorder %v1277, 8.507059e+37
    %v1279 = vand.u32 %v1267, 2147483648
    %v1280 = vor.u32 1.1754944e-38, %v1279
    %v1281 = vsel %vm1278, %v1280, %v1276
    %v1282 = vmul.f32 1.0, %v1281
    %v1283 = vtanh.pop %v1263
    %v1285 = vrot.slane %v1157, 6
    %v1287 = vmul.f32 %v1282, %v1285
    %1289 = vrot.lane.b32.xlu0 %v1283, 96
    %v1290 = vpop.permute.xlu0 %1289
    %v1292 = vmul.f32 %v1282, %v1290
    %1294 = vrot.lane.b32.xlu0 %v1292, 16
    %v1295 = vpop.permute.xlu0 %1294
    %v1297 = vadd.f32 %v1287, %v1295
    %v1298 = vtanh.pop %v1297
    %1300 = vrot.lane.b32.xlu0 %v1298, 32
    %v1301 = vpop.permute.xlu0 %1300
    %v1303 = vmul.f32 %v1282, %v1301
    %v1305 = vrot.slane %v1233, 4
    %1306 = vrot.lane.b32.xlu0 %v1305, 80
    %v1307 = vpop.permute.xlu0 %1306
    %v1308 = vsel %vm330, %v1307, 0
    %1310 = vmatpush.msra.mxu0 0.0
    %1311 = vmatpush.msra.mxu0 0.0
    %1312 = vmatpush.msra.mxu0 0.0
    %1313 = vmatpush.msra.mxu0 0.0
    %1314 = vmatpush.msra.mxu0 0.0
    %1315 = vmatpush.msra.mxu0 0.0
    %1316 = vmatpush.msra.mxu0 0.0
    %1317 = vmatpush.msra.mxu0 0.0
    %1318 = vmatpush.msra.mxu0 0.0
    %1319 = vmatpush.msra.mxu0 0.0
    %1320 = vmatpush.msra.mxu0 0.0
    %1321 = vmatpush.msra.mxu0 0.0
    %1322 = vmatpush.msra.mxu0 0.0
    %1323 = vmatpush.msra.mxu0 0.0
    %1324 = vmatpush.msra.mxu0 %v264
    %1325 = vmatpush.msra.mxu0 %v263
    %1326 = vmatmul.f32.gmra.mxu0 %v1308
    %v1327 = vpop.f32.mrf.mxu0
    %v1328 = vadd.f32 0.0, %v1327
    %1329 = vdwg.mxu0
    %v1331 = vrot.slane %v1328, 6
    %v1333 = vadd.f32 %v416, %v1331
    %v1334 = vxor.u32 %v1333, 2147483648
    %v1335 = vmul.f32 %v1334, 1.442695
    %v1336 = vpow.pop %v1335
    %v1337 = vadd.f32 %v1336, 1.0
    %v1338 = vrcp.pop %v1337
    %v1339 = vmul.f32 %v1337, %v1338
    %v1340 = vsub.f32 1.0, %v1339
    %v1341 = vmul.f32 %v1338, %v1340
    %v1342 = vadd.f32 %v1338, %v1341
    %vm1343 = vweird.f32 %v1337
    %vm1344 = vweird.f32 %v1338
    %vm1345 = vmor %vm1343, %vm1344
    %v1346 = vsel %vm1345, %v1338, %v1342
    %v1347 = vand.u32 2147483647, %v1337
    %vm1348 = vcmp.eq.f32.partialorder %v1347, 8.507059e+37
    %v1349 = vand.u32 %v1337, 2147483648
    %v1350 = vor.u32 1.1754944e-38, %v1349
    %v1351 = vsel %vm1348, %v1350, %v1346
    %v1352 = vmul.f32 1.0, %v1351
    %v1353 = vtanh.pop %v1333
    %v1355 = vrot.slane %v1227, 2
    %v1357 = vmul.f32 %v1352, %v1355
    %1359 = vrot.lane.b32.xlu0 %v1353, 96
    %v1360 = vpop.permute.xlu0 %1359
    %v1362 = vmul.f32 %v1352, %v1360
    %1364 = vrot.lane.b32.xlu0 %v1362, 16
    %v1365 = vpop.permute.xlu0 %1364
    %v1367 = vadd.f32 %v1357, %v1365
    %v1368 = vtanh.pop %v1367
    %1370 = vrot.lane.b32.xlu0 %v1368, 32
    %v1371 = vpop.permute.xlu0 %1370
    %v1373 = vmul.f32 %v1352, %v1371
    %v1375 = vrot.slane %v1303, 4
    %1376 = vrot.lane.b32.xlu0 %v1375, 80
    %v1377 = vpop.permute.xlu0 %1376
    %v1378 = vsel %vm330, %v1377, 0
    %1380 = vmatpush.msra.mxu0 0.0
    %1381 = vmatpush.msra.mxu0 0.0
    %1382 = vmatpush.msra.mxu0 0.0
    %1383 = vmatpush.msra.mxu0 0.0
    %1384 = vmatpush.msra.mxu0 0.0
    %1385 = vmatpush.msra.mxu0 0.0
    %1386 = vmatpush.msra.mxu0 0.0
    %1387 = vmatpush.msra.mxu0 0.0
    %1388 = vmatpush.msra.mxu0 0.0
    %1389 = vmatpush.msra.mxu0 0.0
    %1390 = vmatpush.msra.mxu0 0.0
    %1391 = vmatpush.msra.mxu0 0.0
    %1392 = vmatpush.msra.mxu0 0.0
    %1393 = vmatpush.msra.mxu0 0.0
    %1394 = vmatpush.msra.mxu0 %v257
    %1395 = vmatpush.msra.mxu0 %v256
    %1396 = vmatmul.f32.gmra.mxu0 %v1378
    %v1397 = vpop.f32.mrf.mxu0
    %v1398 = vadd.f32 0.0, %v1397
    %1399 = vdwg.mxu0
    %v1401 = vrot.slane %v1398, 2
    %v1403 = vadd.f32 %v393, %v1401
    %v1404 = vxor.u32 %v1403, 2147483648
    %v1405 = vmul.f32 %v1404, 1.442695
    %v1406 = vpow.pop %v1405
    %v1407 = vadd.f32 %v1406, 1.0
    %v1408 = vrcp.pop %v1407
    %v1409 = vmul.f32 %v1407, %v1408
    %v1410 = vsub.f32 1.0, %v1409
    %v1411 = vmul.f32 %v1408, %v1410
    %v1412 = vadd.f32 %v1408, %v1411
    %vm1413 = vweird.f32 %v1407
    %vm1414 = vweird.f32 %v1408
    %vm1415 = vmor %vm1413, %vm1414
    %v1416 = vsel %vm1415, %v1408, %v1412
    %v1417 = vand.u32 2147483647, %v1407
    %vm1418 = vcmp.eq.f32.partialorder %v1417, 8.507059e+37
    %v1419 = vand.u32 %v1407, 2147483648
    %v1420 = vor.u32 1.1754944e-38, %v1419
    %v1421 = vsel %vm1418, %v1420, %v1416
    %v1422 = vmul.f32 1.0, %v1421
    %v1423 = vtanh.pop %v1403
    %v1425 = vrot.slane %v1297, 6
    %v1427 = vmul.f32 %v1422, %v1425
    %1429 = vrot.lane.b32.xlu0 %v1423, 96
    %v1430 = vpop.permute.xlu0 %1429
    %v1432 = vmul.f32 %v1422, %v1430
    %1434 = vrot.lane.b32.xlu0 %v1432, 16
    %v1435 = vpop.permute.xlu0 %1434
    %v1437 = vadd.f32 %v1427, %v1435
    %v1438 = vtanh.pop %v1437
    %1440 = vrot.lane.b32.xlu0 %v1438, 32
    %v1441 = vpop.permute.xlu0 %1440
    %v1443 = vmul.f32 %v1422, %v1441
    %v1445 = vrot.slane %v1373, 2
    %1446 = vrot.lane.b32.xlu0 %v1445, 80
    %v1447 = vpop.permute.xlu0 %1446
    %v1448 = vsel %vm330, %v1447, 0
    %1450 = vmatpush.msra.mxu0 0.0
    %1451 = vmatpush.msra.mxu0 0.0
    %1452 = vmatpush.msra.mxu0 0.0
    %1453 = vmatpush.msra.mxu0 0.0
    %1454 = vmatpush.msra.mxu0 0.0
    %1455 = vmatpush.msra.mxu0 0.0
    %1456 = vmatpush.msra.mxu0 0.0
    %1457 = vmatpush.msra.mxu0 0.0
    %1458 = vmatpush.msra.mxu0 0.0
    %1459 = vmatpush.msra.mxu0 0.0
    %1460 = vmatpush.msra.mxu0 0.0
    %1461 = vmatpush.msra.mxu0 0.0
    %1462 = vmatpush.msra.mxu0 0.0
    %1463 = vmatpush.msra.mxu0 0.0
    %1464 = vmatpush.msra.mxu0 %v264
    %1465 = vmatpush.msra.mxu0 %v263
    %1466 = vmatmul.f32.gmra.mxu0 %v1448
    %v1467 = vpop.f32.mrf.mxu0
    %v1468 = vadd.f32 0.0, %v1467
    %1469 = vdwg.mxu0
    %v1470 = vadd.f32 %v416, %v1468
    %v1471 = vxor.u32 %v1470, 2147483648
    %v1472 = vmul.f32 %v1471, 1.442695
    %v1473 = vpow.pop %v1472
    %v1474 = vadd.f32 %v1473, 1.0
    %v1475 = vrcp.pop %v1474
    %v1476 = vmul.f32 %v1474, %v1475
    %v1477 = vsub.f32 1.0, %v1476
    %v1478 = vmul.f32 %v1475, %v1477
    %v1479 = vadd.f32 %v1475, %v1478
    %vm1480 = vweird.f32 %v1474
    %vm1481 = vweird.f32 %v1475
    %vm1482 = vmor %vm1480, %vm1481
    %v1483 = vsel %vm1482, %v1475, %v1479
    %v1484 = vand.u32 2147483647, %v1474
    %vm1485 = vcmp.eq.f32.partialorder %v1484, 8.507059e+37
    %v1486 = vand.u32 %v1474, 2147483648
    %v1487 = vor.u32 1.1754944e-38, %v1486
    %v1488 = vsel %vm1485, %v1487, %v1483
    %v1489 = vmul.f32 1.0, %v1488
    %v1490 = vtanh.pop %v1470
    %v1492 = vrot.slane %v1367, 2
    %v1494 = vmul.f32 %v1489, %v1492
    %1496 = vrot.lane.b32.xlu0 %v1490, 96
    %v1497 = vpop.permute.xlu0 %1496
    %v1499 = vmul.f32 %v1489, %v1497
    %1501 = vrot.lane.b32.xlu0 %v1499, 16
    %v1502 = vpop.permute.xlu0 %1501
    %v1504 = vadd.f32 %v1494, %v1502
    %v1505 = vtanh.pop %v1504
    %1507 = vrot.lane.b32.xlu0 %v1505, 32
    %v1508 = vpop.permute.xlu0 %1507
    %v1510 = vmul.f32 %v1489, %v1508
    %vm1511 = vcmask 1041408
    %v1512 = vsel %vm1511, %v481, %v611
    %v1513 = vsel %vm298, %v1512, %v751
    %vm1514 = vcmask 1045504
    %v1515 = vsel %vm1514, %v1513, %v891
    %v1516 = vsel %vm1511, %v1025, %v1163
    %v1517 = vsel %vm298, %v1516, %v1303
    %v1518 = vsel %vm1514, %v1517, %v1443
    %v1519 = vsel %vm1511, %v1510, %v1373
    %v1520 = vsel %vm298, %v1519, %v1233
    %v1521 = vsel %vm1514, %v1520, %v1094
    %v1522 = vsel %vm1511, %v958, %v821
    %v1523 = vsel %vm298, %v1522, %v681
    %v1524 = vsel %vm1514, %v1523, %v542
    %1527 = vrot.lane.b32.xlu0 %v1515, 80
    %v1528 = vpop.permute.xlu0 %1527
    %1529 = vrot.lane.b32.xlu0 %v1518, 80
    %v1530 = vpop.permute.xlu0 %1529
    %1535 = vrot.lane.b32.xlu0 %v1521, 96
    %v1536 = vpop.permute.xlu0 %1535
    %1537 = vrot.lane.b32.xlu0 %v1524, 96
    %v1538 = vpop.permute.xlu0 %1537
    %v1541 = vsel %vm330, %v1528, %v1536
    %v1542 = vsel %vm330, %v1530, %v1538
    %v1544 = vperm.slane %v272, 0
    %v1547 = vsel %vm365, %v1541, 0
    %v1550 = vsel %vm365, %v1542, 0
    %1552 = vmatpush.msra.mxu0 0.0
    %1553 = vmatpush.msra.mxu0 0.0
    %1554 = vmatpush.msra.mxu0 0.0
    %1555 = vmatpush.msra.mxu0 0.0
    %1556 = vmatpush.msra.mxu0 0.0
    %1557 = vmatpush.msra.mxu0 0.0
    %1558 = vmatpush.msra.mxu0 0.0
    %1559 = vmatpush.msra.mxu0 0.0
    %1560 = vmatpush.msra.mxu0 0.0
    %1561 = vmatpush.msra.mxu0 0.0
    %1562 = vmatpush.msra.mxu0 0.0
    %1563 = vmatpush.msra.mxu0 0.0
    %1564 = vmatpush.msra.mxu0 %v269
    %1565 = vmatpush.msra.mxu0 %v268
    %1566 = vmatpush.msra.mxu0 %v267
    %1567 = vmatpush.msra.mxu0 %v266
    %1568 = vmatmul.f32.gmra.mxu0 %v1547
    %v1569 = vpop.f32.mrf.mxu0
    %v1570 = vadd.f32 %v1544, %v1569
    %1571 = vmatmul.f32.gmra.mxu0 %v1550
    %v1572 = vpop.f32.mrf.mxu0
    %v1573 = vadd.f32 %v1544, %v1572
    %1574 = vdwg.mxu0
    %v1576 = vperm.slane %v279, 0
    %1578 = vmatpush.msra.mxu0 0.0
    %1579 = vmatpush.msra.mxu0 0.0
    %1580 = vmatpush.msra.mxu0 0.0
    %1581 = vmatpush.msra.mxu0 0.0
    %1582 = vmatpush.msra.mxu0 0.0
    %1583 = vmatpush.msra.mxu0 0.0
    %1584 = vmatpush.msra.mxu0 0.0
    %1585 = vmatpush.msra.mxu0 0.0
    %1586 = vmatpush.msra.mxu0 0.0
    %1587 = vmatpush.msra.mxu0 0.0
    %1588 = vmatpush.msra.mxu0 0.0
    %1589 = vmatpush.msra.mxu0 0.0
    %1590 = vmatpush.msra.mxu0 %v276
    %1591 = vmatpush.msra.mxu0 %v275
    %1592 = vmatpush.msra.mxu0 %v274
    %1593 = vmatpush.msra.mxu0 %v273
    %1594 = vmatmul.f32.gmra.mxu0 %v1547
    %v1595 = vpop.f32.mrf.mxu0
    %v1596 = vadd.f32 %v1576, %v1595
    %1597 = vmatmul.f32.gmra.mxu0 %v1550
    %v1598 = vpop.f32.mrf.mxu0
    %v1599 = vadd.f32 %v1576, %v1598
    %1600 = vdwg.mxu0
    %1601 = vmatpush.msra.mxu0 0.0
    %1602 = vmatpush.msra.mxu0 0.0
    %1603 = vmatpush.msra.mxu0 0.0
    %1604 = vmatpush.msra.mxu0 0.0
    %1605 = vmatpush.msra.mxu0 0.0
    %1606 = vmatpush.msra.mxu0 0.0
    %1607 = vmatpush.msra.mxu0 0.0
    %1608 = vmatpush.msra.mxu0 0.0
    %1609 = vmatpush.msra.mxu0 0.0
    %1610 = vmatpush.msra.mxu0 0.0
    %1611 = vmatpush.msra.mxu0 0.0
    %1612 = vmatpush.msra.mxu0 0.0
    %1613 = vmatpush.msra.mxu0 0.0
    %1614 = vmatpush.msra.mxu0 0.0
    %1615 = vmatpush.msra.mxu0 %v271
    %1616 = vmatpush.msra.mxu0 %v270
    %1617 = vmatmul.f32.gmra.mxu0 %v422
    %v1618 = vpop.f32.mrf.mxu0
    %v1619 = vadd.f32 0.0, %v1618
    %1620 = vdwg.mxu0
    %v1621 = vadd.f32 %v1570, %v1619
    %v1622 = vxor.u32 %v1621, 2147483648
    %v1623 = vmul.f32 %v1622, 1.442695
    %v1624 = vpow.pop %v1623
    %v1625 = vadd.f32 %v1624, 1.0
    %v1626 = vrcp.pop %v1625
    %v1627 = vmul.f32 %v1625, %v1626
    %v1628 = vsub.f32 1.0, %v1627
    %v1629 = vmul.f32 %v1626, %v1628
    %v1630 = vadd.f32 %v1626, %v1629
    %vm1631 = vweird.f32 %v1625
    %vm1632 = vweird.f32 %v1626
    %vm1633 = vmor %vm1631, %vm1632
    %v1634 = vsel %vm1633, %v1626, %v1630
    %v1635 = vand.u32 2147483647, %v1625
    %vm1636 = vcmp.eq.f32.partialorder %v1635, 8.507059e+37
    %v1637 = vand.u32 %v1625, 2147483648
    %v1638 = vor.u32 1.1754944e-38, %v1637
    %v1639 = vsel %vm1636, %v1638, %v1634
    %v1640 = vmul.f32 1.0, %v1639
    %v1641 = vtanh.pop %v1621
    %v1642 = vmul.f32 %v1640, 0.0
    %1644 = vrot.lane.b32.xlu0 %v1641, 96
    %v1645 = vpop.permute.xlu0 %1644
    %v1647 = vmul.f32 %v1640, %v1645
    %1649 = vrot.lane.b32.xlu0 %v1647, 16
    %v1650 = vpop.permute.xlu0 %1649
    %v1652 = vadd.f32 %v1642, %v1650
    %v1653 = vtanh.pop %v1652
    %1655 = vrot.lane.b32.xlu0 %v1653, 32
    %v1656 = vpop.permute.xlu0 %1655
    %v1658 = vmul.f32 %v1640, %v1656
    %1659 = vmatpush.msra.mxu0 0.0
    %1660 = vmatpush.msra.mxu0 0.0
    %1661 = vmatpush.msra.mxu0 0.0
    %1662 = vmatpush.msra.mxu0 0.0
    %1663 = vmatpush.msra.mxu0 0.0
    %1664 = vmatpush.msra.mxu0 0.0
    %1665 = vmatpush.msra.mxu0 0.0
    %1666 = vmatpush.msra.mxu0 0.0
    %1667 = vmatpush.msra.mxu0 0.0
    %1668 = vmatpush.msra.mxu0 0.0
    %1669 = vmatpush.msra.mxu0 0.0
    %1670 = vmatpush.msra.mxu0 0.0
    %1671 = vmatpush.msra.mxu0 0.0
    %1672 = vmatpush.msra.mxu0 0.0
    %1673 = vmatpush.msra.mxu0 %v278
    %1674 = vmatpush.msra.mxu0 %v277
    %1675 = vmatmul.f32.gmra.mxu0 %v422
    %v1676 = vpop.f32.mrf.mxu0
    %v1677 = vadd.f32 0.0, %v1676
    %1678 = vdwg.mxu0
    %v1680 = vrot.slane %v1677, 2
    %v1682 = vadd.f32 %v1599, %v1680
    %v1683 = vxor.u32 %v1682, 2147483648
    %v1684 = vmul.f32 %v1683, 1.442695
    %v1685 = vpow.pop %v1684
    %v1686 = vadd.f32 %v1685, 1.0
    %v1687 = vrcp.pop %v1686
    %v1688 = vmul.f32 %v1686, %v1687
    %v1689 = vsub.f32 1.0, %v1688
    %v1690 = vmul.f32 %v1687, %v1689
    %v1691 = vadd.f32 %v1687, %v1690
    %vm1692 = vweird.f32 %v1686
    %vm1693 = vweird.f32 %v1687
    %vm1694 = vmor %vm1692, %vm1693
    %v1695 = vsel %vm1694, %v1687, %v1691
    %v1696 = vand.u32 2147483647, %v1686
    %vm1697 = vcmp.eq.f32.partialorder %v1696, 8.507059e+37
    %v1698 = vand.u32 %v1686, 2147483648
    %v1699 = vor.u32 1.1754944e-38, %v1698
    %v1700 = vsel %vm1697, %v1699, %v1695
    %v1701 = vmul.f32 1.0, %v1700
    %v1702 = vtanh.pop %v1682
    %v1703 = vmul.f32 %v1701, 0.0
    %1705 = vrot.lane.b32.xlu0 %v1702, 96
    %v1706 = vpop.permute.xlu0 %1705
    %v1708 = vmul.f32 %v1701, %v1706
    %1710 = vrot.lane.b32.xlu0 %v1708, 16
    %v1711 = vpop.permute.xlu0 %1710
    %v1713 = vadd.f32 %v1703, %v1711
    %v1714 = vtanh.pop %v1713
    %1716 = vrot.lane.b32.xlu0 %v1714, 32
    %v1717 = vpop.permute.xlu0 %1716
    %v1719 = vmul.f32 %v1701, %v1717
    %1721 = vrot.lane.b32.xlu0 %v1658, 80
    %v1722 = vpop.permute.xlu0 %1721
    %v1723 = vsel %vm330, %v1722, 0
    %1725 = vmatpush.msra.mxu0 0.0
    %1726 = vmatpush.msra.mxu0 0.0
    %1727 = vmatpush.msra.mxu0 0.0
    %1728 = vmatpush.msra.mxu0 0.0
    %1729 = vmatpush.msra.mxu0 0.0
    %1730 = vmatpush.msra.mxu0 0.0
    %1731 = vmatpush.msra.mxu0 0.0
    %1732 = vmatpush.msra.mxu0 0.0
    %1733 = vmatpush.msra.mxu0 0.0
    %1734 = vmatpush.msra.mxu0 0.0
    %1735 = vmatpush.msra.mxu0 0.0
    %1736 = vmatpush.msra.mxu0 0.0
    %1737 = vmatpush.msra.mxu0 0.0
    %1738 = vmatpush.msra.mxu0 0.0
    %1739 = vmatpush.msra.mxu0 %v271
    %1740 = vmatpush.msra.mxu0 %v270
    %1741 = vmatmul.f32.gmra.mxu0 %v1723
    %v1742 = vpop.f32.mrf.mxu0
    %v1743 = vadd.f32 0.0, %v1742
    %1744 = vdwg.mxu0
    %v1746 = vrot.slane %v1743, 6
    %v1748 = vadd.f32 %v1570, %v1746
    %v1749 = vxor.u32 %v1748, 2147483648
    %v1750 = vmul.f32 %v1749, 1.442695
    %v1751 = vpow.pop %v1750
    %v1752 = vadd.f32 %v1751, 1.0
    %v1753 = vrcp.pop %v1752
    %v1754 = vmul.f32 %v1752, %v1753
    %v1755 = vsub.f32 1.0, %v1754
    %v1756 = vmul.f32 %v1753, %v1755
    %v1757 = vadd.f32 %v1753, %v1756
    %vm1758 = vweird.f32 %v1752
    %vm1759 = vweird.f32 %v1753
    %vm1760 = vmor %vm1758, %vm1759
    %v1761 = vsel %vm1760, %v1753, %v1757
    %v1762 = vand.u32 2147483647, %v1752
    %vm1763 = vcmp.eq.f32.partialorder %v1762, 8.507059e+37
    %v1764 = vand.u32 %v1752, 2147483648
    %v1765 = vor.u32 1.1754944e-38, %v1764
    %v1766 = vsel %vm1763, %v1765, %v1761
    %v1767 = vmul.f32 1.0, %v1766
    %v1768 = vtanh.pop %v1748
    %v1770 = vrot.slane %v1652, 6
    %v1772 = vmul.f32 %v1767, %v1770
    %1774 = vrot.lane.b32.xlu0 %v1768, 96
    %v1775 = vpop.permute.xlu0 %1774
    %v1777 = vmul.f32 %v1767, %v1775
    %1779 = vrot.lane.b32.xlu0 %v1777, 16
    %v1780 = vpop.permute.xlu0 %1779
    %v1782 = vadd.f32 %v1772, %v1780
    %v1783 = vtanh.pop %v1782
    %1785 = vrot.lane.b32.xlu0 %v1783, 32
    %v1786 = vpop.permute.xlu0 %1785
    %v1788 = vmul.f32 %v1767, %v1786
    %v1790 = vrot.slane %v1719, 6
    %1791 = vrot.lane.b32.xlu0 %v1790, 80
    %v1792 = vpop.permute.xlu0 %1791
    %v1793 = vsel %vm330, %v1792, 0
    %1795 = vmatpush.msra.mxu0 0.0
    %1796 = vmatpush.msra.mxu0 0.0
    %1797 = vmatpush.msra.mxu0 0.0
    %1798 = vmatpush.msra.mxu0 0.0
    %1799 = vmatpush.msra.mxu0 0.0
    %1800 = vmatpush.msra.mxu0 0.0
    %1801 = vmatpush.msra.mxu0 0.0
    %1802 = vmatpush.msra.mxu0 0.0
    %1803 = vmatpush.msra.mxu0 0.0
    %1804 = vmatpush.msra.mxu0 0.0
    %1805 = vmatpush.msra.mxu0 0.0
    %1806 = vmatpush.msra.mxu0 0.0
    %1807 = vmatpush.msra.mxu0 0.0
    %1808 = vmatpush.msra.mxu0 0.0
    %1809 = vmatpush.msra.mxu0 %v278
    %1810 = vmatpush.msra.mxu0 %v277
    %1811 = vmatmul.f32.gmra.mxu0 %v1793
    %v1812 = vpop.f32.mrf.mxu0
    %v1813 = vadd.f32 0.0, %v1812
    %1814 = vdwg.mxu0
    %v1816 = vrot.slane %v1813, 4
    %v1818 = vadd.f32 %v1599, %v1816
    %v1819 = vxor.u32 %v1818, 2147483648
    %v1820 = vmul.f32 %v1819, 1.442695
    %v1821 = vpow.pop %v1820
    %v1822 = vadd.f32 %v1821, 1.0
    %v1823 = vrcp.pop %v1822
    %v1824 = vmul.f32 %v1822, %v1823
    %v1825 = vsub.f32 1.0, %v1824
    %v1826 = vmul.f32 %v1823, %v1825
    %v1827 = vadd.f32 %v1823, %v1826
    %vm1828 = vweird.f32 %v1822
    %vm1829 = vweird.f32 %v1823
    %vm1830 = vmor %vm1828, %vm1829
    %v1831 = vsel %vm1830, %v1823, %v1827
    %v1832 = vand.u32 2147483647, %v1822
    %vm1833 = vcmp.eq.f32.partialorder %v1832, 8.507059e+37
    %v1834 = vand.u32 %v1822, 2147483648
    %v1835 = vor.u32 1.1754944e-38, %v1834
    %v1836 = vsel %vm1833, %v1835, %v1831
    %v1837 = vmul.f32 1.0, %v1836
    %v1838 = vtanh.pop %v1818
    %v1840 = vrot.slane %v1713, 2
    %v1842 = vmul.f32 %v1837, %v1840
    %1844 = vrot.lane.b32.xlu0 %v1838, 96
    %v1845 = vpop.permute.xlu0 %1844
    %v1847 = vmul.f32 %v1837, %v1845
    %1849 = vrot.lane.b32.xlu0 %v1847, 16
    %v1850 = vpop.permute.xlu0 %1849
    %v1852 = vadd.f32 %v1842, %v1850
    %v1853 = vtanh.pop %v1852
    %1855 = vrot.lane.b32.xlu0 %v1853, 32
    %v1856 = vpop.permute.xlu0 %1855
    %v1858 = vmul.f32 %v1837, %v1856
    %v1860 = vrot.slane %v1788, 2
    %1861 = vrot.lane.b32.xlu0 %v1860, 80
    %v1862 = vpop.permute.xlu0 %1861
    %v1863 = vsel %vm330, %v1862, 0
    %1865 = vmatpush.msra.mxu0 0.0
    %1866 = vmatpush.msra.mxu0 0.0
    %1867 = vmatpush.msra.mxu0 0.0
    %1868 = vmatpush.msra.mxu0 0.0
    %1869 = vmatpush.msra.mxu0 0.0
    %1870 = vmatpush.msra.mxu0 0.0
    %1871 = vmatpush.msra.mxu0 0.0
    %1872 = vmatpush.msra.mxu0 0.0
    %1873 = vmatpush.msra.mxu0 0.0
    %1874 = vmatpush.msra.mxu0 0.0
    %1875 = vmatpush.msra.mxu0 0.0
    %1876 = vmatpush.msra.mxu0 0.0
    %1877 = vmatpush.msra.mxu0 0.0
    %1878 = vmatpush.msra.mxu0 0.0
    %1879 = vmatpush.msra.mxu0 %v271
    %1880 = vmatpush.msra.mxu0 %v270
    %1881 = vmatmul.f32.gmra.mxu0 %v1863
    %v1882 = vpop.f32.mrf.mxu0
    %v1883 = vadd.f32 0.0, %v1882
    %1884 = vdwg.mxu0
    %v1886 = vrot.slane %v1883, 4
    %v1888 = vadd.f32 %v1570, %v1886
    %v1889 = vxor.u32 %v1888, 2147483648
    %v1890 = vmul.f32 %v1889, 1.442695
    %v1891 = vpow.pop %v1890
    %v1892 = vadd.f32 %v1891, 1.0
    %v1893 = vrcp.pop %v1892
    %v1894 = vmul.f32 %v1892, %v1893
    %v1895 = vsub.f32 1.0, %v1894
    %v1896 = vmul.f32 %v1893, %v1895
    %v1897 = vadd.f32 %v1893, %v1896
    %vm1898 = vweird.f32 %v1892
    %vm1899 = vweird.f32 %v1893
    %vm1900 = vmor %vm1898, %vm1899
    %v1901 = vsel %vm1900, %v1893, %v1897
    %v1902 = vand.u32 2147483647, %v1892
    %vm1903 = vcmp.eq.f32.partialorder %v1902, 8.507059e+37
    %v1904 = vand.u32 %v1892, 2147483648
    %v1905 = vor.u32 1.1754944e-38, %v1904
    %v1906 = vsel %vm1903, %v1905, %v1901
    %v1907 = vmul.f32 1.0, %v1906
    %v1908 = vtanh.pop %v1888
    %v1910 = vrot.slane %v1782, 6
    %v1912 = vmul.f32 %v1907, %v1910
    %1914 = vrot.lane.b32.xlu0 %v1908, 96
    %v1915 = vpop.permute.xlu0 %1914
    %v1917 = vmul.f32 %v1907, %v1915
    %1919 = vrot.lane.b32.xlu0 %v1917, 16
    %v1920 = vpop.permute.xlu0 %1919
    %v1922 = vadd.f32 %v1912, %v1920
    %v1923 = vtanh.pop %v1922
    %1925 = vrot.lane.b32.xlu0 %v1923, 32
    %v1926 = vpop.permute.xlu0 %1925
    %v1928 = vmul.f32 %v1907, %v1926
    %v1930 = vrot.slane %v1858, 4
    %1931 = vrot.lane.b32.xlu0 %v1930, 80
    %v1932 = vpop.permute.xlu0 %1931
    %v1933 = vsel %vm330, %v1932, 0
    %1935 = vmatpush.msra.mxu0 0.0
    %1936 = vmatpush.msra.mxu0 0.0
    %1937 = vmatpush.msra.mxu0 0.0
    %1938 = vmatpush.msra.mxu0 0.0
    %1939 = vmatpush.msra.mxu0 0.0
    %1940 = vmatpush.msra.mxu0 0.0
    %1941 = vmatpush.msra.mxu0 0.0
    %1942 = vmatpush.msra.mxu0 0.0
    %1943 = vmatpush.msra.mxu0 0.0
    %1944 = vmatpush.msra.mxu0 0.0
    %1945 = vmatpush.msra.mxu0 0.0
    %1946 = vmatpush.msra.mxu0 0.0
    %1947 = vmatpush.msra.mxu0 0.0
    %1948 = vmatpush.msra.mxu0 0.0
    %1949 = vmatpush.msra.mxu0 %v278
    %1950 = vmatpush.msra.mxu0 %v277
    %1951 = vmatmul.f32.gmra.mxu0 %v1933
    %v1952 = vpop.f32.mrf.mxu0
    %v1953 = vadd.f32 0.0, %v1952
    %1954 = vdwg.mxu0
    %v1956 = vrot.slane %v1953, 6
    %v1958 = vadd.f32 %v1599, %v1956
    %v1959 = vxor.u32 %v1958, 2147483648
    %v1960 = vmul.f32 %v1959, 1.442695
    %v1961 = vpow.pop %v1960
    %v1962 = vadd.f32 %v1961, 1.0
    %v1963 = vrcp.pop %v1962
    %v1964 = vmul.f32 %v1962, %v1963
    %v1965 = vsub.f32 1.0, %v1964
    %v1966 = vmul.f32 %v1963, %v1965
    %v1967 = vadd.f32 %v1963, %v1966
    %vm1968 = vweird.f32 %v1962
    %vm1969 = vweird.f32 %v1963
    %vm1970 = vmor %vm1968, %vm1969
    %v1971 = vsel %vm1970, %v1963, %v1967
    %v1972 = vand.u32 2147483647, %v1962
    %vm1973 = vcmp.eq.f32.partialorder %v1972, 8.507059e+37
    %v1974 = vand.u32 %v1962, 2147483648
    %v1975 = vor.u32 1.1754944e-38, %v1974
    %v1976 = vsel %vm1973, %v1975, %v1971
    %v1977 = vmul.f32 1.0, %v1976
    %v1978 = vtanh.pop %v1958
    %v1980 = vrot.slane %v1852, 2
    %v1982 = vmul.f32 %v1977, %v1980
    %1984 = vrot.lane.b32.xlu0 %v1978, 96
    %v1985 = vpop.permute.xlu0 %1984
    %v1987 = vmul.f32 %v1977, %v1985
    %1989 = vrot.lane.b32.xlu0 %v1987, 16
    %v1990 = vpop.permute.xlu0 %1989
    %v1992 = vadd.f32 %v1982, %v1990
    %v1993 = vtanh.pop %v1992
    %1995 = vrot.lane.b32.xlu0 %v1993, 32
    %v1996 = vpop.permute.xlu0 %1995
    %v1998 = vmul.f32 %v1977, %v1996
    %v2000 = vrot.slane %v1928, 4
    %2001 = vrot.lane.b32.xlu0 %v2000, 80
    %v2002 = vpop.permute.xlu0 %2001
    %v2003 = vsel %vm330, %v2002, 0
    %2005 = vmatpush.msra.mxu0 0.0
    %2006 = vmatpush.msra.mxu0 0.0
    %2007 = vmatpush.msra.mxu0 0.0
    %2008 = vmatpush.msra.mxu0 0.0
    %2009 = vmatpush.msra.mxu0 0.0
    %2010 = vmatpush.msra.mxu0 0.0
    %2011 = vmatpush.msra.mxu0 0.0
    %2012 = vmatpush.msra.mxu0 0.0
    %2013 = vmatpush.msra.mxu0 0.0
    %2014 = vmatpush.msra.mxu0 0.0
    %2015 = vmatpush.msra.mxu0 0.0
    %2016 = vmatpush.msra.mxu0 0.0
    %2017 = vmatpush.msra.mxu0 0.0
    %2018 = vmatpush.msra.mxu0 0.0
    %2019 = vmatpush.msra.mxu0 %v271
    %2020 = vmatpush.msra.mxu0 %v270
    %2021 = vmatmul.f32.gmra.mxu0 %v2003
    %v2022 = vpop.f32.mrf.mxu0
    %v2023 = vadd.f32 0.0, %v2022
    %2024 = vdwg.mxu0
    %v2026 = vrot.slane %v2023, 2
    %v2028 = vadd.f32 %v1570, %v2026
    %v2029 = vxor.u32 %v2028, 2147483648
    %v2030 = vmul.f32 %v2029, 1.442695
    %v2031 = vpow.pop %v2030
    %v2032 = vadd.f32 %v2031, 1.0
    %v2033 = vrcp.pop %v2032
    %v2034 = vmul.f32 %v2032, %v2033
    %v2035 = vsub.f32 1.0, %v2034
    %v2036 = vmul.f32 %v2033, %v2035
    %v2037 = vadd.f32 %v2033, %v2036
    %vm2038 = vweird.f32 %v2032
    %vm2039 = vweird.f32 %v2033
    %vm2040 = vmor %vm2038, %vm2039
    %v2041 = vsel %vm2040, %v2033, %v2037
    %v2042 = vand.u32 2147483647, %v2032
    %vm2043 = vcmp.eq.f32.partialorder %v2042, 8.507059e+37
    %v2044 = vand.u32 %v2032, 2147483648
    %v2045 = vor.u32 1.1754944e-38, %v2044
    %v2046 = vsel %vm2043, %v2045, %v2041
    %v2047 = vmul.f32 1.0, %v2046
    %v2048 = vtanh.pop %v2028
    %v2050 = vrot.slane %v1922, 6
    %v2052 = vmul.f32 %v2047, %v2050
    %2054 = vrot.lane.b32.xlu0 %v2048, 96
    %v2055 = vpop.permute.xlu0 %2054
    %v2057 = vmul.f32 %v2047, %v2055
    %2059 = vrot.lane.b32.xlu0 %v2057, 16
    %v2060 = vpop.permute.xlu0 %2059
    %v2062 = vadd.f32 %v2052, %v2060
    %v2063 = vtanh.pop %v2062
    %2065 = vrot.lane.b32.xlu0 %v2063, 32
    %v2066 = vpop.permute.xlu0 %2065
    %v2068 = vmul.f32 %v2047, %v2066
    %v2070 = vrot.slane %v1998, 2
    %2071 = vrot.lane.b32.xlu0 %v2070, 80
    %v2072 = vpop.permute.xlu0 %2071
    %v2073 = vsel %vm330, %v2072, 0
    %2075 = vmatpush.msra.mxu0 0.0
    %2076 = vmatpush.msra.mxu0 0.0
    %2077 = vmatpush.msra.mxu0 0.0
    %2078 = vmatpush.msra.mxu0 0.0
    %2079 = vmatpush.msra.mxu0 0.0
    %2080 = vmatpush.msra.mxu0 0.0
    %2081 = vmatpush.msra.mxu0 0.0
    %2082 = vmatpush.msra.mxu0 0.0
    %2083 = vmatpush.msra.mxu0 0.0
    %2084 = vmatpush.msra.mxu0 0.0
    %2085 = vmatpush.msra.mxu0 0.0
    %2086 = vmatpush.msra.mxu0 0.0
    %2087 = vmatpush.msra.mxu0 0.0
    %2088 = vmatpush.msra.mxu0 0.0
    %2089 = vmatpush.msra.mxu0 %v278
    %2090 = vmatpush.msra.mxu0 %v277
    %2091 = vmatmul.f32.gmra.mxu0 %v2073
    %v2092 = vpop.f32.mrf.mxu0
    %v2093 = vadd.f32 0.0, %v2092
    %2094 = vdwg.mxu0
    %v2095 = vadd.f32 %v1599, %v2093
    %v2096 = vxor.u32 %v2095, 2147483648
    %v2097 = vmul.f32 %v2096, 1.442695
    %v2098 = vpow.pop %v2097
    %v2099 = vadd.f32 %v2098, 1.0
    %v2100 = vrcp.pop %v2099
    %v2101 = vmul.f32 %v2099, %v2100
    %v2102 = vsub.f32 1.0, %v2101
    %v2103 = vmul.f32 %v2100, %v2102
    %v2104 = vadd.f32 %v2100, %v2103
    %vm2105 = vweird.f32 %v2099
    %vm2106 = vweird.f32 %v2100
    %vm2107 = vmor %vm2105, %vm2106
    %v2108 = vsel %vm2107, %v2100, %v2104
    %v2109 = vand.u32 2147483647, %v2099
    %vm2110 = vcmp.eq.f32.partialorder %v2109, 8.507059e+37
    %v2111 = vand.u32 %v2099, 2147483648
    %v2112 = vor.u32 1.1754944e-38, %v2111
    %v2113 = vsel %vm2110, %v2112, %v2108
    %v2114 = vmul.f32 1.0, %v2113
    %v2115 = vtanh.pop %v2095
    %v2117 = vrot.slane %v1992, 2
    %v2119 = vmul.f32 %v2114, %v2117
    %2121 = vrot.lane.b32.xlu0 %v2115, 96
    %v2122 = vpop.permute.xlu0 %2121
    %v2124 = vmul.f32 %v2114, %v2122
    %2126 = vrot.lane.b32.xlu0 %v2124, 16
    %v2127 = vpop.permute.xlu0 %2126
    %v2129 = vadd.f32 %v2119, %v2127
    %v2130 = vtanh.pop %v2129
    %2132 = vrot.lane.b32.xlu0 %v2130, 32
    %v2133 = vpop.permute.xlu0 %2132
    %v2135 = vmul.f32 %v2114, %v2133
    %v2137 = vrot.slane %v2068, 6
    %2138 = vrot.lane.b32.xlu0 %v2137, 80
    %v2139 = vpop.permute.xlu0 %2138
    %v2140 = vsel %vm330, %v2139, 0
    %2142 = vmatpush.msra.mxu0 0.0
    %2143 = vmatpush.msra.mxu0 0.0
    %2144 = vmatpush.msra.mxu0 0.0
    %2145 = vmatpush.msra.mxu0 0.0
    %2146 = vmatpush.msra.mxu0 0.0
    %2147 = vmatpush.msra.mxu0 0.0
    %2148 = vmatpush.msra.mxu0 0.0
    %2149 = vmatpush.msra.mxu0 0.0
    %2150 = vmatpush.msra.mxu0 0.0
    %2151 = vmatpush.msra.mxu0 0.0
    %2152 = vmatpush.msra.mxu0 0.0
    %2153 = vmatpush.msra.mxu0 0.0
    %2154 = vmatpush.msra.mxu0 0.0
    %2155 = vmatpush.msra.mxu0 0.0
    %2156 = vmatpush.msra.mxu0 %v271
    %2157 = vmatpush.msra.mxu0 %v270
    %2158 = vmatmul.f32.gmra.mxu0 %v2140
    %v2159 = vpop.f32.mrf.mxu0
    %v2160 = vadd.f32 0.0, %v2159
    %2161 = vdwg.mxu0
    %v2162 = vadd.f32 %v1573, %v2160
    %v2163 = vxor.u32 %v2162, 2147483648
    %v2164 = vmul.f32 %v2163, 1.442695
    %v2165 = vpow.pop %v2164
    %v2166 = vadd.f32 %v2165, 1.0
    %v2167 = vrcp.pop %v2166
    %v2168 = vmul.f32 %v2166, %v2167
    %v2169 = vsub.f32 1.0, %v2168
    %v2170 = vmul.f32 %v2167, %v2169
    %v2171 = vadd.f32 %v2167, %v2170
    %vm2172 = vweird.f32 %v2166
    %vm2173 = vweird.f32 %v2167
    %vm2174 = vmor %vm2172, %vm2173
    %v2175 = vsel %vm2174, %v2167, %v2171
    %v2176 = vand.u32 2147483647, %v2166
    %vm2177 = vcmp.eq.f32.partialorder %v2176, 8.507059e+37
    %v2178 = vand.u32 %v2166, 2147483648
    %v2179 = vor.u32 1.1754944e-38, %v2178
    %v2180 = vsel %vm2177, %v2179, %v2175
    %v2181 = vmul.f32 1.0, %v2180
    %v2182 = vtanh.pop %v2162
    %v2184 = vrot.slane %v2062, 6
    %v2186 = vmul.f32 %v2181, %v2184
    %2188 = vrot.lane.b32.xlu0 %v2182, 96
    %v2189 = vpop.permute.xlu0 %2188
    %v2191 = vmul.f32 %v2181, %v2189
    %2193 = vrot.lane.b32.xlu0 %v2191, 16
    %v2194 = vpop.permute.xlu0 %2193
    %v2196 = vadd.f32 %v2186, %v2194
    %v2197 = vtanh.pop %v2196
    %2199 = vrot.lane.b32.xlu0 %v2197, 32
    %v2200 = vpop.permute.xlu0 %2199
    %v2202 = vmul.f32 %v2181, %v2200
    %2204 = vrot.lane.b32.xlu0 %v2135, 80
    %v2205 = vpop.permute.xlu0 %2204
    %v2206 = vsel %vm330, %v2205, 0
    %2208 = vmatpush.msra.mxu0 0.0
    %2209 = vmatpush.msra.mxu0 0.0
    %2210 = vmatpush.msra.mxu0 0.0
    %2211 = vmatpush.msra.mxu0 0.0
    %2212 = vmatpush.msra.mxu0 0.0
    %2213 = vmatpush.msra.mxu0 0.0
    %2214 = vmatpush.msra.mxu0 0.0
    %2215 = vmatpush.msra.mxu0 0.0
    %2216 = vmatpush.msra.mxu0 0.0
    %2217 = vmatpush.msra.mxu0 0.0
    %2218 = vmatpush.msra.mxu0 0.0
    %2219 = vmatpush.msra.mxu0 0.0
    %2220 = vmatpush.msra.mxu0 0.0
    %2221 = vmatpush.msra.mxu0 0.0
    %2222 = vmatpush.msra.mxu0 %v278
    %2223 = vmatpush.msra.mxu0 %v277
    %2224 = vmatmul.f32.gmra.mxu0 %v2206
    %v2225 = vpop.f32.mrf.mxu0
    %v2226 = vadd.f32 0.0, %v2225
    %2227 = vdwg.mxu0
    %v2229 = vrot.slane %v2226, 2
    %v2231 = vadd.f32 %v1596, %v2229
    %v2232 = vxor.u32 %v2231, 2147483648
    %v2233 = vmul.f32 %v2232, 1.442695
    %v2234 = vpow.pop %v2233
    %v2235 = vadd.f32 %v2234, 1.0
    %v2236 = vrcp.pop %v2235
    %v2237 = vmul.f32 %v2235, %v2236
    %v2238 = vsub.f32 1.0, %v2237
    %v2239 = vmul.f32 %v2236, %v2238
    %v2240 = vadd.f32 %v2236, %v2239
    %vm2241 = vweird.f32 %v2235
    %vm2242 = vweird.f32 %v2236
    %vm2243 = vmor %vm2241, %vm2242
    %v2244 = vsel %vm2243, %v2236, %v2240
    %v2245 = vand.u32 2147483647, %v2235
    %vm2246 = vcmp.eq.f32.partialorder %v2245, 8.507059e+37
    %v2247 = vand.u32 %v2235, 2147483648
    %v2248 = vor.u32 1.1754944e-38, %v2247
    %v2249 = vsel %vm2246, %v2248, %v2244
    %v2250 = vmul.f32 1.0, %v2249
    %v2251 = vtanh.pop %v2231
    %v2253 = vrot.slane %v2129, 2
    %v2255 = vmul.f32 %v2250, %v2253
    %2257 = vrot.lane.b32.xlu0 %v2251, 96
    %v2258 = vpop.permute.xlu0 %2257
    %v2260 = vmul.f32 %v2250, %v2258
    %2262 = vrot.lane.b32.xlu0 %v2260, 16
    %v2263 = vpop.permute.xlu0 %2262
    %v2265 = vadd.f32 %v2255, %v2263
    %v2266 = vtanh.pop %v2265
    %2268 = vrot.lane.b32.xlu0 %v2266, 32
    %v2269 = vpop.permute.xlu0 %2268
    %v2271 = vmul.f32 %v2250, %v2269
    %2273 = vrot.lane.b32.xlu0 %v2202, 80
    %v2274 = vpop.permute.xlu0 %2273
    %v2275 = vsel %vm330, %v2274, 0
    %2277 = vmatpush.msra.mxu0 0.0
    %2278 = vmatpush.msra.mxu0 0.0
    %2279 = vmatpush.msra.mxu0 0.0
    %2280 = vmatpush.msra.mxu0 0.0
    %2281 = vmatpush.msra.mxu0 0.0
    %2282 = vmatpush.msra.mxu0 0.0
    %2283 = vmatpush.msra.mxu0 0.0
    %2284 = vmatpush.msra.mxu0 0.0
    %2285 = vmatpush.msra.mxu0 0.0
    %2286 = vmatpush.msra.mxu0 0.0
    %2287 = vmatpush.msra.mxu0 0.0
    %2288 = vmatpush.msra.mxu0 0.0
    %2289 = vmatpush.msra.mxu0 0.0
    %2290 = vmatpush.msra.mxu0 0.0
    %2291 = vmatpush.msra.mxu0 %v271
    %2292 = vmatpush.msra.mxu0 %v270
    %2293 = vmatmul.f32.gmra.mxu0 %v2275
    %v2294 = vpop.f32.mrf.mxu0
    %v2295 = vadd.f32 0.0, %v2294
    %2296 = vdwg.mxu0
    %v2298 = vrot.slane %v2295, 6
    %v2300 = vadd.f32 %v1573, %v2298
    %v2301 = vxor.u32 %v2300, 2147483648
    %v2302 = vmul.f32 %v2301, 1.442695
    %v2303 = vpow.pop %v2302
    %v2304 = vadd.f32 %v2303, 1.0
    %v2305 = vrcp.pop %v2304
    %v2306 = vmul.f32 %v2304, %v2305
    %v2307 = vsub.f32 1.0, %v2306
    %v2308 = vmul.f32 %v2305, %v2307
    %v2309 = vadd.f32 %v2305, %v2308
    %vm2310 = vweird.f32 %v2304
    %vm2311 = vweird.f32 %v2305
    %vm2312 = vmor %vm2310, %vm2311
    %v2313 = vsel %vm2312, %v2305, %v2309
    %v2314 = vand.u32 2147483647, %v2304
    %vm2315 = vcmp.eq.f32.partialorder %v2314, 8.507059e+37
    %v2316 = vand.u32 %v2304, 2147483648
    %v2317 = vor.u32 1.1754944e-38, %v2316
    %v2318 = vsel %vm2315, %v2317, %v2313
    %v2319 = vmul.f32 1.0, %v2318
    %v2320 = vtanh.pop %v2300
    %v2322 = vrot.slane %v2196, 6
    %v2324 = vmul.f32 %v2319, %v2322
    %2326 = vrot.lane.b32.xlu0 %v2320, 96
    %v2327 = vpop.permute.xlu0 %2326
    %v2329 = vmul.f32 %v2319, %v2327
    %2331 = vrot.lane.b32.xlu0 %v2329, 16
    %v2332 = vpop.permute.xlu0 %2331
    %v2334 = vadd.f32 %v2324, %v2332
    %v2335 = vtanh.pop %v2334
    %2337 = vrot.lane.b32.xlu0 %v2335, 32
    %v2338 = vpop.permute.xlu0 %2337
    %v2340 = vmul.f32 %v2319, %v2338
    %v2342 = vrot.slane %v2271, 6
    %2343 = vrot.lane.b32.xlu0 %v2342, 80
    %v2344 = vpop.permute.xlu0 %2343
    %v2345 = vsel %vm330, %v2344, 0
    %2347 = vmatpush.msra.mxu0 0.0
    %2348 = vmatpush.msra.mxu0 0.0
    %2349 = vmatpush.msra.mxu0 0.0
    %2350 = vmatpush.msra.mxu0 0.0
    %2351 = vmatpush.msra.mxu0 0.0
    %2352 = vmatpush.msra.mxu0 0.0
    %2353 = vmatpush.msra.mxu0 0.0
    %2354 = vmatpush.msra.mxu0 0.0
    %2355 = vmatpush.msra.mxu0 0.0
    %2356 = vmatpush.msra.mxu0 0.0
    %2357 = vmatpush.msra.mxu0 0.0
    %2358 = vmatpush.msra.mxu0 0.0
    %2359 = vmatpush.msra.mxu0 0.0
    %2360 = vmatpush.msra.mxu0 0.0
    %2361 = vmatpush.msra.mxu0 %v278
    %2362 = vmatpush.msra.mxu0 %v277
    %2363 = vmatmul.f32.gmra.mxu0 %v2345
    %v2364 = vpop.f32.mrf.mxu0
    %v2365 = vadd.f32 0.0, %v2364
    %2366 = vdwg.mxu0
    %v2368 = vrot.slane %v2365, 4
    %v2370 = vadd.f32 %v1596, %v2368
    %v2371 = vxor.u32 %v2370, 2147483648
    %v2372 = vmul.f32 %v2371, 1.442695
    %v2373 = vpow.pop %v2372
    %v2374 = vadd.f32 %v2373, 1.0
    %v2375 = vrcp.pop %v2374
    %v2376 = vmul.f32 %v2374, %v2375
    %v2377 = vsub.f32 1.0, %v2376
    %v2378 = vmul.f32 %v2375, %v2377
    %v2379 = vadd.f32 %v2375, %v2378
    %vm2380 = vweird.f32 %v2374
    %vm2381 = vweird.f32 %v2375
    %vm2382 = vmor %vm2380, %vm2381
    %v2383 = vsel %vm2382, %v2375, %v2379
    %v2384 = vand.u32 2147483647, %v2374
    %vm2385 = vcmp.eq.f32.partialorder %v2384, 8.507059e+37
    %v2386 = vand.u32 %v2374, 2147483648
    %v2387 = vor.u32 1.1754944e-38, %v2386
    %v2388 = vsel %vm2385, %v2387, %v2383
    %v2389 = vmul.f32 1.0, %v2388
    %v2390 = vtanh.pop %v2370
    %v2392 = vrot.slane %v2265, 2
    %v2394 = vmul.f32 %v2389, %v2392
    %2396 = vrot.lane.b32.xlu0 %v2390, 96
    %v2397 = vpop.permute.xlu0 %2396
    %v2399 = vmul.f32 %v2389, %v2397
    %2401 = vrot.lane.b32.xlu0 %v2399, 16
    %v2402 = vpop.permute.xlu0 %2401
    %v2404 = vadd.f32 %v2394, %v2402
    %v2405 = vtanh.pop %v2404
    %2407 = vrot.lane.b32.xlu0 %v2405, 32
    %v2408 = vpop.permute.xlu0 %2407
    %v2410 = vmul.f32 %v2389, %v2408
    %v2412 = vrot.slane %v2340, 2
    %2413 = vrot.lane.b32.xlu0 %v2412, 80
    %v2414 = vpop.permute.xlu0 %2413
    %v2415 = vsel %vm330, %v2414, 0
    %2417 = vmatpush.msra.mxu0 0.0
    %2418 = vmatpush.msra.mxu0 0.0
    %2419 = vmatpush.msra.mxu0 0.0
    %2420 = vmatpush.msra.mxu0 0.0
    %2421 = vmatpush.msra.mxu0 0.0
    %2422 = vmatpush.msra.mxu0 0.0
    %2423 = vmatpush.msra.mxu0 0.0
    %2424 = vmatpush.msra.mxu0 0.0
    %2425 = vmatpush.msra.mxu0 0.0
    %2426 = vmatpush.msra.mxu0 0.0
    %2427 = vmatpush.msra.mxu0 0.0
    %2428 = vmatpush.msra.mxu0 0.0
    %2429 = vmatpush.msra.mxu0 0.0
    %2430 = vmatpush.msra.mxu0 0.0
    %2431 = vmatpush.msra.mxu0 %v271
    %2432 = vmatpush.msra.mxu0 %v270
    %2433 = vmatmul.f32.gmra.mxu0 %v2415
    %v2434 = vpop.f32.mrf.mxu0
    %v2435 = vadd.f32 0.0, %v2434
    %2436 = vdwg.mxu0
    %v2438 = vrot.slane %v2435, 4
    %v2440 = vadd.f32 %v1573, %v2438
    %v2441 = vxor.u32 %v2440, 2147483648
    %v2442 = vmul.f32 %v2441, 1.442695
    %v2443 = vpow.pop %v2442
    %v2444 = vadd.f32 %v2443, 1.0
    %v2445 = vrcp.pop %v2444
    %v2446 = vmul.f32 %v2444, %v2445
    %v2447 = vsub.f32 1.0, %v2446
    %v2448 = vmul.f32 %v2445, %v2447
    %v2449 = vadd.f32 %v2445, %v2448
    %vm2450 = vweird.f32 %v2444
    %vm2451 = vweird.f32 %v2445
    %vm2452 = vmor %vm2450, %vm2451
    %v2453 = vsel %vm2452, %v2445, %v2449
    %v2454 = vand.u32 2147483647, %v2444
    %vm2455 = vcmp.eq.f32.partialorder %v2454, 8.507059e+37
    %v2456 = vand.u32 %v2444, 2147483648
    %v2457 = vor.u32 1.1754944e-38, %v2456
    %v2458 = vsel %vm2455, %v2457, %v2453
    %v2459 = vmul.f32 1.0, %v2458
    %v2460 = vtanh.pop %v2440
    %v2462 = vrot.slane %v2334, 6
    %v2464 = vmul.f32 %v2459, %v2462
    %2466 = vrot.lane.b32.xlu0 %v2460, 96
    %v2467 = vpop.permute.xlu0 %2466
    %v2469 = vmul.f32 %v2459, %v2467
    %2471 = vrot.lane.b32.xlu0 %v2469, 16
    %v2472 = vpop.permute.xlu0 %2471
    %v2474 = vadd.f32 %v2464, %v2472
    %v2475 = vtanh.pop %v2474
    %2477 = vrot.lane.b32.xlu0 %v2475, 32
    %v2478 = vpop.permute.xlu0 %2477
    %v2480 = vmul.f32 %v2459, %v2478
    %v2482 = vrot.slane %v2410, 4
    %2483 = vrot.lane.b32.xlu0 %v2482, 80
    %v2484 = vpop.permute.xlu0 %2483
    %v2485 = vsel %vm330, %v2484, 0
    %2487 = vmatpush.msra.mxu0 0.0
    %2488 = vmatpush.msra.mxu0 0.0
    %2489 = vmatpush.msra.mxu0 0.0
    %2490 = vmatpush.msra.mxu0 0.0
    %2491 = vmatpush.msra.mxu0 0.0
    %2492 = vmatpush.msra.mxu0 0.0
    %2493 = vmatpush.msra.mxu0 0.0
    %2494 = vmatpush.msra.mxu0 0.0
    %2495 = vmatpush.msra.mxu0 0.0
    %2496 = vmatpush.msra.mxu0 0.0
    %2497 = vmatpush.msra.mxu0 0.0
    %2498 = vmatpush.msra.mxu0 0.0
    %2499 = vmatpush.msra.mxu0 0.0
    %2500 = vmatpush.msra.mxu0 0.0
    %2501 = vmatpush.msra.mxu0 %v278
    %2502 = vmatpush.msra.mxu0 %v277
    %2503 = vmatmul.f32.gmra.mxu0 %v2485
    %v2504 = vpop.f32.mrf.mxu0
    %v2505 = vadd.f32 0.0, %v2504
    %2506 = vdwg.mxu0
    %v2508 = vrot.slane %v2505, 6
    %v2510 = vadd.f32 %v1596, %v2508
    %v2511 = vxor.u32 %v2510, 2147483648
    %v2512 = vmul.f32 %v2511, 1.442695
    %v2513 = vpow.pop %v2512
    %v2514 = vadd.f32 %v2513, 1.0
    %v2515 = vrcp.pop %v2514
    %v2516 = vmul.f32 %v2514, %v2515
    %v2517 = vsub.f32 1.0, %v2516
    %v2518 = vmul.f32 %v2515, %v2517
    %v2519 = vadd.f32 %v2515, %v2518
    %vm2520 = vweird.f32 %v2514
    %vm2521 = vweird.f32 %v2515
    %vm2522 = vmor %vm2520, %vm2521
    %v2523 = vsel %vm2522, %v2515, %v2519
    %v2524 = vand.u32 2147483647, %v2514
    %vm2525 = vcmp.eq.f32.partialorder %v2524, 8.507059e+37
    %v2526 = vand.u32 %v2514, 2147483648
    %v2527 = vor.u32 1.1754944e-38, %v2526
    %v2528 = vsel %vm2525, %v2527, %v2523
    %v2529 = vmul.f32 1.0, %v2528
    %v2530 = vtanh.pop %v2510
    %v2532 = vrot.slane %v2404, 2
    %v2534 = vmul.f32 %v2529, %v2532
    %2536 = vrot.lane.b32.xlu0 %v2530, 96
    %v2537 = vpop.permute.xlu0 %2536
    %v2539 = vmul.f32 %v2529, %v2537
    %2541 = vrot.lane.b32.xlu0 %v2539, 16
    %v2542 = vpop.permute.xlu0 %2541
    %v2544 = vadd.f32 %v2534, %v2542
    %v2545 = vtanh.pop %v2544
    %2547 = vrot.lane.b32.xlu0 %v2545, 32
    %v2548 = vpop.permute.xlu0 %2547
    %v2550 = vmul.f32 %v2529, %v2548
    %v2552 = vrot.slane %v2480, 4
    %2553 = vrot.lane.b32.xlu0 %v2552, 80
    %v2554 = vpop.permute.xlu0 %2553
    %v2555 = vsel %vm330, %v2554, 0
    %2557 = vmatpush.msra.mxu0 0.0
    %2558 = vmatpush.msra.mxu0 0.0
    %2559 = vmatpush.msra.mxu0 0.0
    %2560 = vmatpush.msra.mxu0 0.0
    %2561 = vmatpush.msra.mxu0 0.0
    %2562 = vmatpush.msra.mxu0 0.0
    %2563 = vmatpush.msra.mxu0 0.0
    %2564 = vmatpush.msra.mxu0 0.0
    %2565 = vmatpush.msra.mxu0 0.0
    %2566 = vmatpush.msra.mxu0 0.0
    %2567 = vmatpush.msra.mxu0 0.0
    %2568 = vmatpush.msra.mxu0 0.0
    %2569 = vmatpush.msra.mxu0 0.0
    %2570 = vmatpush.msra.mxu0 0.0
    %2571 = vmatpush.msra.mxu0 %v271
    %2572 = vmatpush.msra.mxu0 %v270
    %2573 = vmatmul.f32.gmra.mxu0 %v2555
    %v2574 = vpop.f32.mrf.mxu0
    %v2575 = vadd.f32 0.0, %v2574
    %2576 = vdwg.mxu0
    %v2578 = vrot.slane %v2575, 2
    %v2580 = vadd.f32 %v1573, %v2578
    %v2581 = vxor.u32 %v2580, 2147483648
    %v2582 = vmul.f32 %v2581, 1.442695
    %v2583 = vpow.pop %v2582
    %v2584 = vadd.f32 %v2583, 1.0
    %v2585 = vrcp.pop %v2584
    %v2586 = vmul.f32 %v2584, %v2585
    %v2587 = vsub.f32 1.0, %v2586
    %v2588 = vmul.f32 %v2585, %v2587
    %v2589 = vadd.f32 %v2585, %v2588
    %vm2590 = vweird.f32 %v2584
    %vm2591 = vweird.f32 %v2585
    %vm2592 = vmor %vm2590, %vm2591
    %v2593 = vsel %vm2592, %v2585, %v2589
    %v2594 = vand.u32 2147483647, %v2584
    %vm2595 = vcmp.eq.f32.partialorder %v2594, 8.507059e+37
    %v2596 = vand.u32 %v2584, 2147483648
    %v2597 = vor.u32 1.1754944e-38, %v2596
    %v2598 = vsel %vm2595, %v2597, %v2593
    %v2599 = vmul.f32 1.0, %v2598
    %v2600 = vtanh.pop %v2580
    %v2602 = vrot.slane %v2474, 6
    %v2604 = vmul.f32 %v2599, %v2602
    %2606 = vrot.lane.b32.xlu0 %v2600, 96
    %v2607 = vpop.permute.xlu0 %2606
    %v2609 = vmul.f32 %v2599, %v2607
    %2611 = vrot.lane.b32.xlu0 %v2609, 16
    %v2612 = vpop.permute.xlu0 %2611
    %v2614 = vadd.f32 %v2604, %v2612
    %v2615 = vtanh.pop %v2614
    %2617 = vrot.lane.b32.xlu0 %v2615, 32
    %v2618 = vpop.permute.xlu0 %2617
    %v2620 = vmul.f32 %v2599, %v2618
    %v2622 = vrot.slane %v2550, 2
    %2623 = vrot.lane.b32.xlu0 %v2622, 80
    %v2624 = vpop.permute.xlu0 %2623
    %v2625 = vsel %vm330, %v2624, 0
    %2627 = vmatpush.msra.mxu0 0.0
    %2628 = vmatpush.msra.mxu0 0.0
    %2629 = vmatpush.msra.mxu0 0.0
    %2630 = vmatpush.msra.mxu0 0.0
    %2631 = vmatpush.msra.mxu0 0.0
    %2632 = vmatpush.msra.mxu0 0.0
    %2633 = vmatpush.msra.mxu0 0.0
    %2634 = vmatpush.msra.mxu0 0.0
    %2635 = vmatpush.msra.mxu0 0.0
    %2636 = vmatpush.msra.mxu0 0.0
    %2637 = vmatpush.msra.mxu0 0.0
    %2638 = vmatpush.msra.mxu0 0.0
    %2639 = vmatpush.msra.mxu0 0.0
    %2640 = vmatpush.msra.mxu0 0.0
    %2641 = vmatpush.msra.mxu0 %v278
    %2642 = vmatpush.msra.mxu0 %v277
    %2643 = vmatmul.f32.gmra.mxu0 %v2625
    %v2644 = vpop.f32.mrf.mxu0
    %v2645 = vadd.f32 0.0, %v2644
    %2646 = vdwg.mxu0
    %v2647 = vadd.f32 %v1596, %v2645
    %v2648 = vxor.u32 %v2647, 2147483648
    %v2649 = vmul.f32 %v2648, 1.442695
    %v2650 = vpow.pop %v2649
    %v2651 = vadd.f32 %v2650, 1.0
    %v2652 = vrcp.pop %v2651
    %v2653 = vmul.f32 %v2651, %v2652
    %v2654 = vsub.f32 1.0, %v2653
    %v2655 = vmul.f32 %v2652, %v2654
    %v2656 = vadd.f32 %v2652, %v2655
    %vm2657 = vweird.f32 %v2651
    %vm2658 = vweird.f32 %v2652
    %vm2659 = vmor %vm2657, %vm2658
    %v2660 = vsel %vm2659, %v2652, %v2656
    %v2661 = vand.u32 2147483647, %v2651
    %vm2662 = vcmp.eq.f32.partialorder %v2661, 8.507059e+37
    %v2663 = vand.u32 %v2651, 2147483648
    %v2664 = vor.u32 1.1754944e-38, %v2663
    %v2665 = vsel %vm2662, %v2664, %v2660
    %v2666 = vmul.f32 1.0, %v2665
    %v2667 = vtanh.pop %v2647
    %v2669 = vrot.slane %v2544, 2
    %v2671 = vmul.f32 %v2666, %v2669
    %2673 = vrot.lane.b32.xlu0 %v2667, 96
    %v2674 = vpop.permute.xlu0 %2673
    %v2676 = vmul.f32 %v2666, %v2674
    %2678 = vrot.lane.b32.xlu0 %v2676, 16
    %v2679 = vpop.permute.xlu0 %2678
    %v2681 = vadd.f32 %v2671, %v2679
    %v2682 = vtanh.pop %v2681
    %2684 = vrot.lane.b32.xlu0 %v2682, 32
    %v2685 = vpop.permute.xlu0 %2684
    %v2687 = vmul.f32 %v2666, %v2685
    %v2688 = vsel %vm1511, %v1658, %v1788
    %v2689 = vsel %vm298, %v2688, %v1928
    %v2690 = vsel %vm1514, %v2689, %v2068
    %v2691 = vsel %vm1511, %v2202, %v2340
    %v2692 = vsel %vm298, %v2691, %v2480
    %v2693 = vsel %vm1514, %v2692, %v2620
    %v2694 = vsel %vm1511, %v2687, %v2550
    %v2695 = vsel %vm298, %v2694, %v2410
    %v2696 = vsel %vm1514, %v2695, %v2271
    %v2697 = vsel %vm1511, %v2135, %v1998
    %v2698 = vsel %vm298, %v2697, %v1858
    %v2699 = vsel %vm1514, %v2698, %v1719
    %2702 = vrot.lane.b32.xlu0 %v2690, 80
    %v2703 = vpop.permute.xlu0 %2702
    %2704 = vrot.lane.b32.xlu0 %v2693, 80
    %v2705 = vpop.permute.xlu0 %2704
    %2710 = vrot.lane.b32.xlu0 %v2696, 96
    %v2711 = vpop.permute.xlu0 %2710
    %2712 = vrot.lane.b32.xlu0 %v2699, 96
    %v2713 = vpop.permute.xlu0 %2712
    %v2716 = vsel %vm330, %v2703, %v2711
    %v2717 = vsel %vm330, %v2705, %v2713
    %v2719 = vperm.slane %v284, 0
    %v2722 = vsel %vm365, %v2716, 0
    %v2725 = vsel %vm365, %v2717, 0
    %2727 = vmatpush.msra.mxu0 0.0
    %2728 = vmatpush.msra.mxu0 0.0
    %2729 = vmatpush.msra.mxu0 0.0
    %2730 = vmatpush.msra.mxu0 0.0
    %2731 = vmatpush.msra.mxu0 0.0
    %2732 = vmatpush.msra.mxu0 0.0
    %2733 = vmatpush.msra.mxu0 0.0
    %2734 = vmatpush.msra.mxu0 0.0
    %2735 = vmatpush.msra.mxu0 0.0
    %2736 = vmatpush.msra.mxu0 0.0
    %2737 = vmatpush.msra.mxu0 0.0
    %2738 = vmatpush.msra.mxu0 0.0
    %2739 = vmatpush.msra.mxu0 %v283
    %2740 = vmatpush.msra.mxu0 %v282
    %2741 = vmatpush.msra.mxu0 %v281
    %2742 = vmatpush.msra.mxu0 %v280
    %2743 = vmatmul.f32.gmra.mxu0 %v2722
    %v2744 = vpop.f32.mrf.mxu0
    %v2745 = vadd.f32 %v2719, %v2744
    %2746 = vmatmul.f32.gmra.mxu0 %v2725
    %v2747 = vpop.f32.mrf.mxu0
    %v2748 = vadd.f32 %v2719, %v2747
    %2749 = vdwg.mxu0
    %v2750 = vmax.f32 %v2745, 0.0
    %v2751 = vmax.f32 %v2748, 0.0
    %v2753 = vperm.slane %v287, 0
    %v2756 = vsel %vm330, %v2750, 0
    %v2759 = vsel %vm330, %v2751, 0
    %2761 = vmatpush.msra.mxu0 0.0
    %2762 = vmatpush.msra.mxu0 0.0
    %2763 = vmatpush.msra.mxu0 0.0
    %2764 = vmatpush.msra.mxu0 0.0
    %2765 = vmatpush.msra.mxu0 0.0
    %2766 = vmatpush.msra.mxu0 0.0
    %2767 = vmatpush.msra.mxu0 0.0
    %2768 = vmatpush.msra.mxu0 0.0
    %2769 = vmatpush.msra.mxu0 0.0
    %2770 = vmatpush.msra.mxu0 0.0
    %2771 = vmatpush.msra.mxu0 0.0
    %2772 = vmatpush.msra.mxu0 0.0
    %2773 = vmatpush.msra.mxu0 0.0
    %2774 = vmatpush.msra.mxu0 0.0
    %2775 = vmatpush.msra.mxu0 %v286
    %2776 = vmatpush.msra.mxu0 %v285
    %2777 = vmatmul.f32.gmra.mxu0 %v2756
    %v2778 = vpop.f32.mrf.mxu0
    %v2779 = vadd.f32 %v2753, %v2778
    %2780 = vmatmul.f32.gmra.mxu0 %v2759
    %v2781 = vpop.f32.mrf.mxu0
    %v2782 = vadd.f32 %v2753, %v2781
    %2783 = vdwg.mxu0
    %vm2784 = vcmask 7168
    %2785 = vst.msk [vmem:[%s21] sm:$0xff] %vm2784, %v2779
    %2786 = vst.msk [vmem:[%s21 + $0x8] sm:$0xff] %vm2784, %v2782
    // Predicated region
    $region134: #{_lambda_.1} parent=1 // pred_check
      _
    $region135: #{_lambda_.1} parent=1 // pred_check_branch
      %2788 = sbr.rel (0) target = $region137
    $region136: #{_lambda_.1} parent=1 // pred_region
      _
    $region137: #{_lambda_.1} parent=1 // pred_fallthru
      _
    // Predicated region
    $region138: #{_lambda_.1} parent=1 // pred_check
      _
    $region139: #{_lambda_.1} parent=1 // pred_check_branch
      %2790 = sbr.rel (0) target = $region141
    $region140: #{_lambda_.1} parent=1 // pred_region
      _
    $region141: #{_lambda_.1} parent=1 // pred_fallthru
      _
    %2791 = vsyncpa [#allocation4], 1
    %2792 = vsyncpa [#allocation6], 1
    %2793 = vsyncpa [#allocation9], 1
    %2794 = vsyncpa [#allocation12], 1
    %2795 = vsyncpa [#allocation15], 1
    %2796 = vsyncpa [#allocation18], 1
    %2797 = vsyncpa [#allocation21], 1

</llo_original>
